<compile_context>
chip_gen: v7x
topology: tpu7x:2x2x1
jax: 0.10.0
libtpu: 0.0.40
codegen_flags: <defaults>
</compile_context>

<pallas_src>
import functools
import math

import jax
import jax.numpy as jnp
import numpy as np
from jax.experimental import pallas as pl
from jax.experimental.pallas import tpu as pltpu

LANE = 128
_VMEM_BUDGET = 20 * 1024 * 1024   # per-step working-set budget (fits every chip)
_VMEM_LIMIT = 32 * 1024 * 1024    # explicit scoped-VMEM limit (<= v7x physical/2)


def _round_up(x, m):
    return ((x + m - 1) // m) * m


# ----------------------------------------------------------------------------
# Pallas kernel: full BACON forward for one tile of coordinate rows.
# ----------------------------------------------------------------------------
def _bacon_kernel(coords_ref, wf_ref, bf_ref, wl_ref, bl_ref, wo_ref, bo_ref,
                  out_ref, *, n_filters: int, hidden: int, in_size: int,
                  fourier_on_vpu: bool, chain_dtype, output_act: bool):
    x = coords_ref[...]                                    # [tm, in_size] f32

    # ---- all Fourier filters at once (densely packed over filters*hidden) ---
    if fourier_on_vpu:
        # K = in_size (2-3) is tiny: broadcast multiply-adds on the VPU free
        # the MXU for the chain matmuls.  Must stay f32 (large phase args).
        pre = x[:, 0:1] * wf_ref[pl.ds(0, 1), :]
        for c in range(1, in_size):
            pre = pre + x[:, c:c + 1] * wf_ref[pl.ds(c, 1), :]
        pre = pre + bf_ref[...]
    else:
        pre = (jnp.dot(x, wf_ref[...], preferred_element_type=jnp.float32)
               + bf_ref[...])
    filt_all = jnp.sin(pre)                                # [tm, Ftot_p] f32

    # ---- multiplicative filter chain ----
    out = filt_all[:, 0:hidden]                            # [tm, hidden]
    for i in range(1, n_filters):
        filt = filt_all[:, i * hidden:(i + 1) * hidden]
        lin = (jnp.dot(out.astype(chain_dtype), wl_ref[i - 1],
                       preferred_element_type=jnp.float32)
               + bl_ref[pl.ds(i - 1, 1), :])
        out = filt * lin

    # ---- output projection (narrow store: block last dim == full array dim) --
    y = (jnp.dot(out.astype(chain_dtype), wo_ref[...],
                 preferred_element_type=jnp.float32)
         + bo_ref[...])
    if output_act:
        y = jnp.sin(y)
    out_ref[...] = y.astype(out_ref.dtype)


# ----------------------------------------------------------------------------
# Wrapper: packs/casts weights, tiles the row dimension.
# ----------------------------------------------------------------------------
def bacon_forward(coords, params, *, output_act=False, tile_m=1024,
                  chain_dtype=jnp.bfloat16, fourier_on_vpu=None):
    """coords: [N, in_size] float32. Returns [N, out_size] float32."""
    wf, bf, wl, bl, wo, bo = (
        params["wf"], params["bf"], params["wl"], params["bl"],
        params["wo"], params["bo"],
    )
    N, in_size = coords.shape
    n_filters, _, hidden = wf.shape
    out_size = wo.shape[1]

    if fourier_on_vpu is None:
        fourier_on_vpu = in_size <= 8

    # ---- densely packed fused Fourier weights (pad only the total to 128) ----
    f_total = n_filters * hidden
    ftot_p = _round_up(f_total, LANE)
    wf_all = jnp.transpose(wf, (1, 0, 2)).reshape(in_size, f_total)
    wf_all = jnp.pad(wf_all, ((0, 0), (0, ftot_p - f_total)))       # [in, Ftot_p]
    bf_all = jnp.pad(bf.reshape(1, f_total), ((0, 0), (0, ftot_p - f_total)))

    # Chain / output weights: bf16 operands, f32 accumulation (single-pass MXU).
    wl_c = wl.astype(chain_dtype)                                   # [L, H, H]
    wo_c = wo.astype(chain_dtype)                                   # [H, out]
    bl_f = bl.astype(jnp.float32)                                   # [L, H]
    bo_f = bo.astype(jnp.float32)                                   # [1, out]

    weight_bytes = sum(int(np.prod(a.shape)) * jnp.dtype(a.dtype).itemsize
                       for a in (wf_all, bf_all, wl_c, bl_f, wo_c, bo_f))

    # ---- row tiling: VMEM-budgeted tile size, clamped to N ----
    def vmem_estimate(tm):
        acts = tm * (ftot_p + 4 * hidden + out_size) * 4            # temps (f32)
        io = 2 * tm * (in_size + out_size) * 4                      # dbl-buffered
        return 2 * acts + io + 2 * weight_bytes

    tile_m = max(8, min(int(tile_m), _round_up(N, 8)))
    tile_m = _round_up(tile_m, 8)
    while tile_m > 8 and vmem_estimate(tile_m) > _VMEM_BUDGET:
        tile_m = max(8, _round_up(tile_m // 2, 8))

    # Only v7x has two TensorCores: keep the "parallel" grid length >= 2 and
    # even there; single-TC chips (v5e/v6e) keep one big tile (less per-step
    # pipeline overhead).
    try:
        kind = jax.devices()[0].device_kind.lower()
    except Exception:
        kind = ""
    multi_tc = ("v7" in kind) or ("7x" in kind)
    if multi_tc and N > 16:
        n_steps = pl.cdiv(N, tile_m)
        if n_steps < 2 or (n_steps % 2):
            n_steps = max(2, n_steps + (n_steps % 2))
            tile_m = max(8, _round_up(pl.cdiv(N, n_steps), 8))

    N_pad = _round_up(N, tile_m)
    coords_p = coords if N_pad == N else jnp.pad(coords, ((0, N_pad - N), (0, 0)))
    grid = (N_pad // tile_m,)

    def resident(a):
        # Weights: constant index map -> resident across grid steps.
        # TODO(synk): add pipeline_mode=pl.Buffered(1) (single-buffer the
        # resident weights) once verified on the target jax build; the saving
        # is negligible at hidden=32.
        nd = a.ndim
        return pl.BlockSpec(a.shape, lambda i, _nd=nd: (0,) * _nd)

    kernel = functools.partial(
        _bacon_kernel, n_filters=n_filters, hidden=hidden, in_size=in_size,
        fourier_on_vpu=bool(fourier_on_vpu), chain_dtype=chain_dtype,
        output_act=output_act)

    out = pl.pallas_call(
        kernel,
        out_shape=jax.ShapeDtypeStruct((N_pad, out_size), jnp.float32),
        grid=grid,
        in_specs=[
            pl.BlockSpec((tile_m, in_size), lambda i: (i, 0)),   # coords tile
            resident(wf_all),                                    # fused filter W
            resident(bf_all),                                    # fused filter b
            resident(wl_c),                                      # hidden linear W
            resident(bl_f),                                      # hidden linear b
            resident(wo_c),                                      # output W
            resident(bo_f),                                      # output b
        ],
        # Narrow (tile_m, out_size) output block: last dim equals the full
        # array dim (legal) and avoids 128-lane-padded HBM writeback.
        out_specs=pl.BlockSpec((tile_m, out_size), lambda i: (i, 0)),
        compiler_params=pltpu.CompilerParams(
            dimension_semantics=("parallel",),
            vmem_limit_bytes=_VMEM_LIMIT,
        ),
    )(coords_p, wf_all, bf_all, wl_c, bl_f, wo_c, bo_f)

    return out[:N]


# ----------------------------------------------------------------------------
# Deterministic parameter construction (mirrors BACON.__init__ shapes/init).
# ----------------------------------------------------------------------------
def init_bacon_params(key, *, in_size, hidden_size, out_size, hidden_layers,
                      frequency, quantization_interval=2 * np.pi):
    n_filters = hidden_layers + 1

    input_scale = [
        round(np.pi * f / (hidden_layers + 1) / quantization_interval)
        * quantization_interval
        for f in frequency
    ]

    keys = jax.random.split(key, 4 + 2 * n_filters + 2 * hidden_layers)
    kidx = 0

    wf = np.zeros((n_filters, in_size, hidden_size), np.float32)
    bf = np.zeros((n_filters, hidden_size), np.float32)
    for f in range(n_filters):
        for c in range(in_size):
            ws = input_scale[c]
            hi = int(2 * ws / quantization_interval) + 1
            ints = jax.random.randint(keys[kidx], (hidden_size,), 0, hi)
            wf[f, c, :] = np.asarray(ints, np.float32) * quantization_interval - ws
        kidx += 1
        bf[f] = np.asarray(
            jax.random.uniform(keys[kidx], (hidden_size,),
                               minval=-np.pi, maxval=np.pi), np.float32)
        kidx += 1

    lim_h = math.sqrt(6.0 / hidden_size)
    wl = np.zeros((hidden_layers, hidden_size, hidden_size), np.float32)
    bl = np.zeros((hidden_layers, hidden_size), np.float32)
    for l in range(hidden_layers):
        wl[l] = np.asarray(
            jax.random.uniform(keys[kidx], (hidden_size, hidden_size),
                               minval=-lim_h, maxval=lim_h), np.float32)
        kidx += 1
        b_lim = 1.0 / math.sqrt(hidden_size)
        bl[l] = np.asarray(
            jax.random.uniform(keys[kidx], (hidden_size,),
                               minval=-b_lim, maxval=b_lim), np.float32)
        kidx += 1

    wo = np.asarray(
        jax.random.uniform(keys[kidx], (hidden_size, out_size),
                           minval=-lim_h, maxval=lim_h), np.float32)
    kidx += 1
    bo_lim = 1.0 / math.sqrt(hidden_size)
    bo = np.asarray(
        jax.random.uniform(keys[kidx], (1, out_size),
                           minval=-bo_lim, maxval=bo_lim), np.float32)

    return {
        "wf": jnp.asarray(wf), "bf": jnp.asarray(bf),
        "wl": jnp.asarray(wl), "bl": jnp.asarray(bl),
        "wo": jnp.asarray(wo), "bo": jnp.asarray(bo),
    }


# ----------------------------------------------------------------------------
# Pure-JAX references for correctness checks.
# ----------------------------------------------------------------------------
def bacon_reference(coords, params, output_act=False,
                    chain_dtype=jnp.float32, fourier_elementwise=True):
    wf, bf, wl, bl, wo, bo = (
        params["wf"], params["bf"], params["wl"], params["bl"],
        params["wo"], params["bo"],
    )
    n_filters = wf.shape[0]

    def fourier(i):
        if fourier_elementwise:   # mirrors the kernel's VPU path exactly (f32)
            pre = coords[:, 0:1] * wf[i][0:1, :]
            for c in range(1, coords.shape[1]):
                pre = pre + coords[:, c:c + 1] * wf[i][c:c + 1, :]
            pre = pre + bf[i]
        else:
            pre = coords @ wf[i] + bf[i]
        return jnp.sin(pre)

    def cdot(a, b):
        return jnp.dot(a.astype(chain_dtype), b.astype(chain_dtype),
                       preferred_element_type=jnp.float32)

    out = fourier(0)
    for i in range(1, n_filters):
        out = fourier(i) * (cdot(out, wl[i - 1]) + bl[i - 1])
    y = cdot(out, wo) + bo
    return jnp.sin(y) if output_act else y


if __name__ == "__main__":
    # Small shapes consistent with the module: 2D coords, hidden=32, 3 hidden layers.
    in_size, hidden_size, out_size = 2, 32, 3
    hidden_layers = 3
    frequency = (16, 16)
    N = 256  # number of coordinate samples (rows)

    key = jax.random.PRNGKey(0)
    pkey, ckey = jax.random.split(key)

    params = init_bacon_params(
        pkey, in_size=in_size, hidden_size=hidden_size, out_size=out_size,
        hidden_layers=hidden_layers, frequency=frequency)

    coords = jax.random.uniform(ckey, (N, in_size), jnp.float32,
                                minval=-1.0, maxval=1.0)
    model_input = {"coords": coords}

    # --- fast default path: VPU Fourier + bf16 chain matmuls ---
    out_fast = bacon_forward(model_input["coords"], params, output_act=False)
    out_fast = jax.block_until_ready(out_fast)
    ref_fast = bacon_reference(model_input["coords"], params,
                               chain_dtype=jnp.bfloat16,
                               fourier_elementwise=True)
    np.testing.assert_allclose(np.asarray(out_fast), np.asarray(ref_fast),
                               rtol=2e-2, atol=2e-2)

    # --- full-f32 path: tight semantic check against the module's math ---
    out_f32 = bacon_forward(model_input["coords"], params, output_act=False,
                            chain_dtype=jnp.float32, fourier_on_vpu=False)
    out_f32 = jax.block_until_ready(out_f32)
    ref_f32 = bacon_reference(model_input["coords"], params,
                              chain_dtype=jnp.float32,
                              fourier_elementwise=False)
    np.testing.assert_allclose(np.asarray(out_f32), np.asarray(ref_f32),
                               rtol=1e-5, atol=1e-5)

    # Mimic the module's dict-structured return (glue only).
    result = {"model_in": model_input, "model_out": {"output": out_fast}}
    assert result["model_out"]["output"].shape == (N, out_size)

    print("KERNEL_OK")
</pallas_src>

<mosaic_0001>
module attributes {stable_mosaic.version = 11 : i64} {
  func.func @_bacon_kernel(%arg0: i32, %arg1: memref<256x2xf32, #tpu.memory_space<vmem>>, %arg2: memref<2x128xf32, #tpu.memory_space<vmem>>, %arg3: memref<1x128xf32, #tpu.memory_space<vmem>>, %arg4: memref<3x32x32xbf16, #tpu.memory_space<vmem>>, %arg5: memref<3x32xf32, #tpu.memory_space<vmem>>, %arg6: memref<32x3xbf16, #tpu.memory_space<vmem>>, %arg7: memref<1x3xf32, #tpu.memory_space<vmem>>, %arg8: memref<256x3xf32, #tpu.memory_space<vmem>>) attributes {dimension_semantics = [#tpu.dimension_semantics<parallel>], iteration_bounds = array<i64: 1>, scalar_prefetch = 0 : i64, scratch_operands = 0 : i64, tpu.core_type = #tpu.core_type<tc>, window_params = [{transform_indices = @transform_0, window_bounds = array<i64: 256, 2>}, {pipeline_mode = #tpu.pipeline_mode<synchronous>, transform_indices = @transform_1, window_bounds = array<i64: 2, 128>}, {pipeline_mode = #tpu.pipeline_mode<synchronous>, transform_indices = @transform_2, window_bounds = array<i64: 1, 128>}, {pipeline_mode = #tpu.pipeline_mode<synchronous>, transform_indices = @transform_3, window_bounds = array<i64: 3, 32, 32>}, {pipeline_mode = #tpu.pipeline_mode<synchronous>, transform_indices = @transform_4, window_bounds = array<i64: 3, 32>}, {pipeline_mode = #tpu.pipeline_mode<synchronous>, transform_indices = @transform_5, window_bounds = array<i64: 32, 3>}, {pipeline_mode = #tpu.pipeline_mode<synchronous>, transform_indices = @transform_6, window_bounds = array<i64: 1, 3>}, {transform_indices = @transform_7, window_bounds = array<i64: 256, 3>}]} {
    %c0 = arith.constant 0 : index
    %c0_0 = arith.constant 0 : index
    %0 = vector.load %arg1[%c0, %c0_0] : memref<256x2xf32, #tpu.memory_space<vmem>>, vector<256x2xf32>
    %1 = vector.extract_strided_slice %0 {offsets = [0, 0], sizes = [256, 1], strides = [1, 1]} : vector<256x2xf32> to vector<256x1xf32>
    %c0_1 = arith.constant 0 : index
    %c0_2 = arith.constant 0 : index
    %2 = vector.load %arg2[%c0_1, %c0_2] : memref<2x128xf32, #tpu.memory_space<vmem>>, vector<1x128xf32>
    %3 = vector.broadcast %1 : vector<256x1xf32> to vector<256x128xf32>
    %4 = vector.broadcast %2 : vector<1x128xf32> to vector<256x128xf32>
    %5 = arith.mulf %3, %4 : vector<256x128xf32>
    %6 = vector.extract_strided_slice %0 {offsets = [0, 1], sizes = [256, 1], strides = [1, 1]} : vector<256x2xf32> to vector<256x1xf32>
    %c1 = arith.constant 1 : index
    %c0_3 = arith.constant 0 : index
    %7 = vector.load %arg2[%c1, %c0_3] : memref<2x128xf32, #tpu.memory_space<vmem>>, vector<1x128xf32>
    %8 = vector.broadcast %6 : vector<256x1xf32> to vector<256x128xf32>
    %9 = vector.broadcast %7 : vector<1x128xf32> to vector<256x128xf32>
    %10 = arith.mulf %8, %9 : vector<256x128xf32>
    %11 = arith.addf %5, %10 : vector<256x128xf32>
    %c0_4 = arith.constant 0 : index
    %c0_5 = arith.constant 0 : index
    %12 = vector.load %arg3[%c0_4, %c0_5] : memref<1x128xf32, #tpu.memory_space<vmem>>, vector<1x128xf32>
    %13 = vector.broadcast %12 : vector<1x128xf32> to vector<256x128xf32>
    %14 = arith.addf %11, %13 : vector<256x128xf32>
    %15 = math.sin %14 : vector<256x128xf32>
    %16 = vector.extract_strided_slice %15 {offsets = [0, 0], sizes = [256, 32], strides = [1, 1]} : vector<256x128xf32> to vector<256x32xf32>
    %17 = vector.extract_strided_slice %15 {offsets = [0, 32], sizes = [256, 32], strides = [1, 1]} : vector<256x128xf32> to vector<256x32xf32>
    %18 = arith.truncf %16 : vector<256x32xf32> to vector<256x32xbf16>
    %c0_6 = arith.constant 0 : index
    %c0_7 = arith.constant 0 : index
    %c0_8 = arith.constant 0 : index
    %19 = vector.load %arg4[%c0_6, %c0_7, %c0_8] : memref<3x32x32xbf16, #tpu.memory_space<vmem>>, vector<1x32x32xbf16>
    %20 = vector.shape_cast %19 : vector<1x32x32xbf16> to vector<32x32xbf16>
    %cst = arith.constant dense<0.000000e+00> : vector<256x32xf32>
    %21 = tpu.matmul %18, %20, %cst {dimension_numbers = #tpu.dot_dimension_numbers<[1], [0], [0], [1], [0, 0, 1, 1], [], []>} : vector<256x32xbf16>, vector<32x32xbf16>, vector<256x32xf32> -> vector<256x32xf32>
    %c0_9 = arith.constant 0 : index
    %c0_10 = arith.constant 0 : index
    %22 = vector.load %arg5[%c0_9, %c0_10] : memref<3x32xf32, #tpu.memory_space<vmem>>, vector<1x32xf32>
    %23 = vector.broadcast %22 : vector<1x32xf32> to vector<256x32xf32>
    %24 = arith.addf %21, %23 : vector<256x32xf32>
    %25 = arith.mulf %17, %24 : vector<256x32xf32>
    %26 = vector.extract_strided_slice %15 {offsets = [0, 64], sizes = [256, 32], strides = [1, 1]} : vector<256x128xf32> to vector<256x32xf32>
    %27 = arith.truncf %25 : vector<256x32xf32> to vector<256x32xbf16>
    %c1_11 = arith.constant 1 : index
    %c0_12 = arith.constant 0 : index
    %c0_13 = arith.constant 0 : index
    %28 = vector.load %arg4[%c1_11, %c0_12, %c0_13] : memref<3x32x32xbf16, #tpu.memory_space<vmem>>, vector<1x32x32xbf16>
    %29 = vector.shape_cast %28 : vector<1x32x32xbf16> to vector<32x32xbf16>
    %cst_14 = arith.constant dense<0.000000e+00> : vector<256x32xf32>
    %30 = tpu.matmul %27, %29, %cst_14 {dimension_numbers = #tpu.dot_dimension_numbers<[1], [0], [0], [1], [0, 0, 1, 1], [], []>} : vector<256x32xbf16>, vector<32x32xbf16>, vector<256x32xf32> -> vector<256x32xf32>
    %c1_15 = arith.constant 1 : index
    %c0_16 = arith.constant 0 : index
    %31 = vector.load %arg5[%c1_15, %c0_16] : memref<3x32xf32, #tpu.memory_space<vmem>>, vector<1x32xf32>
    %32 = vector.broadcast %31 : vector<1x32xf32> to vector<256x32xf32>
    %33 = arith.addf %30, %32 : vector<256x32xf32>
    %34 = arith.mulf %26, %33 : vector<256x32xf32>
    %35 = vector.extract_strided_slice %15 {offsets = [0, 96], sizes = [256, 32], strides = [1, 1]} : vector<256x128xf32> to vector<256x32xf32>
    %36 = arith.truncf %34 : vector<256x32xf32> to vector<256x32xbf16>
    %c2 = arith.constant 2 : index
    %c0_17 = arith.constant 0 : index
    %c0_18 = arith.constant 0 : index
    %37 = vector.load %arg4[%c2, %c0_17, %c0_18] : memref<3x32x32xbf16, #tpu.memory_space<vmem>>, vector<1x32x32xbf16>
    %38 = vector.shape_cast %37 : vector<1x32x32xbf16> to vector<32x32xbf16>
    %cst_19 = arith.constant dense<0.000000e+00> : vector<256x32xf32>
    %39 = tpu.matmul %36, %38, %cst_19 {dimension_numbers = #tpu.dot_dimension_numbers<[1], [0], [0], [1], [0, 0, 1, 1], [], []>} : vector<256x32xbf16>, vector<32x32xbf16>, vector<256x32xf32> -> vector<256x32xf32>
    %c2_20 = arith.constant 2 : index
    %c0_21 = arith.constant 0 : index
    %40 = vector.load %arg5[%c2_20, %c0_21] : memref<3x32xf32, #tpu.memory_space<vmem>>, vector<1x32xf32>
    %41 = vector.broadcast %40 : vector<1x32xf32> to vector<256x32xf32>
    %42 = arith.addf %39, %41 : vector<256x32xf32>
    %43 = arith.mulf %35, %42 : vector<256x32xf32>
    %44 = arith.truncf %43 : vector<256x32xf32> to vector<256x32xbf16>
    %c0_22 = arith.constant 0 : index
    %c0_23 = arith.constant 0 : index
    %45 = vector.load %arg6[%c0_22, %c0_23] : memref<32x3xbf16, #tpu.memory_space<vmem>>, vector<32x3xbf16>
    %cst_24 = arith.constant dense<0.000000e+00> : vector<256x3xf32>
    %46 = tpu.matmul %44, %45, %cst_24 {dimension_numbers = #tpu.dot_dimension_numbers<[1], [0], [0], [1], [0, 0, 1, 1], [], []>} : vector<256x32xbf16>, vector<32x3xbf16>, vector<256x3xf32> -> vector<256x3xf32>
    %c0_25 = arith.constant 0 : index
    %c0_26 = arith.constant 0 : index
    %47 = vector.load %arg7[%c0_25, %c0_26] : memref<1x3xf32, #tpu.memory_space<vmem>>, vector<1x3xf32>
    %48 = vector.broadcast %47 : vector<1x3xf32> to vector<256x3xf32>
    %49 = arith.addf %46, %48 : vector<256x3xf32>
    %c0_27 = arith.constant 0 : index
    %c0_28 = arith.constant 0 : index
    %50 = vector.load %arg8[%c0_27, %c0_28] : memref<256x3xf32, #tpu.memory_space<vmem>>, vector<256x3xf32>
    tpu.vector_store %arg8[%c0_27, %c0_28], %49 {strides = array<i32>} : memref<256x3xf32, #tpu.memory_space<vmem>>, vector<256x3xf32>,
    return
  }
  func.func @transform_0(%arg0: i32) -> (i32, i32) {
    %c0_i32 = arith.constant 0 : i32
    %c0_i32_0 = arith.constant 0 : i32
    return %arg0, %c0_i32 : i32, i32
  }
  func.func @transform_1(%arg0: i32) -> (i32, i32) {
    %c0_i32 = arith.constant 0 : i32
    %c0_i32_0 = arith.constant 0 : i32
    %c0_i32_1 = arith.constant 0 : i32
    return %c0_i32, %c0_i32_0 : i32, i32
  }
  func.func @transform_2(%arg0: i32) -> (i32, i32) {
    %c0_i32 = arith.constant 0 : i32
    %c0_i32_0 = arith.constant 0 : i32
    %c0_i32_1 = arith.constant 0 : i32
    return %c0_i32, %c0_i32_0 : i32, i32
  }
  func.func @transform_3(%arg0: i32) -> (i32, i32, i32) {
    %c0_i32 = arith.constant 0 : i32
    %c0_i32_0 = arith.constant 0 : i32
    %c0_i32_1 = arith.constant 0 : i32
    %c0_i32_2 = arith.constant 0 : i32
    return %c0_i32, %c0_i32_0, %c0_i32_1 : i32, i32, i32
  }
  func.func @transform_4(%arg0: i32) -> (i32, i32) {
    %c0_i32 = arith.constant 0 : i32
    %c0_i32_0 = arith.constant 0 : i32
    %c0_i32_1 = arith.constant 0 : i32
    return %c0_i32, %c0_i32_0 : i32, i32
  }
  func.func @transform_5(%arg0: i32) -> (i32, i32) {
    %c0_i32 = arith.constant 0 : i32
    %c0_i32_0 = arith.constant 0 : i32
    %c0_i32_1 = arith.constant 0 : i32
    return %c0_i32, %c0_i32_0 : i32, i32
  }
  func.func @transform_6(%arg0: i32) -> (i32, i32) {
    %c0_i32 = arith.constant 0 : i32
    %c0_i32_0 = arith.constant 0 : i32
    %c0_i32_1 = arith.constant 0 : i32
    return %c0_i32, %c0_i32_0 : i32, i32
  }
  func.func @transform_7(%arg0: i32) -> (i32, i32) {
    %c0_i32 = arith.constant 0 : i32
    %c0_i32_0 = arith.constant 0 : i32
    return %arg0, %c0_i32 : i32, i32
  }
}

</mosaic_0001>

<llo_original>
// kernel: tpu_custom_call.1
$region0: #{tpu_custom_call.1}
  #allocation0 [shape = 'u32[]', space=smem, size = 0x4, offset = 0x4, fixed_abs, tag = 'smem constant byte address 0x4 - core index']
  #allocation1 [shape = 'u32[144,128]{1,0:T(1,128)}', space=vmem, size = 0x12000, scoped, tag = 'internal scratch']
  %s0 = inlined_call_operand.vmem [shape: f32[256,2], index: 0, kind: input, shape index: {}]
  %s1 = inlined_call_operand.vmem [shape: f32[2,128], index: 1, kind: input, shape index: {}]
  %s2 = inlined_call_operand.vmem [shape: f32[1,128], index: 2, kind: input, shape index: {}]
  %s3 = inlined_call_operand.vmem [shape: bf16[3,32,32], index: 3, kind: input, shape index: {}]
  %s4 = inlined_call_operand.vmem [shape: f32[3,32], index: 4, kind: input, shape index: {}]
  %s5 = inlined_call_operand.vmem [shape: bf16[32,3], index: 5, kind: input, shape index: {}]
  %s6 = inlined_call_operand.vmem [shape: f32[1,3], index: 6, kind: input, shape index: {}]
  %s7 = inlined_call_operand.vmem [shape: f32[256,3], index: 7, kind: output, shape index: {}]
  %s8 = sld [smem:[#allocation0]]
  $region38: #{tpu_custom_call.1} parent=0
    _
  %s10 = ssub.s32 1, %s8
  %s11 = scalar_select 0, %s10, %s8
  // Predicated region
  $region2: #{tpu_custom_call.1} parent=0 // pred_check
    _
  $region3: #{tpu_custom_call.1} parent=0 // pred_check_branch
    %13 = sbr.rel (0) target = $region5
  $region4: #{tpu_custom_call.1} parent=0 // pred_region
    _
  $region5: #{tpu_custom_call.1} parent=0 // pred_fallthru
    _
  // Predicated region
  $region6: #{tpu_custom_call.1} parent=0 // pred_check
    _
  $region7: #{tpu_custom_call.1} parent=0 // pred_check_branch
    %15 = sbr.rel (0) target = $region9
  $region8: #{tpu_custom_call.1} parent=0 // pred_region
    _
  $region9: #{tpu_custom_call.1} parent=0 // pred_fallthru
    _
  // Predicated region
  $region10: #{tpu_custom_call.1} parent=0 // pred_check
    _
  $region11: #{tpu_custom_call.1} parent=0 // pred_check_branch
    %17 = sbr.rel (0) target = $region13
  $region12: #{tpu_custom_call.1} parent=0 // pred_region
    _
  $region13: #{tpu_custom_call.1} parent=0 // pred_fallthru
    _
  // Predicated region
  $region14: #{tpu_custom_call.1} parent=0 // pred_check
    _
  $region15: #{tpu_custom_call.1} parent=0 // pred_check_branch
    %19 = sbr.rel (0) target = $region17
  $region16: #{tpu_custom_call.1} parent=0 // pred_region
    _
  $region17: #{tpu_custom_call.1} parent=0 // pred_fallthru
    _
  // Predicated region
  $region18: #{tpu_custom_call.1} parent=0 // pred_check
    _
  $region19: #{tpu_custom_call.1} parent=0 // pred_check_branch
    %21 = sbr.rel (0) target = $region21
  $region20: #{tpu_custom_call.1} parent=0 // pred_region
    _
  $region21: #{tpu_custom_call.1} parent=0 // pred_fallthru
    _
  // Predicated region
  $region22: #{tpu_custom_call.1} parent=0 // pred_check
    _
  $region23: #{tpu_custom_call.1} parent=0 // pred_check_branch
    %23 = sbr.rel (0) target = $region25
  $region24: #{tpu_custom_call.1} parent=0 // pred_region
    _
  $region25: #{tpu_custom_call.1} parent=0 // pred_fallthru
    _
  // Predicated region
  $region26: #{tpu_custom_call.1} parent=0 // pred_check
    _
  $region27: #{tpu_custom_call.1} parent=0 // pred_check_branch
    %25 = sbr.rel (0) target = $region29
  $region28: #{tpu_custom_call.1} parent=0 // pred_region
    _
  $region29: #{tpu_custom_call.1} parent=0 // pred_fallthru
    _
  %v27 = vld [vmem:[%s0] sm:$0xff]
  %v28 = vld [vmem:[%s0 + $0x8] sm:$0xff]
  %v29 = vld [vmem:[%s0 + $0x10] sm:$0xff]
  %v30 = vld [vmem:[%s0 + $0x18] sm:$0xff]
  %v31 = vld [vmem:[%s0 + $0x20] sm:$0xff]
  %v32 = vld [vmem:[%s0 + $0x28] sm:$0xff]
  %v33 = vld [vmem:[%s0 + $0x30] sm:$0xff]
  %v34 = vld [vmem:[%s0 + $0x38] sm:$0xff]
  %v35 = vld [vmem:[%s0 + $0x40] sm:$0xff]
  %v36 = vld [vmem:[%s0 + $0x48] sm:$0xff]
  %v37 = vld [vmem:[%s0 + $0x50] sm:$0xff]
  %v38 = vld [vmem:[%s0 + $0x58] sm:$0xff]
  %v39 = vld [vmem:[%s0 + $0x60] sm:$0xff]
  %v40 = vld [vmem:[%s0 + $0x68] sm:$0xff]
  %v41 = vld [vmem:[%s0 + $0x70] sm:$0xff]
  %v42 = vld [vmem:[%s0 + $0x78] sm:$0xff]
  %v43 = vld [vmem:[%s0 + $0x80] sm:$0xff]
  %v44 = vld [vmem:[%s0 + $0x88] sm:$0xff]
  %v45 = vld [vmem:[%s0 + $0x90] sm:$0xff]
  %v46 = vld [vmem:[%s0 + $0x98] sm:$0xff]
  %v47 = vld [vmem:[%s0 + $0xa0] sm:$0xff]
  %v48 = vld [vmem:[%s0 + $0xa8] sm:$0xff]
  %v49 = vld [vmem:[%s0 + $0xb0] sm:$0xff]
  %v50 = vld [vmem:[%s0 + $0xb8] sm:$0xff]
  %v51 = vld [vmem:[%s0 + $0xc0] sm:$0xff]
  %v52 = vld [vmem:[%s0 + $0xc8] sm:$0xff]
  %v53 = vld [vmem:[%s0 + $0xd0] sm:$0xff]
  %v54 = vld [vmem:[%s0 + $0xd8] sm:$0xff]
  %v55 = vld [vmem:[%s0 + $0xe0] sm:$0xff]
  %v56 = vld [vmem:[%s0 + $0xe8] sm:$0xff]
  %v57 = vld [vmem:[%s0 + $0xf0] sm:$0xff]
  %v58 = vld [vmem:[%s0 + $0xf8] sm:$0xff]
  %v59 = vld [vmem:[%s1] sm:$0x1]
  %61 = vset.pattern.permute.xlu0 0
  %62 = vperm.xlu0 %61, %v27
  %v63 = vpop.permute.xlu0 %62
  %66 = vset.pattern.permute.xlu0 0
  %67 = vperm.xlu0 %66, %v28
  %v68 = vpop.permute.xlu0 %67
  %71 = vset.pattern.permute.xlu0 0
  %72 = vperm.xlu0 %71, %v29
  %v73 = vpop.permute.xlu0 %72
  %76 = vset.pattern.permute.xlu0 0
  %77 = vperm.xlu0 %76, %v30
  %v78 = vpop.permute.xlu0 %77
  %81 = vset.pattern.permute.xlu0 0
  %82 = vperm.xlu0 %81, %v31
  %v83 = vpop.permute.xlu0 %82
  %86 = vset.pattern.permute.xlu0 0
  %87 = vperm.xlu0 %86, %v32
  %v88 = vpop.permute.xlu0 %87
  %91 = vset.pattern.permute.xlu0 0
  %92 = vperm.xlu0 %91, %v33
  %v93 = vpop.permute.xlu0 %92
  %96 = vset.pattern.permute.xlu0 0
  %97 = vperm.xlu0 %96, %v34
  %v98 = vpop.permute.xlu0 %97
  %101 = vset.pattern.permute.xlu0 0
  %102 = vperm.xlu0 %101, %v35
  %v103 = vpop.permute.xlu0 %102
  %106 = vset.pattern.permute.xlu0 0
  %107 = vperm.xlu0 %106, %v36
  %v108 = vpop.permute.xlu0 %107
  %111 = vset.pattern.permute.xlu0 0
  %112 = vperm.xlu0 %111, %v37
  %v113 = vpop.permute.xlu0 %112
  %116 = vset.pattern.permute.xlu0 0
  %117 = vperm.xlu0 %116, %v38
  %v118 = vpop.permute.xlu0 %117
  %121 = vset.pattern.permute.xlu0 0
  %122 = vperm.xlu0 %121, %v39
  %v123 = vpop.permute.xlu0 %122
  %126 = vset.pattern.permute.xlu0 0
  %127 = vperm.xlu0 %126, %v40
  %v128 = vpop.permute.xlu0 %127
  %131 = vset.pattern.permute.xlu0 0
  %132 = vperm.xlu0 %131, %v41
  %v133 = vpop.permute.xlu0 %132
  %136 = vset.pattern.permute.xlu0 0
  %137 = vperm.xlu0 %136, %v42
  %v138 = vpop.permute.xlu0 %137
  %141 = vset.pattern.permute.xlu0 0
  %142 = vperm.xlu0 %141, %v43
  %v143 = vpop.permute.xlu0 %142
  %146 = vset.pattern.permute.xlu0 0
  %147 = vperm.xlu0 %146, %v44
  %v148 = vpop.permute.xlu0 %147
  %151 = vset.pattern.permute.xlu0 0
  %152 = vperm.xlu0 %151, %v45
  %v153 = vpop.permute.xlu0 %152
  %156 = vset.pattern.permute.xlu0 0
  %157 = vperm.xlu0 %156, %v46
  %v158 = vpop.permute.xlu0 %157
  %161 = vset.pattern.permute.xlu0 0
  %162 = vperm.xlu0 %161, %v47
  %v163 = vpop.permute.xlu0 %162
  %166 = vset.pattern.permute.xlu0 0
  %167 = vperm.xlu0 %166, %v48
  %v168 = vpop.permute.xlu0 %167
  %171 = vset.pattern.permute.xlu0 0
  %172 = vperm.xlu0 %171, %v49
  %v173 = vpop.permute.xlu0 %172
  %176 = vset.pattern.permute.xlu0 0
  %177 = vperm.xlu0 %176, %v50
  %v178 = vpop.permute.xlu0 %177
  %181 = vset.pattern.permute.xlu0 0
  %182 = vperm.xlu0 %181, %v51
  %v183 = vpop.permute.xlu0 %182
  %186 = vset.pattern.permute.xlu0 0
  %187 = vperm.xlu0 %186, %v52
  %v188 = vpop.permute.xlu0 %187
  %191 = vset.pattern.permute.xlu0 0
  %192 = vperm.xlu0 %191, %v53
  %v193 = vpop.permute.xlu0 %192
  %196 = vset.pattern.permute.xlu0 0
  %197 = vperm.xlu0 %196, %v54
  %v198 = vpop.permute.xlu0 %197
  %201 = vset.pattern.permute.xlu0 0
  %202 = vperm.xlu0 %201, %v55
  %v203 = vpop.permute.xlu0 %202
  %206 = vset.pattern.permute.xlu0 0
  %207 = vperm.xlu0 %206, %v56
  %v208 = vpop.permute.xlu0 %207
  %211 = vset.pattern.permute.xlu0 0
  %212 = vperm.xlu0 %211, %v57
  %v213 = vpop.permute.xlu0 %212
  %216 = vset.pattern.permute.xlu0 0
  %217 = vperm.xlu0 %216, %v58
  %v218 = vpop.permute.xlu0 %217
  %v220 = vlaneseq
  %v221 = vshrl.u32 %v220, 7
  %v222 = vsub.s32 0, %v221
  %v223 = vrot.slane %v59, %v222
  %v224 = vmul.f32 %v63, %v223
  %v225 = vmul.f32 %v68, %v223
  %v226 = vmul.f32 %v73, %v223
  %v227 = vmul.f32 %v78, %v223
  %v228 = vmul.f32 %v83, %v223
  %v229 = vmul.f32 %v88, %v223
  %v230 = vmul.f32 %v93, %v223
  %v231 = vmul.f32 %v98, %v223
  %v232 = vmul.f32 %v103, %v223
  %v233 = vmul.f32 %v108, %v223
  %v234 = vmul.f32 %v113, %v223
  %v235 = vmul.f32 %v118, %v223
  %v236 = vmul.f32 %v123, %v223
  %v237 = vmul.f32 %v128, %v223
  %v238 = vmul.f32 %v133, %v223
  %v239 = vmul.f32 %v138, %v223
  %v240 = vmul.f32 %v143, %v223
  %v241 = vmul.f32 %v148, %v223
  %v242 = vmul.f32 %v153, %v223
  %v243 = vmul.f32 %v158, %v223
  %v244 = vmul.f32 %v163, %v223
  %v245 = vmul.f32 %v168, %v223
  %v246 = vmul.f32 %v173, %v223
  %v247 = vmul.f32 %v178, %v223
  %v248 = vmul.f32 %v183, %v223
  %v249 = vmul.f32 %v188, %v223
  %v250 = vmul.f32 %v193, %v223
  %v251 = vmul.f32 %v198, %v223
  %v252 = vmul.f32 %v203, %v223
  %v253 = vmul.f32 %v208, %v223
  %v254 = vmul.f32 %v213, %v223
  %v255 = vmul.f32 %v218, %v223
  %v256 = vld [vmem:[%s1 + $0x1] sm:$0x1]
  %257 = vset.pattern.permute.xlu0 1
  %258 = vperm.xlu0 %257, %v27
  %v259 = vpop.permute.xlu0 %258
  %261 = vset.pattern.permute.xlu0 1
  %262 = vperm.xlu0 %261, %v28
  %v263 = vpop.permute.xlu0 %262
  %265 = vset.pattern.permute.xlu0 1
  %266 = vperm.xlu0 %265, %v29
  %v267 = vpop.permute.xlu0 %266
  %269 = vset.pattern.permute.xlu0 1
  %270 = vperm.xlu0 %269, %v30
  %v271 = vpop.permute.xlu0 %270
  %273 = vset.pattern.permute.xlu0 1
  %274 = vperm.xlu0 %273, %v31
  %v275 = vpop.permute.xlu0 %274
  %277 = vset.pattern.permute.xlu0 1
  %278 = vperm.xlu0 %277, %v32
  %v279 = vpop.permute.xlu0 %278
  %281 = vset.pattern.permute.xlu0 1
  %282 = vperm.xlu0 %281, %v33
  %v283 = vpop.permute.xlu0 %282
  %285 = vset.pattern.permute.xlu0 1
  %286 = vperm.xlu0 %285, %v34
  %v287 = vpop.permute.xlu0 %286
  %289 = vset.pattern.permute.xlu0 1
  %290 = vperm.xlu0 %289, %v35
  %v291 = vpop.permute.xlu0 %290
  %293 = vset.pattern.permute.xlu0 1
  %294 = vperm.xlu0 %293, %v36
  %v295 = vpop.permute.xlu0 %294
  %297 = vset.pattern.permute.xlu0 1
  %298 = vperm.xlu0 %297, %v37
  %v299 = vpop.permute.xlu0 %298
  %301 = vset.pattern.permute.xlu0 1
  %302 = vperm.xlu0 %301, %v38
  %v303 = vpop.permute.xlu0 %302
  %305 = vset.pattern.permute.xlu0 1
  %306 = vperm.xlu0 %305, %v39
  %v307 = vpop.permute.xlu0 %306
  %309 = vset.pattern.permute.xlu0 1
  %310 = vperm.xlu0 %309, %v40
  %v311 = vpop.permute.xlu0 %310
  %313 = vset.pattern.permute.xlu0 1
  %314 = vperm.xlu0 %313, %v41
  %v315 = vpop.permute.xlu0 %314
  %317 = vset.pattern.permute.xlu0 1
  %318 = vperm.xlu0 %317, %v42
  %v319 = vpop.permute.xlu0 %318
  %321 = vset.pattern.permute.xlu0 1
  %322 = vperm.xlu0 %321, %v43
  %v323 = vpop.permute.xlu0 %322
  %325 = vset.pattern.permute.xlu0 1
  %326 = vperm.xlu0 %325, %v44
  %v327 = vpop.permute.xlu0 %326
  %329 = vset.pattern.permute.xlu0 1
  %330 = vperm.xlu0 %329, %v45
  %v331 = vpop.permute.xlu0 %330
  %333 = vset.pattern.permute.xlu0 1
  %334 = vperm.xlu0 %333, %v46
  %v335 = vpop.permute.xlu0 %334
  %337 = vset.pattern.permute.xlu0 1
  %338 = vperm.xlu0 %337, %v47
  %v339 = vpop.permute.xlu0 %338
  %341 = vset.pattern.permute.xlu0 1
  %342 = vperm.xlu0 %341, %v48
  %v343 = vpop.permute.xlu0 %342
  %345 = vset.pattern.permute.xlu0 1
  %346 = vperm.xlu0 %345, %v49
  %v347 = vpop.permute.xlu0 %346
  %349 = vset.pattern.permute.xlu0 1
  %350 = vperm.xlu0 %349, %v50
  %v351 = vpop.permute.xlu0 %350
  %353 = vset.pattern.permute.xlu0 1
  %354 = vperm.xlu0 %353, %v51
  %v355 = vpop.permute.xlu0 %354
  %357 = vset.pattern.permute.xlu0 1
  %358 = vperm.xlu0 %357, %v52
  %v359 = vpop.permute.xlu0 %358
  %361 = vset.pattern.permute.xlu0 1
  %362 = vperm.xlu0 %361, %v53
  %v363 = vpop.permute.xlu0 %362
  %365 = vset.pattern.permute.xlu0 1
  %366 = vperm.xlu0 %365, %v54
  %v367 = vpop.permute.xlu0 %366
  %369 = vset.pattern.permute.xlu0 1
  %370 = vperm.xlu0 %369, %v55
  %v371 = vpop.permute.xlu0 %370
  %373 = vset.pattern.permute.xlu0 1
  %374 = vperm.xlu0 %373, %v56
  %v375 = vpop.permute.xlu0 %374
  %377 = vset.pattern.permute.xlu0 1
  %378 = vperm.xlu0 %377, %v57
  %v379 = vpop.permute.xlu0 %378
  %381 = vset.pattern.permute.xlu0 1
  %382 = vperm.xlu0 %381, %v58
  %v383 = vpop.permute.xlu0 %382
  %v385 = vlaneseq
  %v386 = vshrl.u32 %v385, 7
  %v387 = vsub.s32 0, %v386
  %v388 = vrot.slane %v256, %v387
  %v389 = vmul.f32 %v259, %v388
  %v390 = vmul.f32 %v263, %v388
  %v391 = vmul.f32 %v267, %v388
  %v392 = vmul.f32 %v271, %v388
  %v393 = vmul.f32 %v275, %v388
  %v394 = vmul.f32 %v279, %v388
  %v395 = vmul.f32 %v283, %v388
  %v396 = vmul.f32 %v287, %v388
  %v397 = vmul.f32 %v291, %v388
  %v398 = vmul.f32 %v295, %v388
  %v399 = vmul.f32 %v299, %v388
  %v400 = vmul.f32 %v303, %v388
  %v401 = vmul.f32 %v307, %v388
  %v402 = vmul.f32 %v311, %v388
  %v403 = vmul.f32 %v315, %v388
  %v404 = vmul.f32 %v319, %v388
  %v405 = vmul.f32 %v323, %v388
  %v406 = vmul.f32 %v327, %v388
  %v407 = vmul.f32 %v331, %v388
  %v408 = vmul.f32 %v335, %v388
  %v409 = vmul.f32 %v339, %v388
  %v410 = vmul.f32 %v343, %v388
  %v411 = vmul.f32 %v347, %v388
  %v412 = vmul.f32 %v351, %v388
  %v413 = vmul.f32 %v355, %v388
  %v414 = vmul.f32 %v359, %v388
  %v415 = vmul.f32 %v363, %v388
  %v416 = vmul.f32 %v367, %v388
  %v417 = vmul.f32 %v371, %v388
  %v418 = vmul.f32 %v375, %v388
  %v419 = vmul.f32 %v379, %v388
  %v420 = vmul.f32 %v383, %v388
  %v421 = vadd.f32 %v224, %v389
  %v422 = vadd.f32 %v225, %v390
  %v423 = vadd.f32 %v226, %v391
  %v424 = vadd.f32 %v227, %v392
  %v425 = vadd.f32 %v228, %v393
  %v426 = vadd.f32 %v229, %v394
  %v427 = vadd.f32 %v230, %v395
  %v428 = vadd.f32 %v231, %v396
  %v429 = vadd.f32 %v232, %v397
  %v430 = vadd.f32 %v233, %v398
  %v431 = vadd.f32 %v234, %v399
  %v432 = vadd.f32 %v235, %v400
  %v433 = vadd.f32 %v236, %v401
  %v434 = vadd.f32 %v237, %v402
  %v435 = vadd.f32 %v238, %v403
  %v436 = vadd.f32 %v239, %v404
  %v437 = vadd.f32 %v240, %v405
  %v438 = vadd.f32 %v241, %v406
  %v439 = vadd.f32 %v242, %v407
  %v440 = vadd.f32 %v243, %v408
  %v441 = vadd.f32 %v244, %v409
  %v442 = vadd.f32 %v245, %v410
  %v443 = vadd.f32 %v246, %v411
  %v444 = vadd.f32 %v247, %v412
  %v445 = vadd.f32 %v248, %v413
  %v446 = vadd.f32 %v249, %v414
  %v447 = vadd.f32 %v250, %v415
  %v448 = vadd.f32 %v251, %v416
  %v449 = vadd.f32 %v252, %v417
  %v450 = vadd.f32 %v253, %v418
  %v451 = vadd.f32 %v254, %v419
  %v452 = vadd.f32 %v255, %v420
  %v453 = vld [vmem:[%s2] sm:$0x1]
  %v455 = vlaneseq
  %v456 = vshrl.u32 %v455, 7
  %v457 = vsub.s32 0, %v456
  %v458 = vrot.slane %v453, %v457
  %v460 = vadd.f32 %v421, %v458
  %v461 = vadd.f32 %v422, %v458
  %v462 = vadd.f32 %v423, %v458
  %v463 = vadd.f32 %v424, %v458
  %v464 = vadd.f32 %v425, %v458
  %v465 = vadd.f32 %v426, %v458
  %v466 = vadd.f32 %v427, %v458
  %v467 = vadd.f32 %v428, %v458
  %v468 = vadd.f32 %v429, %v458
  %v469 = vadd.f32 %v430, %v458
  %v470 = vadd.f32 %v431, %v458
  %v471 = vadd.f32 %v432, %v458
  %v472 = vadd.f32 %v433, %v458
  %v473 = vadd.f32 %v434, %v458
  %v474 = vadd.f32 %v435, %v458
  %v475 = vadd.f32 %v436, %v458
  %v476 = vadd.f32 %v437, %v458
  %v477 = vadd.f32 %v438, %v458
  %v478 = vadd.f32 %v439, %v458
  %v479 = vadd.f32 %v440, %v458
  %v480 = vadd.f32 %v441, %v458
  %v481 = vadd.f32 %v442, %v458
  %v482 = vadd.f32 %v443, %v458
  %v483 = vadd.f32 %v444, %v458
  %v484 = vadd.f32 %v445, %v458
  %v485 = vadd.f32 %v446, %v458
  %v486 = vadd.f32 %v447, %v458
  %v487 = vadd.f32 %v448, %v458
  %v488 = vadd.f32 %v449, %v458
  %v489 = vadd.f32 %v450, %v458
  %v490 = vadd.f32 %v451, %v458
  %v491 = vadd.f32 %v452, %v458
  %v492 = vand.u32 2147483647, %v460
  %vm493 = vcmp.le.f32.partialorder %v492, 0.7853982
  %vm494 = vcmp.lt.s32.totalorder %v460, 0
  %v495 = vand.u32 %v460, 2139095040
  %v496 = vshrl.u32 %v495, 23
  %v497 = vsub.s32 %v496, 127
  %v498 = vand.u32 2147483647, %v460
  %v499 = vand.u32 %v498, 8388607
  %v500 = vor.u32 %v499, 8388608
  %v501 = vsub.s32 0, %v500
  %v502 = vadd.s32 %v497, 1
  %vm503 = vcmp.gt.s32.totalorder %v502, 0
  %v504 = vsel %vm503, %v502, 0
  %v505 = vshrl.u32 %v504, 5
  %v506 = vand.u32 %v504, 31
  %v507 = vsub.s32 32, %v506
  %v508 = vshrl.u32 683565275, %v507
  %v509 = vshll.u32 683565275, %v506
  %v510 = vshrl.u32 2475754826, %v507
  %v511 = vor.u32 %v509, %v510
  %v512 = vshll.u32 2475754826, %v506
  %v513 = vshrl.u32 2131351028, %v507
  %v514 = vor.u32 %v512, %v513
  %v515 = vshll.u32 2131351028, %v506
  %v516 = vshrl.u32 2102212464, %v507
  %v517 = vor.u32 %v515, %v516
  %v518 = vshll.u32 2102212464, %v506
  %v519 = vshrl.u32 920167782, %v507
  %v520 = vor.u32 %v518, %v519
  %v521 = vshll.u32 920167782, %v506
  %v522 = vshrl.u32 1326507024, %v507
  %v523 = vor.u32 %v521, %v522
  %vm524 = vcmp.lt.s32.totalorder %v505, 1
  %vm525 = vcmp.lt.s32.totalorder %v505, 2
  %vm526 = vcmp.lt.s32.totalorder %v505, 3
  %vm527 = vcmp.lt.s32.totalorder %v505, 4
  %v528 = vsel %vm524, %v508, %v511
  %v529 = vsel %vm527, %v517, 2102212464
  %v530 = vsel %vm526, %v514, %v529
  %v531 = vsel %vm525, %v528, %v530
  %v532 = vsel %vm524, %v511, %v514
  %v533 = vsel %vm527, %v520, 920167782
  %v534 = vsel %vm526, %v517, %v533
  %v535 = vsel %vm525, %v532, %v534
  %v536 = vsel %vm524, %v514, %v517
  %v537 = vsel %vm527, %v523, 1326507024
  %v538 = vsel %vm526, %v520, %v537
  %v539 = vsel %vm525, %v536, %v538
  %v540 = vshll.u32 %v500, 8
  %v541 = vmul.u32.u64.compose %v540, %v539
  %v542 = vextract.low.u32 %v541
  %v543 = vextract.high.u32 %v541
  %v544 = vmul.u32.u64.compose %v540, %v535
  %v545 = vextract.low.u32 %v544
  %v546 = vextract.high.u32 %v544
  %v547 = vmul.u32 %v540, %v531
  %v548 = vadd.s32 %v543, %v545
  %vm549 = vc.u32 %v543, %v545
  %v550 = vadd.s32 %v546, 1
  %v551 = vsel %vm549, %v550, %v546
  %v552 = vadd.s32 %v547, %v551
  %v553 = vadd.s32 %v552, 536870912
  %v554 = vshrl.u32 %v553, 30
  %v555 = vshll.u32 %v554, 30
  %v556 = vsub.s32 %v552, %v555
  %vm557 = vcmp.lt.s32.totalorder %v556, 0
  %v558 = vsub.s32 0, %v556
  %v559 = vsel %vm557, %v558, %v556
  %v560 = vclz %v559
  %v561 = vsub.s32 %v560, 2
  %vm562 = vcmp.gt.s32.totalorder 0, %v561
  %v563 = vsel %vm562, 0, %v561
  %v564 = vsub.s32 32, %v563
  %v565 = vshll.u32 %v556, %v563
  %v566 = vshrl.u32 %v548, %v564
  %v567 = vor.u32 %v565, %v566
  %v568 = vsub.s32 4294967266, %v563
  %v569 = vadd.s32 %v568, 127
  %v570 = vshll.u32 %v569, 23
  %v571 = vor.u32 4788187, %v570
  %v572 = vand.u32 2147483647, %v571
  %v574 = vcvt.s32.f32 %v567
  %v575 = vmul.f32 %v574, %v572
  %v576 = vxor.u32 %v575, 2147483648
  %v577 = vsel %vm494, %v576, %v575
  %v578 = vsub.s32 4, %v554
  %v579 = vsel %vm494, %v578, %v554
  %v580 = vsel %vm493, %v460, %v577
  %v581 = vsel %vm493, 0, %v579
  %v582 = vcosq.f32.pop %v580
  %v583 = vsinq.f32.pop %v580
  %vm584 = vweird.f32 %v460
  %v585 = vadd.s32 %v581, 3
  %v586 = vand.u32 %v585, 3
  %vm587 = vcmp.lt.s32.totalorder %v586, 2
  %vm588 = vcmp.eq.s32.totalorder %v586, 0
  %v589 = vxor.u32 %v583, 2147483648
  %v590 = vsel %vm588, %v582, %v589
  %vm591 = vcmp.eq.s32.totalorder %v586, 2
  %v592 = vxor.u32 %v582, 2147483648
  %v593 = vsel %vm591, %v592, %v583
  %v594 = vsel %vm587, %v590, %v593
  %v595 = vsel %vm584, nan, %v594
  %v596 = vand.u32 2147483647, %v461
  %vm597 = vcmp.le.f32.partialorder %v596, 0.7853982
  %vm598 = vcmp.lt.s32.totalorder %v461, 0
  %v599 = vand.u32 %v461, 2139095040
  %v600 = vshrl.u32 %v599, 23
  %v601 = vsub.s32 %v600, 127
  %v602 = vand.u32 2147483647, %v461
  %v603 = vand.u32 %v602, 8388607
  %v604 = vor.u32 %v603, 8388608
  %v605 = vsub.s32 0, %v604
  %v606 = vadd.s32 %v601, 1
  %vm607 = vcmp.gt.s32.totalorder %v606, 0
  %v608 = vsel %vm607, %v606, 0
  %v609 = vshrl.u32 %v608, 5
  %v610 = vand.u32 %v608, 31
  %v611 = vsub.s32 32, %v610
  %v612 = vshrl.u32 683565275, %v611
  %v613 = vshll.u32 683565275, %v610
  %v614 = vshrl.u32 2475754826, %v611
  %v615 = vor.u32 %v613, %v614
  %v616 = vshll.u32 2475754826, %v610
  %v617 = vshrl.u32 2131351028, %v611
  %v618 = vor.u32 %v616, %v617
  %v619 = vshll.u32 2131351028, %v610
  %v620 = vshrl.u32 2102212464, %v611
  %v621 = vor.u32 %v619, %v620
  %v622 = vshll.u32 2102212464, %v610
  %v623 = vshrl.u32 920167782, %v611
  %v624 = vor.u32 %v622, %v623
  %v625 = vshll.u32 920167782, %v610
  %v626 = vshrl.u32 1326507024, %v611
  %v627 = vor.u32 %v625, %v626
  %vm628 = vcmp.lt.s32.totalorder %v609, 1
  %vm629 = vcmp.lt.s32.totalorder %v609, 2
  %vm630 = vcmp.lt.s32.totalorder %v609, 3
  %vm631 = vcmp.lt.s32.totalorder %v609, 4
  %v632 = vsel %vm628, %v612, %v615
  %v633 = vsel %vm631, %v621, 2102212464
  %v634 = vsel %vm630, %v618, %v633
  %v635 = vsel %vm629, %v632, %v634
  %v636 = vsel %vm628, %v615, %v618
  %v637 = vsel %vm631, %v624, 920167782
  %v638 = vsel %vm630, %v621, %v637
  %v639 = vsel %vm629, %v636, %v638
  %v640 = vsel %vm628, %v618, %v621
  %v641 = vsel %vm631, %v627, 1326507024
  %v642 = vsel %vm630, %v624, %v641
  %v643 = vsel %vm629, %v640, %v642
  %v644 = vshll.u32 %v604, 8
  %v645 = vmul.u32.u64.compose %v644, %v643
  %v646 = vextract.low.u32 %v645
  %v647 = vextract.high.u32 %v645
  %v648 = vmul.u32.u64.compose %v644, %v639
  %v649 = vextract.low.u32 %v648
  %v650 = vextract.high.u32 %v648
  %v651 = vmul.u32 %v644, %v635
  %v652 = vadd.s32 %v647, %v649
  %vm653 = vc.u32 %v647, %v649
  %v654 = vadd.s32 %v650, 1
  %v655 = vsel %vm653, %v654, %v650
  %v656 = vadd.s32 %v651, %v655
  %v657 = vadd.s32 %v656, 536870912
  %v658 = vshrl.u32 %v657, 30
  %v659 = vshll.u32 %v658, 30
  %v660 = vsub.s32 %v656, %v659
  %vm661 = vcmp.lt.s32.totalorder %v660, 0
  %v662 = vsub.s32 0, %v660
  %v663 = vsel %vm661, %v662, %v660
  %v664 = vclz %v663
  %v665 = vsub.s32 %v664, 2
  %vm666 = vcmp.gt.s32.totalorder 0, %v665
  %v667 = vsel %vm666, 0, %v665
  %v668 = vsub.s32 32, %v667
  %v669 = vshll.u32 %v660, %v667
  %v670 = vshrl.u32 %v652, %v668
  %v671 = vor.u32 %v669, %v670
  %v672 = vsub.s32 4294967266, %v667
  %v673 = vadd.s32 %v672, 127
  %v674 = vshll.u32 %v673, 23
  %v675 = vor.u32 4788187, %v674
  %v676 = vand.u32 2147483647, %v675
  %v678 = vcvt.s32.f32 %v671
  %v679 = vmul.f32 %v678, %v676
  %v680 = vxor.u32 %v679, 2147483648
  %v681 = vsel %vm598, %v680, %v679
  %v682 = vsub.s32 4, %v658
  %v683 = vsel %vm598, %v682, %v658
  %v684 = vsel %vm597, %v461, %v681
  %v685 = vsel %vm597, 0, %v683
  %v686 = vcosq.f32.pop %v684
  %v687 = vsinq.f32.pop %v684
  %vm688 = vweird.f32 %v461
  %v689 = vadd.s32 %v685, 3
  %v690 = vand.u32 %v689, 3
  %vm691 = vcmp.lt.s32.totalorder %v690, 2
  %vm692 = vcmp.eq.s32.totalorder %v690, 0
  %v693 = vxor.u32 %v687, 2147483648
  %v694 = vsel %vm692, %v686, %v693
  %vm695 = vcmp.eq.s32.totalorder %v690, 2
  %v696 = vxor.u32 %v686, 2147483648
  %v697 = vsel %vm695, %v696, %v687
  %v698 = vsel %vm691, %v694, %v697
  %v699 = vsel %vm688, nan, %v698
  %v700 = vand.u32 2147483647, %v462
  %vm701 = vcmp.le.f32.partialorder %v700, 0.7853982
  %vm702 = vcmp.lt.s32.totalorder %v462, 0
  %v703 = vand.u32 %v462, 2139095040
  %v704 = vshrl.u32 %v703, 23
  %v705 = vsub.s32 %v704, 127
  %v706 = vand.u32 2147483647, %v462
  %v707 = vand.u32 %v706, 8388607
  %v708 = vor.u32 %v707, 8388608
  %v709 = vsub.s32 0, %v708
  %v710 = vadd.s32 %v705, 1
  %vm711 = vcmp.gt.s32.totalorder %v710, 0
  %v712 = vsel %vm711, %v710, 0
  %v713 = vshrl.u32 %v712, 5
  %v714 = vand.u32 %v712, 31
  %v715 = vsub.s32 32, %v714
  %v716 = vshrl.u32 683565275, %v715
  %v717 = vshll.u32 683565275, %v714
  %v718 = vshrl.u32 2475754826, %v715
  %v719 = vor.u32 %v717, %v718
  %v720 = vshll.u32 2475754826, %v714
  %v721 = vshrl.u32 2131351028, %v715
  %v722 = vor.u32 %v720, %v721
  %v723 = vshll.u32 2131351028, %v714
  %v724 = vshrl.u32 2102212464, %v715
  %v725 = vor.u32 %v723, %v724
  %v726 = vshll.u32 2102212464, %v714
  %v727 = vshrl.u32 920167782, %v715
  %v728 = vor.u32 %v726, %v727
  %v729 = vshll.u32 920167782, %v714
  %v730 = vshrl.u32 1326507024, %v715
  %v731 = vor.u32 %v729, %v730
  %vm732 = vcmp.lt.s32.totalorder %v713, 1
  %vm733 = vcmp.lt.s32.totalorder %v713, 2
  %vm734 = vcmp.lt.s32.totalorder %v713, 3
  %vm735 = vcmp.lt.s32.totalorder %v713, 4
  %v736 = vsel %vm732, %v716, %v719
  %v737 = vsel %vm735, %v725, 2102212464
  %v738 = vsel %vm734, %v722, %v737
  %v739 = vsel %vm733, %v736, %v738
  %v740 = vsel %vm732, %v719, %v722
  %v741 = vsel %vm735, %v728, 920167782
  %v742 = vsel %vm734, %v725, %v741
  %v743 = vsel %vm733, %v740, %v742
  %v744 = vsel %vm732, %v722, %v725
  %v745 = vsel %vm735, %v731, 1326507024
  %v746 = vsel %vm734, %v728, %v745
  %v747 = vsel %vm733, %v744, %v746
  %v748 = vshll.u32 %v708, 8
  %v749 = vmul.u32.u64.compose %v748, %v747
  %v750 = vextract.low.u32 %v749
  %v751 = vextract.high.u32 %v749
  %v752 = vmul.u32.u64.compose %v748, %v743
  %v753 = vextract.low.u32 %v752
  %v754 = vextract.high.u32 %v752
  %v755 = vmul.u32 %v748, %v739
  %v756 = vadd.s32 %v751, %v753
  %vm757 = vc.u32 %v751, %v753
  %v758 = vadd.s32 %v754, 1
  %v759 = vsel %vm757, %v758, %v754
  %v760 = vadd.s32 %v755, %v759
  %v761 = vadd.s32 %v760, 536870912
  %v762 = vshrl.u32 %v761, 30
  %v763 = vshll.u32 %v762, 30
  %v764 = vsub.s32 %v760, %v763
  %vm765 = vcmp.lt.s32.totalorder %v764, 0
  %v766 = vsub.s32 0, %v764
  %v767 = vsel %vm765, %v766, %v764
  %v768 = vclz %v767
  %v769 = vsub.s32 %v768, 2
  %vm770 = vcmp.gt.s32.totalorder 0, %v769
  %v771 = vsel %vm770, 0, %v769
  %v772 = vsub.s32 32, %v771
  %v773 = vshll.u32 %v764, %v771
  %v774 = vshrl.u32 %v756, %v772
  %v775 = vor.u32 %v773, %v774
  %v776 = vsub.s32 4294967266, %v771
  %v777 = vadd.s32 %v776, 127
  %v778 = vshll.u32 %v777, 23
  %v779 = vor.u32 4788187, %v778
  %v780 = vand.u32 2147483647, %v779
  %v782 = vcvt.s32.f32 %v775
  %v783 = vmul.f32 %v782, %v780
  %v784 = vxor.u32 %v783, 2147483648
  %v785 = vsel %vm702, %v784, %v783
  %v786 = vsub.s32 4, %v762
  %v787 = vsel %vm702, %v786, %v762
  %v788 = vsel %vm701, %v462, %v785
  %v789 = vsel %vm701, 0, %v787
  %v790 = vcosq.f32.pop %v788
  %v791 = vsinq.f32.pop %v788
  %vm792 = vweird.f32 %v462
  %v793 = vadd.s32 %v789, 3
  %v794 = vand.u32 %v793, 3
  %vm795 = vcmp.lt.s32.totalorder %v794, 2
  %vm796 = vcmp.eq.s32.totalorder %v794, 0
  %v797 = vxor.u32 %v791, 2147483648
  %v798 = vsel %vm796, %v790, %v797
  %vm799 = vcmp.eq.s32.totalorder %v794, 2
  %v800 = vxor.u32 %v790, 2147483648
  %v801 = vsel %vm799, %v800, %v791
  %v802 = vsel %vm795, %v798, %v801
  %v803 = vsel %vm792, nan, %v802
  %v804 = vand.u32 2147483647, %v463
  %vm805 = vcmp.le.f32.partialorder %v804, 0.7853982
  %vm806 = vcmp.lt.s32.totalorder %v463, 0
  %v807 = vand.u32 %v463, 2139095040
  %v808 = vshrl.u32 %v807, 23
  %v809 = vsub.s32 %v808, 127
  %v810 = vand.u32 2147483647, %v463
  %v811 = vand.u32 %v810, 8388607
  %v812 = vor.u32 %v811, 8388608
  %v813 = vsub.s32 0, %v812
  %v814 = vadd.s32 %v809, 1
  %vm815 = vcmp.gt.s32.totalorder %v814, 0
  %v816 = vsel %vm815, %v814, 0
  %v817 = vshrl.u32 %v816, 5
  %v818 = vand.u32 %v816, 31
  %v819 = vsub.s32 32, %v818
  %v820 = vshrl.u32 683565275, %v819
  %v821 = vshll.u32 683565275, %v818
  %v822 = vshrl.u32 2475754826, %v819
  %v823 = vor.u32 %v821, %v822
  %v824 = vshll.u32 2475754826, %v818
  %v825 = vshrl.u32 2131351028, %v819
  %v826 = vor.u32 %v824, %v825
  %v827 = vshll.u32 2131351028, %v818
  %v828 = vshrl.u32 2102212464, %v819
  %v829 = vor.u32 %v827, %v828
  %v830 = vshll.u32 2102212464, %v818
  %v831 = vshrl.u32 920167782, %v819
  %v832 = vor.u32 %v830, %v831
  %v833 = vshll.u32 920167782, %v818
  %v834 = vshrl.u32 1326507024, %v819
  %v835 = vor.u32 %v833, %v834
  %vm836 = vcmp.lt.s32.totalorder %v817, 1
  %vm837 = vcmp.lt.s32.totalorder %v817, 2
  %vm838 = vcmp.lt.s32.totalorder %v817, 3
  %vm839 = vcmp.lt.s32.totalorder %v817, 4
  %v840 = vsel %vm836, %v820, %v823
  %v841 = vsel %vm839, %v829, 2102212464
  %v842 = vsel %vm838, %v826, %v841
  %v843 = vsel %vm837, %v840, %v842
  %v844 = vsel %vm836, %v823, %v826
  %v845 = vsel %vm839, %v832, 920167782
  %v846 = vsel %vm838, %v829, %v845
  %v847 = vsel %vm837, %v844, %v846
  %v848 = vsel %vm836, %v826, %v829
  %v849 = vsel %vm839, %v835, 1326507024
  %v850 = vsel %vm838, %v832, %v849
  %v851 = vsel %vm837, %v848, %v850
  %v852 = vshll.u32 %v812, 8
  %v853 = vmul.u32.u64.compose %v852, %v851
  %v854 = vextract.low.u32 %v853
  %v855 = vextract.high.u32 %v853
  %v856 = vmul.u32.u64.compose %v852, %v847
  %v857 = vextract.low.u32 %v856
  %v858 = vextract.high.u32 %v856
  %v859 = vmul.u32 %v852, %v843
  %v860 = vadd.s32 %v855, %v857
  %vm861 = vc.u32 %v855, %v857
  %v862 = vadd.s32 %v858, 1
  %v863 = vsel %vm861, %v862, %v858
  %v864 = vadd.s32 %v859, %v863
  %v865 = vadd.s32 %v864, 536870912
  %v866 = vshrl.u32 %v865, 30
  %v867 = vshll.u32 %v866, 30
  %v868 = vsub.s32 %v864, %v867
  %vm869 = vcmp.lt.s32.totalorder %v868, 0
  %v870 = vsub.s32 0, %v868
  %v871 = vsel %vm869, %v870, %v868
  %v872 = vclz %v871
  %v873 = vsub.s32 %v872, 2
  %vm874 = vcmp.gt.s32.totalorder 0, %v873
  %v875 = vsel %vm874, 0, %v873
  %v876 = vsub.s32 32, %v875
  %v877 = vshll.u32 %v868, %v875
  %v878 = vshrl.u32 %v860, %v876
  %v879 = vor.u32 %v877, %v878
  %v880 = vsub.s32 4294967266, %v875
  %v881 = vadd.s32 %v880, 127
  %v882 = vshll.u32 %v881, 23
  %v883 = vor.u32 4788187, %v882
  %v884 = vand.u32 2147483647, %v883
  %v886 = vcvt.s32.f32 %v879
  %v887 = vmul.f32 %v886, %v884
  %v888 = vxor.u32 %v887, 2147483648
  %v889 = vsel %vm806, %v888, %v887
  %v890 = vsub.s32 4, %v866
  %v891 = vsel %vm806, %v890, %v866
  %v892 = vsel %vm805, %v463, %v889
  %v893 = vsel %vm805, 0, %v891
  %v894 = vcosq.f32.pop %v892
  %v895 = vsinq.f32.pop %v892
  %vm896 = vweird.f32 %v463
  %v897 = vadd.s32 %v893, 3
  %v898 = vand.u32 %v897, 3
  %vm899 = vcmp.lt.s32.totalorder %v898, 2
  %vm900 = vcmp.eq.s32.totalorder %v898, 0
  %v901 = vxor.u32 %v895, 2147483648
  %v902 = vsel %vm900, %v894, %v901
  %vm903 = vcmp.eq.s32.totalorder %v898, 2
  %v904 = vxor.u32 %v894, 2147483648
  %v905 = vsel %vm903, %v904, %v895
  %v906 = vsel %vm899, %v902, %v905
  %v907 = vsel %vm896, nan, %v906
  %v908 = vand.u32 2147483647, %v464
  %vm909 = vcmp.le.f32.partialorder %v908, 0.7853982
  %vm910 = vcmp.lt.s32.totalorder %v464, 0
  %v911 = vand.u32 %v464, 2139095040
  %v912 = vshrl.u32 %v911, 23
  %v913 = vsub.s32 %v912, 127
  %v914 = vand.u32 2147483647, %v464
  %v915 = vand.u32 %v914, 8388607
  %v916 = vor.u32 %v915, 8388608
  %v917 = vsub.s32 0, %v916
  %v918 = vadd.s32 %v913, 1
  %vm919 = vcmp.gt.s32.totalorder %v918, 0
  %v920 = vsel %vm919, %v918, 0
  %v921 = vshrl.u32 %v920, 5
  %v922 = vand.u32 %v920, 31
  %v923 = vsub.s32 32, %v922
  %v924 = vshrl.u32 683565275, %v923
  %v925 = vshll.u32 683565275, %v922
  %v926 = vshrl.u32 2475754826, %v923
  %v927 = vor.u32 %v925, %v926
  %v928 = vshll.u32 2475754826, %v922
  %v929 = vshrl.u32 2131351028, %v923
  %v930 = vor.u32 %v928, %v929
  %v931 = vshll.u32 2131351028, %v922
  %v932 = vshrl.u32 2102212464, %v923
  %v933 = vor.u32 %v931, %v932
  %v934 = vshll.u32 2102212464, %v922
  %v935 = vshrl.u32 920167782, %v923
  %v936 = vor.u32 %v934, %v935
  %v937 = vshll.u32 920167782, %v922
  %v938 = vshrl.u32 1326507024, %v923
  %v939 = vor.u32 %v937, %v938
  %vm940 = vcmp.lt.s32.totalorder %v921, 1
  %vm941 = vcmp.lt.s32.totalorder %v921, 2
  %vm942 = vcmp.lt.s32.totalorder %v921, 3
  %vm943 = vcmp.lt.s32.totalorder %v921, 4
  %v944 = vsel %vm940, %v924, %v927
  %v945 = vsel %vm943, %v933, 2102212464
  %v946 = vsel %vm942, %v930, %v945
  %v947 = vsel %vm941, %v944, %v946
  %v948 = vsel %vm940, %v927, %v930
  %v949 = vsel %vm943, %v936, 920167782
  %v950 = vsel %vm942, %v933, %v949
  %v951 = vsel %vm941, %v948, %v950
  %v952 = vsel %vm940, %v930, %v933
  %v953 = vsel %vm943, %v939, 1326507024
  %v954 = vsel %vm942, %v936, %v953
  %v955 = vsel %vm941, %v952, %v954
  %v956 = vshll.u32 %v916, 8
  %v957 = vmul.u32.u64.compose %v956, %v955
  %v958 = vextract.low.u32 %v957
  %v959 = vextract.high.u32 %v957
  %v960 = vmul.u32.u64.compose %v956, %v951
  %v961 = vextract.low.u32 %v960
  %v962 = vextract.high.u32 %v960
  %v963 = vmul.u32 %v956, %v947
  %v964 = vadd.s32 %v959, %v961
  %vm965 = vc.u32 %v959, %v961
  %v966 = vadd.s32 %v962, 1
  %v967 = vsel %vm965, %v966, %v962
  %v968 = vadd.s32 %v963, %v967
  %v969 = vadd.s32 %v968, 536870912
  %v970 = vshrl.u32 %v969, 30
  %v971 = vshll.u32 %v970, 30
  %v972 = vsub.s32 %v968, %v971
  %vm973 = vcmp.lt.s32.totalorder %v972, 0
  %v974 = vsub.s32 0, %v972
  %v975 = vsel %vm973, %v974, %v972
  %v976 = vclz %v975
  %v977 = vsub.s32 %v976, 2
  %vm978 = vcmp.gt.s32.totalorder 0, %v977
  %v979 = vsel %vm978, 0, %v977
  %v980 = vsub.s32 32, %v979
  %v981 = vshll.u32 %v972, %v979
  %v982 = vshrl.u32 %v964, %v980
  %v983 = vor.u32 %v981, %v982
  %v984 = vsub.s32 4294967266, %v979
  %v985 = vadd.s32 %v984, 127
  %v986 = vshll.u32 %v985, 23
  %v987 = vor.u32 4788187, %v986
  %v988 = vand.u32 2147483647, %v987
  %v990 = vcvt.s32.f32 %v983
  %v991 = vmul.f32 %v990, %v988
  %v992 = vxor.u32 %v991, 2147483648
  %v993 = vsel %vm910, %v992, %v991
  %v994 = vsub.s32 4, %v970
  %v995 = vsel %vm910, %v994, %v970
  %v996 = vsel %vm909, %v464, %v993
  %v997 = vsel %vm909, 0, %v995
  %v998 = vcosq.f32.pop %v996
  %v999 = vsinq.f32.pop %v996
  %vm1000 = vweird.f32 %v464
  %v1001 = vadd.s32 %v997, 3
  %v1002 = vand.u32 %v1001, 3
  %vm1003 = vcmp.lt.s32.totalorder %v1002, 2
  %vm1004 = vcmp.eq.s32.totalorder %v1002, 0
  %v1005 = vxor.u32 %v999, 2147483648
  %v1006 = vsel %vm1004, %v998, %v1005
  %vm1007 = vcmp.eq.s32.totalorder %v1002, 2
  %v1008 = vxor.u32 %v998, 2147483648
  %v1009 = vsel %vm1007, %v1008, %v999
  %v1010 = vsel %vm1003, %v1006, %v1009
  %v1011 = vsel %vm1000, nan, %v1010
  %v1012 = vand.u32 2147483647, %v465
  %vm1013 = vcmp.le.f32.partialorder %v1012, 0.7853982
  %vm1014 = vcmp.lt.s32.totalorder %v465, 0
  %v1015 = vand.u32 %v465, 2139095040
  %v1016 = vshrl.u32 %v1015, 23
  %v1017 = vsub.s32 %v1016, 127
  %v1018 = vand.u32 2147483647, %v465
  %v1019 = vand.u32 %v1018, 8388607
  %v1020 = vor.u32 %v1019, 8388608
  %v1021 = vsub.s32 0, %v1020
  %v1022 = vadd.s32 %v1017, 1
  %vm1023 = vcmp.gt.s32.totalorder %v1022, 0
  %v1024 = vsel %vm1023, %v1022, 0
  %v1025 = vshrl.u32 %v1024, 5
  %v1026 = vand.u32 %v1024, 31
  %v1027 = vsub.s32 32, %v1026
  %v1028 = vshrl.u32 683565275, %v1027
  %v1029 = vshll.u32 683565275, %v1026
  %v1030 = vshrl.u32 2475754826, %v1027
  %v1031 = vor.u32 %v1029, %v1030
  %v1032 = vshll.u32 2475754826, %v1026
  %v1033 = vshrl.u32 2131351028, %v1027
  %v1034 = vor.u32 %v1032, %v1033
  %v1035 = vshll.u32 2131351028, %v1026
  %v1036 = vshrl.u32 2102212464, %v1027
  %v1037 = vor.u32 %v1035, %v1036
  %v1038 = vshll.u32 2102212464, %v1026
  %v1039 = vshrl.u32 920167782, %v1027
  %v1040 = vor.u32 %v1038, %v1039
  %v1041 = vshll.u32 920167782, %v1026
  %v1042 = vshrl.u32 1326507024, %v1027
  %v1043 = vor.u32 %v1041, %v1042
  %vm1044 = vcmp.lt.s32.totalorder %v1025, 1
  %vm1045 = vcmp.lt.s32.totalorder %v1025, 2
  %vm1046 = vcmp.lt.s32.totalorder %v1025, 3
  %vm1047 = vcmp.lt.s32.totalorder %v1025, 4
  %v1048 = vsel %vm1044, %v1028, %v1031
  %v1049 = vsel %vm1047, %v1037, 2102212464
  %v1050 = vsel %vm1046, %v1034, %v1049
  %v1051 = vsel %vm1045, %v1048, %v1050
  %v1052 = vsel %vm1044, %v1031, %v1034
  %v1053 = vsel %vm1047, %v1040, 920167782
  %v1054 = vsel %vm1046, %v1037, %v1053
  %v1055 = vsel %vm1045, %v1052, %v1054
  %v1056 = vsel %vm1044, %v1034, %v1037
  %v1057 = vsel %vm1047, %v1043, 1326507024
  %v1058 = vsel %vm1046, %v1040, %v1057
  %v1059 = vsel %vm1045, %v1056, %v1058
  %v1060 = vshll.u32 %v1020, 8
  %v1061 = vmul.u32.u64.compose %v1060, %v1059
  %v1062 = vextract.low.u32 %v1061
  %v1063 = vextract.high.u32 %v1061
  %v1064 = vmul.u32.u64.compose %v1060, %v1055
  %v1065 = vextract.low.u32 %v1064
  %v1066 = vextract.high.u32 %v1064
  %v1067 = vmul.u32 %v1060, %v1051
  %v1068 = vadd.s32 %v1063, %v1065
  %vm1069 = vc.u32 %v1063, %v1065
  %v1070 = vadd.s32 %v1066, 1
  %v1071 = vsel %vm1069, %v1070, %v1066
  %v1072 = vadd.s32 %v1067, %v1071
  %v1073 = vadd.s32 %v1072, 536870912
  %v1074 = vshrl.u32 %v1073, 30
  %v1075 = vshll.u32 %v1074, 30
  %v1076 = vsub.s32 %v1072, %v1075
  %vm1077 = vcmp.lt.s32.totalorder %v1076, 0
  %v1078 = vsub.s32 0, %v1076
  %v1079 = vsel %vm1077, %v1078, %v1076
  %v1080 = vclz %v1079
  %v1081 = vsub.s32 %v1080, 2
  %vm1082 = vcmp.gt.s32.totalorder 0, %v1081
  %v1083 = vsel %vm1082, 0, %v1081
  %v1084 = vsub.s32 32, %v1083
  %v1085 = vshll.u32 %v1076, %v1083
  %v1086 = vshrl.u32 %v1068, %v1084
  %v1087 = vor.u32 %v1085, %v1086
  %v1088 = vsub.s32 4294967266, %v1083
  %v1089 = vadd.s32 %v1088, 127
  %v1090 = vshll.u32 %v1089, 23
  %v1091 = vor.u32 4788187, %v1090
  %v1092 = vand.u32 2147483647, %v1091
  %v1094 = vcvt.s32.f32 %v1087
  %v1095 = vmul.f32 %v1094, %v1092
  %v1096 = vxor.u32 %v1095, 2147483648
  %v1097 = vsel %vm1014, %v1096, %v1095
  %v1098 = vsub.s32 4, %v1074
  %v1099 = vsel %vm1014, %v1098, %v1074
  %v1100 = vsel %vm1013, %v465, %v1097
  %v1101 = vsel %vm1013, 0, %v1099
  %v1102 = vcosq.f32.pop %v1100
  %v1103 = vsinq.f32.pop %v1100
  %vm1104 = vweird.f32 %v465
  %v1105 = vadd.s32 %v1101, 3
  %v1106 = vand.u32 %v1105, 3
  %vm1107 = vcmp.lt.s32.totalorder %v1106, 2
  %vm1108 = vcmp.eq.s32.totalorder %v1106, 0
  %v1109 = vxor.u32 %v1103, 2147483648
  %v1110 = vsel %vm1108, %v1102, %v1109
  %vm1111 = vcmp.eq.s32.totalorder %v1106, 2
  %v1112 = vxor.u32 %v1102, 2147483648
  %v1113 = vsel %vm1111, %v1112, %v1103
  %v1114 = vsel %vm1107, %v1110, %v1113
  %v1115 = vsel %vm1104, nan, %v1114
  %v1116 = vand.u32 2147483647, %v466
  %vm1117 = vcmp.le.f32.partialorder %v1116, 0.7853982
  %vm1118 = vcmp.lt.s32.totalorder %v466, 0
  %v1119 = vand.u32 %v466, 2139095040
  %v1120 = vshrl.u32 %v1119, 23
  %v1121 = vsub.s32 %v1120, 127
  %v1122 = vand.u32 2147483647, %v466
  %v1123 = vand.u32 %v1122, 8388607
  %v1124 = vor.u32 %v1123, 8388608
  %v1125 = vsub.s32 0, %v1124
  %v1126 = vadd.s32 %v1121, 1
  %vm1127 = vcmp.gt.s32.totalorder %v1126, 0
  %v1128 = vsel %vm1127, %v1126, 0
  %v1129 = vshrl.u32 %v1128, 5
  %v1130 = vand.u32 %v1128, 31
  %v1131 = vsub.s32 32, %v1130
  %v1132 = vshrl.u32 683565275, %v1131
  %v1133 = vshll.u32 683565275, %v1130
  %v1134 = vshrl.u32 2475754826, %v1131
  %v1135 = vor.u32 %v1133, %v1134
  %v1136 = vshll.u32 2475754826, %v1130
  %v1137 = vshrl.u32 2131351028, %v1131
  %v1138 = vor.u32 %v1136, %v1137
  %v1139 = vshll.u32 2131351028, %v1130
  %v1140 = vshrl.u32 2102212464, %v1131
  %v1141 = vor.u32 %v1139, %v1140
  %v1142 = vshll.u32 2102212464, %v1130
  %v1143 = vshrl.u32 920167782, %v1131
  %v1144 = vor.u32 %v1142, %v1143
  %v1145 = vshll.u32 920167782, %v1130
  %v1146 = vshrl.u32 1326507024, %v1131
  %v1147 = vor.u32 %v1145, %v1146
  %vm1148 = vcmp.lt.s32.totalorder %v1129, 1
  %vm1149 = vcmp.lt.s32.totalorder %v1129, 2
  %vm1150 = vcmp.lt.s32.totalorder %v1129, 3
  %vm1151 = vcmp.lt.s32.totalorder %v1129, 4
  %v1152 = vsel %vm1148, %v1132, %v1135
  %v1153 = vsel %vm1151, %v1141, 2102212464
  %v1154 = vsel %vm1150, %v1138, %v1153
  %v1155 = vsel %vm1149, %v1152, %v1154
  %v1156 = vsel %vm1148, %v1135, %v1138
  %v1157 = vsel %vm1151, %v1144, 920167782
  %v1158 = vsel %vm1150, %v1141, %v1157
  %v1159 = vsel %vm1149, %v1156, %v1158
  %v1160 = vsel %vm1148, %v1138, %v1141
  %v1161 = vsel %vm1151, %v1147, 1326507024
  %v1162 = vsel %vm1150, %v1144, %v1161
  %v1163 = vsel %vm1149, %v1160, %v1162
  %v1164 = vshll.u32 %v1124, 8
  %v1165 = vmul.u32.u64.compose %v1164, %v1163
  %v1166 = vextract.low.u32 %v1165
  %v1167 = vextract.high.u32 %v1165
  %v1168 = vmul.u32.u64.compose %v1164, %v1159
  %v1169 = vextract.low.u32 %v1168
  %v1170 = vextract.high.u32 %v1168
  %v1171 = vmul.u32 %v1164, %v1155
  %v1172 = vadd.s32 %v1167, %v1169
  %vm1173 = vc.u32 %v1167, %v1169
  %v1174 = vadd.s32 %v1170, 1
  %v1175 = vsel %vm1173, %v1174, %v1170
  %v1176 = vadd.s32 %v1171, %v1175
  %v1177 = vadd.s32 %v1176, 536870912
  %v1178 = vshrl.u32 %v1177, 30
  %v1179 = vshll.u32 %v1178, 30
  %v1180 = vsub.s32 %v1176, %v1179
  %vm1181 = vcmp.lt.s32.totalorder %v1180, 0
  %v1182 = vsub.s32 0, %v1180
  %v1183 = vsel %vm1181, %v1182, %v1180
  %v1184 = vclz %v1183
  %v1185 = vsub.s32 %v1184, 2
  %vm1186 = vcmp.gt.s32.totalorder 0, %v1185
  %v1187 = vsel %vm1186, 0, %v1185
  %v1188 = vsub.s32 32, %v1187
  %v1189 = vshll.u32 %v1180, %v1187
  %v1190 = vshrl.u32 %v1172, %v1188
  %v1191 = vor.u32 %v1189, %v1190
  %v1192 = vsub.s32 4294967266, %v1187
  %v1193 = vadd.s32 %v1192, 127
  %v1194 = vshll.u32 %v1193, 23
  %v1195 = vor.u32 4788187, %v1194
  %v1196 = vand.u32 2147483647, %v1195
  %v1198 = vcvt.s32.f32 %v1191
  %v1199 = vmul.f32 %v1198, %v1196
  %v1200 = vxor.u32 %v1199, 2147483648
  %v1201 = vsel %vm1118, %v1200, %v1199
  %v1202 = vsub.s32 4, %v1178
  %v1203 = vsel %vm1118, %v1202, %v1178
  %v1204 = vsel %vm1117, %v466, %v1201
  %v1205 = vsel %vm1117, 0, %v1203
  %v1206 = vcosq.f32.pop %v1204
  %v1207 = vsinq.f32.pop %v1204
  %vm1208 = vweird.f32 %v466
  %v1209 = vadd.s32 %v1205, 3
  %v1210 = vand.u32 %v1209, 3
  %vm1211 = vcmp.lt.s32.totalorder %v1210, 2
  %vm1212 = vcmp.eq.s32.totalorder %v1210, 0
  %v1213 = vxor.u32 %v1207, 2147483648
  %v1214 = vsel %vm1212, %v1206, %v1213
  %vm1215 = vcmp.eq.s32.totalorder %v1210, 2
  %v1216 = vxor.u32 %v1206, 2147483648
  %v1217 = vsel %vm1215, %v1216, %v1207
  %v1218 = vsel %vm1211, %v1214, %v1217
  %v1219 = vsel %vm1208, nan, %v1218
  %v1220 = vand.u32 2147483647, %v467
  %vm1221 = vcmp.le.f32.partialorder %v1220, 0.7853982
  %vm1222 = vcmp.lt.s32.totalorder %v467, 0
  %v1223 = vand.u32 %v467, 2139095040
  %v1224 = vshrl.u32 %v1223, 23
  %v1225 = vsub.s32 %v1224, 127
  %v1226 = vand.u32 2147483647, %v467
  %v1227 = vand.u32 %v1226, 8388607
  %v1228 = vor.u32 %v1227, 8388608
  %v1229 = vsub.s32 0, %v1228
  %v1230 = vadd.s32 %v1225, 1
  %vm1231 = vcmp.gt.s32.totalorder %v1230, 0
  %v1232 = vsel %vm1231, %v1230, 0
  %v1233 = vshrl.u32 %v1232, 5
  %v1234 = vand.u32 %v1232, 31
  %v1235 = vsub.s32 32, %v1234
  %v1236 = vshrl.u32 683565275, %v1235
  %v1237 = vshll.u32 683565275, %v1234
  %v1238 = vshrl.u32 2475754826, %v1235
  %v1239 = vor.u32 %v1237, %v1238
  %v1240 = vshll.u32 2475754826, %v1234
  %v1241 = vshrl.u32 2131351028, %v1235
  %v1242 = vor.u32 %v1240, %v1241
  %v1243 = vshll.u32 2131351028, %v1234
  %v1244 = vshrl.u32 2102212464, %v1235
  %v1245 = vor.u32 %v1243, %v1244
  %v1246 = vshll.u32 2102212464, %v1234
  %v1247 = vshrl.u32 920167782, %v1235
  %v1248 = vor.u32 %v1246, %v1247
  %v1249 = vshll.u32 920167782, %v1234
  %v1250 = vshrl.u32 1326507024, %v1235
  %v1251 = vor.u32 %v1249, %v1250
  %vm1252 = vcmp.lt.s32.totalorder %v1233, 1
  %vm1253 = vcmp.lt.s32.totalorder %v1233, 2
  %vm1254 = vcmp.lt.s32.totalorder %v1233, 3
  %vm1255 = vcmp.lt.s32.totalorder %v1233, 4
  %v1256 = vsel %vm1252, %v1236, %v1239
  %v1257 = vsel %vm1255, %v1245, 2102212464
  %v1258 = vsel %vm1254, %v1242, %v1257
  %v1259 = vsel %vm1253, %v1256, %v1258
  %v1260 = vsel %vm1252, %v1239, %v1242
  %v1261 = vsel %vm1255, %v1248, 920167782
  %v1262 = vsel %vm1254, %v1245, %v1261
  %v1263 = vsel %vm1253, %v1260, %v1262
  %v1264 = vsel %vm1252, %v1242, %v1245
  %v1265 = vsel %vm1255, %v1251, 1326507024
  %v1266 = vsel %vm1254, %v1248, %v1265
  %v1267 = vsel %vm1253, %v1264, %v1266
  %v1268 = vshll.u32 %v1228, 8
  %v1269 = vmul.u32.u64.compose %v1268, %v1267
  %v1270 = vextract.low.u32 %v1269
  %v1271 = vextract.high.u32 %v1269
  %v1272 = vmul.u32.u64.compose %v1268, %v1263
  %v1273 = vextract.low.u32 %v1272
  %v1274 = vextract.high.u32 %v1272
  %v1275 = vmul.u32 %v1268, %v1259
  %v1276 = vadd.s32 %v1271, %v1273
  %vm1277 = vc.u32 %v1271, %v1273
  %v1278 = vadd.s32 %v1274, 1
  %v1279 = vsel %vm1277, %v1278, %v1274
  %v1280 = vadd.s32 %v1275, %v1279
  %v1281 = vadd.s32 %v1280, 536870912
  %v1282 = vshrl.u32 %v1281, 30
  %v1283 = vshll.u32 %v1282, 30
  %v1284 = vsub.s32 %v1280, %v1283
  %vm1285 = vcmp.lt.s32.totalorder %v1284, 0
  %v1286 = vsub.s32 0, %v1284
  %v1287 = vsel %vm1285, %v1286, %v1284
  %v1288 = vclz %v1287
  %v1289 = vsub.s32 %v1288, 2
  %vm1290 = vcmp.gt.s32.totalorder 0, %v1289
  %v1291 = vsel %vm1290, 0, %v1289
  %v1292 = vsub.s32 32, %v1291
  %v1293 = vshll.u32 %v1284, %v1291
  %v1294 = vshrl.u32 %v1276, %v1292
  %v1295 = vor.u32 %v1293, %v1294
  %v1296 = vsub.s32 4294967266, %v1291
  %v1297 = vadd.s32 %v1296, 127
  %v1298 = vshll.u32 %v1297, 23
  %v1299 = vor.u32 4788187, %v1298
  %v1300 = vand.u32 2147483647, %v1299
  %v1302 = vcvt.s32.f32 %v1295
  %v1303 = vmul.f32 %v1302, %v1300
  %v1304 = vxor.u32 %v1303, 2147483648
  %v1305 = vsel %vm1222, %v1304, %v1303
  %v1306 = vsub.s32 4, %v1282
  %v1307 = vsel %vm1222, %v1306, %v1282
  %v1308 = vsel %vm1221, %v467, %v1305
  %v1309 = vsel %vm1221, 0, %v1307
  %v1310 = vcosq.f32.pop %v1308
  %v1311 = vsinq.f32.pop %v1308
  %vm1312 = vweird.f32 %v467
  %v1313 = vadd.s32 %v1309, 3
  %v1314 = vand.u32 %v1313, 3
  %vm1315 = vcmp.lt.s32.totalorder %v1314, 2
  %vm1316 = vcmp.eq.s32.totalorder %v1314, 0
  %v1317 = vxor.u32 %v1311, 2147483648
  %v1318 = vsel %vm1316, %v1310, %v1317
  %vm1319 = vcmp.eq.s32.totalorder %v1314, 2
  %v1320 = vxor.u32 %v1310, 2147483648
  %v1321 = vsel %vm1319, %v1320, %v1311
  %v1322 = vsel %vm1315, %v1318, %v1321
  %v1323 = vsel %vm1312, nan, %v1322
  %v1324 = vand.u32 2147483647, %v468
  %vm1325 = vcmp.le.f32.partialorder %v1324, 0.7853982
  %vm1326 = vcmp.lt.s32.totalorder %v468, 0
  %v1327 = vand.u32 %v468, 2139095040
  %v1328 = vshrl.u32 %v1327, 23
  %v1329 = vsub.s32 %v1328, 127
  %v1330 = vand.u32 2147483647, %v468
  %v1331 = vand.u32 %v1330, 8388607
  %v1332 = vor.u32 %v1331, 8388608
  %v1333 = vsub.s32 0, %v1332
  %v1334 = vadd.s32 %v1329, 1
  %vm1335 = vcmp.gt.s32.totalorder %v1334, 0
  %v1336 = vsel %vm1335, %v1334, 0
  %v1337 = vshrl.u32 %v1336, 5
  %v1338 = vand.u32 %v1336, 31
  %v1339 = vsub.s32 32, %v1338
  %v1340 = vshrl.u32 683565275, %v1339
  %v1341 = vshll.u32 683565275, %v1338
  %v1342 = vshrl.u32 2475754826, %v1339
  %v1343 = vor.u32 %v1341, %v1342
  %v1344 = vshll.u32 2475754826, %v1338
  %v1345 = vshrl.u32 2131351028, %v1339
  %v1346 = vor.u32 %v1344, %v1345
  %v1347 = vshll.u32 2131351028, %v1338
  %v1348 = vshrl.u32 2102212464, %v1339
  %v1349 = vor.u32 %v1347, %v1348
  %v1350 = vshll.u32 2102212464, %v1338
  %v1351 = vshrl.u32 920167782, %v1339
  %v1352 = vor.u32 %v1350, %v1351
  %v1353 = vshll.u32 920167782, %v1338
  %v1354 = vshrl.u32 1326507024, %v1339
  %v1355 = vor.u32 %v1353, %v1354
  %vm1356 = vcmp.lt.s32.totalorder %v1337, 1
  %vm1357 = vcmp.lt.s32.totalorder %v1337, 2
  %vm1358 = vcmp.lt.s32.totalorder %v1337, 3
  %vm1359 = vcmp.lt.s32.totalorder %v1337, 4
  %v1360 = vsel %vm1356, %v1340, %v1343
  %v1361 = vsel %vm1359, %v1349, 2102212464
  %v1362 = vsel %vm1358, %v1346, %v1361
  %v1363 = vsel %vm1357, %v1360, %v1362
  %v1364 = vsel %vm1356, %v1343, %v1346
  %v1365 = vsel %vm1359, %v1352, 920167782
  %v1366 = vsel %vm1358, %v1349, %v1365
  %v1367 = vsel %vm1357, %v1364, %v1366
  %v1368 = vsel %vm1356, %v1346, %v1349
  %v1369 = vsel %vm1359, %v1355, 1326507024
  %v1370 = vsel %vm1358, %v1352, %v1369
  %v1371 = vsel %vm1357, %v1368, %v1370
  %v1372 = vshll.u32 %v1332, 8
  %v1373 = vmul.u32.u64.compose %v1372, %v1371
  %v1374 = vextract.low.u32 %v1373
  %v1375 = vextract.high.u32 %v1373
  %v1376 = vmul.u32.u64.compose %v1372, %v1367
  %v1377 = vextract.low.u32 %v1376
  %v1378 = vextract.high.u32 %v1376
  %v1379 = vmul.u32 %v1372, %v1363
  %v1380 = vadd.s32 %v1375, %v1377
  %vm1381 = vc.u32 %v1375, %v1377
  %v1382 = vadd.s32 %v1378, 1
  %v1383 = vsel %vm1381, %v1382, %v1378
  %v1384 = vadd.s32 %v1379, %v1383
  %v1385 = vadd.s32 %v1384, 536870912
  %v1386 = vshrl.u32 %v1385, 30
  %v1387 = vshll.u32 %v1386, 30
  %v1388 = vsub.s32 %v1384, %v1387
  %vm1389 = vcmp.lt.s32.totalorder %v1388, 0
  %v1390 = vsub.s32 0, %v1388
  %v1391 = vsel %vm1389, %v1390, %v1388
  %v1392 = vclz %v1391
  %v1393 = vsub.s32 %v1392, 2
  %vm1394 = vcmp.gt.s32.totalorder 0, %v1393
  %v1395 = vsel %vm1394, 0, %v1393
  %v1396 = vsub.s32 32, %v1395
  %v1397 = vshll.u32 %v1388, %v1395
  %v1398 = vshrl.u32 %v1380, %v1396
  %v1399 = vor.u32 %v1397, %v1398
  %v1400 = vsub.s32 4294967266, %v1395
  %v1401 = vadd.s32 %v1400, 127
  %v1402 = vshll.u32 %v1401, 23
  %v1403 = vor.u32 4788187, %v1402
  %v1404 = vand.u32 2147483647, %v1403
  %v1406 = vcvt.s32.f32 %v1399
  %v1407 = vmul.f32 %v1406, %v1404
  %v1408 = vxor.u32 %v1407, 2147483648
  %v1409 = vsel %vm1326, %v1408, %v1407
  %v1410 = vsub.s32 4, %v1386
  %v1411 = vsel %vm1326, %v1410, %v1386
  %v1412 = vsel %vm1325, %v468, %v1409
  %v1413 = vsel %vm1325, 0, %v1411
  %v1414 = vcosq.f32.pop %v1412
  %v1415 = vsinq.f32.pop %v1412
  %vm1416 = vweird.f32 %v468
  %v1417 = vadd.s32 %v1413, 3
  %v1418 = vand.u32 %v1417, 3
  %vm1419 = vcmp.lt.s32.totalorder %v1418, 2
  %vm1420 = vcmp.eq.s32.totalorder %v1418, 0
  %v1421 = vxor.u32 %v1415, 2147483648
  %v1422 = vsel %vm1420, %v1414, %v1421
  %vm1423 = vcmp.eq.s32.totalorder %v1418, 2
  %v1424 = vxor.u32 %v1414, 2147483648
  %v1425 = vsel %vm1423, %v1424, %v1415
  %v1426 = vsel %vm1419, %v1422, %v1425
  %v1427 = vsel %vm1416, nan, %v1426
  %v1428 = vand.u32 2147483647, %v469
  %vm1429 = vcmp.le.f32.partialorder %v1428, 0.7853982
  %vm1430 = vcmp.lt.s32.totalorder %v469, 0
  %v1431 = vand.u32 %v469, 2139095040
  %v1432 = vshrl.u32 %v1431, 23
  %v1433 = vsub.s32 %v1432, 127
  %v1434 = vand.u32 2147483647, %v469
  %v1435 = vand.u32 %v1434, 8388607
  %v1436 = vor.u32 %v1435, 8388608
  %v1437 = vsub.s32 0, %v1436
  %v1438 = vadd.s32 %v1433, 1
  %vm1439 = vcmp.gt.s32.totalorder %v1438, 0
  %v1440 = vsel %vm1439, %v1438, 0
  %v1441 = vshrl.u32 %v1440, 5
  %v1442 = vand.u32 %v1440, 31
  %v1443 = vsub.s32 32, %v1442
  %v1444 = vshrl.u32 683565275, %v1443
  %v1445 = vshll.u32 683565275, %v1442
  %v1446 = vshrl.u32 2475754826, %v1443
  %v1447 = vor.u32 %v1445, %v1446
  %v1448 = vshll.u32 2475754826, %v1442
  %v1449 = vshrl.u32 2131351028, %v1443
  %v1450 = vor.u32 %v1448, %v1449
  %v1451 = vshll.u32 2131351028, %v1442
  %v1452 = vshrl.u32 2102212464, %v1443
  %v1453 = vor.u32 %v1451, %v1452
  %v1454 = vshll.u32 2102212464, %v1442
  %v1455 = vshrl.u32 920167782, %v1443
  %v1456 = vor.u32 %v1454, %v1455
  %v1457 = vshll.u32 920167782, %v1442
  %v1458 = vshrl.u32 1326507024, %v1443
  %v1459 = vor.u32 %v1457, %v1458
  %vm1460 = vcmp.lt.s32.totalorder %v1441, 1
  %vm1461 = vcmp.lt.s32.totalorder %v1441, 2
  %vm1462 = vcmp.lt.s32.totalorder %v1441, 3
  %vm1463 = vcmp.lt.s32.totalorder %v1441, 4
  %v1464 = vsel %vm1460, %v1444, %v1447
  %v1465 = vsel %vm1463, %v1453, 2102212464
  %v1466 = vsel %vm1462, %v1450, %v1465
  %v1467 = vsel %vm1461, %v1464, %v1466
  %v1468 = vsel %vm1460, %v1447, %v1450
  %v1469 = vsel %vm1463, %v1456, 920167782
  %v1470 = vsel %vm1462, %v1453, %v1469
  %v1471 = vsel %vm1461, %v1468, %v1470
  %v1472 = vsel %vm1460, %v1450, %v1453
  %v1473 = vsel %vm1463, %v1459, 1326507024
  %v1474 = vsel %vm1462, %v1456, %v1473
  %v1475 = vsel %vm1461, %v1472, %v1474
  %v1476 = vshll.u32 %v1436, 8
  %v1477 = vmul.u32.u64.compose %v1476, %v1475
  %v1478 = vextract.low.u32 %v1477
  %v1479 = vextract.high.u32 %v1477
  %v1480 = vmul.u32.u64.compose %v1476, %v1471
  %v1481 = vextract.low.u32 %v1480
  %v1482 = vextract.high.u32 %v1480
  %v1483 = vmul.u32 %v1476, %v1467
  %v1484 = vadd.s32 %v1479, %v1481
  %vm1485 = vc.u32 %v1479, %v1481
  %v1486 = vadd.s32 %v1482, 1
  %v1487 = vsel %vm1485, %v1486, %v1482
  %v1488 = vadd.s32 %v1483, %v1487
  %v1489 = vadd.s32 %v1488, 536870912
  %v1490 = vshrl.u32 %v1489, 30
  %v1491 = vshll.u32 %v1490, 30
  %v1492 = vsub.s32 %v1488, %v1491
  %vm1493 = vcmp.lt.s32.totalorder %v1492, 0
  %v1494 = vsub.s32 0, %v1492
  %v1495 = vsel %vm1493, %v1494, %v1492
  %v1496 = vclz %v1495
  %v1497 = vsub.s32 %v1496, 2
  %vm1498 = vcmp.gt.s32.totalorder 0, %v1497
  %v1499 = vsel %vm1498, 0, %v1497
  %v1500 = vsub.s32 32, %v1499
  %v1501 = vshll.u32 %v1492, %v1499
  %v1502 = vshrl.u32 %v1484, %v1500
  %v1503 = vor.u32 %v1501, %v1502
  %v1504 = vsub.s32 4294967266, %v1499
  %v1505 = vadd.s32 %v1504, 127
  %v1506 = vshll.u32 %v1505, 23
  %v1507 = vor.u32 4788187, %v1506
  %v1508 = vand.u32 2147483647, %v1507
  %v1510 = vcvt.s32.f32 %v1503
  %v1511 = vmul.f32 %v1510, %v1508
  %v1512 = vxor.u32 %v1511, 2147483648
  %v1513 = vsel %vm1430, %v1512, %v1511
  %v1514 = vsub.s32 4, %v1490
  %v1515 = vsel %vm1430, %v1514, %v1490
  %v1516 = vsel %vm1429, %v469, %v1513
  %v1517 = vsel %vm1429, 0, %v1515
  %v1518 = vcosq.f32.pop %v1516
  %v1519 = vsinq.f32.pop %v1516
  %vm1520 = vweird.f32 %v469
  %v1521 = vadd.s32 %v1517, 3
  %v1522 = vand.u32 %v1521, 3
  %vm1523 = vcmp.lt.s32.totalorder %v1522, 2
  %vm1524 = vcmp.eq.s32.totalorder %v1522, 0
  %v1525 = vxor.u32 %v1519, 2147483648
  %v1526 = vsel %vm1524, %v1518, %v1525
  %vm1527 = vcmp.eq.s32.totalorder %v1522, 2
  %v1528 = vxor.u32 %v1518, 2147483648
  %v1529 = vsel %vm1527, %v1528, %v1519
  %v1530 = vsel %vm1523, %v1526, %v1529
  %v1531 = vsel %vm1520, nan, %v1530
  %v1532 = vand.u32 2147483647, %v470
  %vm1533 = vcmp.le.f32.partialorder %v1532, 0.7853982
  %vm1534 = vcmp.lt.s32.totalorder %v470, 0
  %v1535 = vand.u32 %v470, 2139095040
  %v1536 = vshrl.u32 %v1535, 23
  %v1537 = vsub.s32 %v1536, 127
  %v1538 = vand.u32 2147483647, %v470
  %v1539 = vand.u32 %v1538, 8388607
  %v1540 = vor.u32 %v1539, 8388608
  %v1541 = vsub.s32 0, %v1540
  %v1542 = vadd.s32 %v1537, 1
  %vm1543 = vcmp.gt.s32.totalorder %v1542, 0
  %v1544 = vsel %vm1543, %v1542, 0
  %v1545 = vshrl.u32 %v1544, 5
  %v1546 = vand.u32 %v1544, 31
  %v1547 = vsub.s32 32, %v1546
  %v1548 = vshrl.u32 683565275, %v1547
  %v1549 = vshll.u32 683565275, %v1546
  %v1550 = vshrl.u32 2475754826, %v1547
  %v1551 = vor.u32 %v1549, %v1550
  %v1552 = vshll.u32 2475754826, %v1546
  %v1553 = vshrl.u32 2131351028, %v1547
  %v1554 = vor.u32 %v1552, %v1553
  %v1555 = vshll.u32 2131351028, %v1546
  %v1556 = vshrl.u32 2102212464, %v1547
  %v1557 = vor.u32 %v1555, %v1556
  %v1558 = vshll.u32 2102212464, %v1546
  %v1559 = vshrl.u32 920167782, %v1547
  %v1560 = vor.u32 %v1558, %v1559
  %v1561 = vshll.u32 920167782, %v1546
  %v1562 = vshrl.u32 1326507024, %v1547
  %v1563 = vor.u32 %v1561, %v1562
  %vm1564 = vcmp.lt.s32.totalorder %v1545, 1
  %vm1565 = vcmp.lt.s32.totalorder %v1545, 2
  %vm1566 = vcmp.lt.s32.totalorder %v1545, 3
  %vm1567 = vcmp.lt.s32.totalorder %v1545, 4
  %v1568 = vsel %vm1564, %v1548, %v1551
  %v1569 = vsel %vm1567, %v1557, 2102212464
  %v1570 = vsel %vm1566, %v1554, %v1569
  %v1571 = vsel %vm1565, %v1568, %v1570
  %v1572 = vsel %vm1564, %v1551, %v1554
  %v1573 = vsel %vm1567, %v1560, 920167782
  %v1574 = vsel %vm1566, %v1557, %v1573
  %v1575 = vsel %vm1565, %v1572, %v1574
  %v1576 = vsel %vm1564, %v1554, %v1557
  %v1577 = vsel %vm1567, %v1563, 1326507024
  %v1578 = vsel %vm1566, %v1560, %v1577
  %v1579 = vsel %vm1565, %v1576, %v1578
  %v1580 = vshll.u32 %v1540, 8
  %v1581 = vmul.u32.u64.compose %v1580, %v1579
  %v1582 = vextract.low.u32 %v1581
  %v1583 = vextract.high.u32 %v1581
  %v1584 = vmul.u32.u64.compose %v1580, %v1575
  %v1585 = vextract.low.u32 %v1584
  %v1586 = vextract.high.u32 %v1584
  %v1587 = vmul.u32 %v1580, %v1571
  %v1588 = vadd.s32 %v1583, %v1585
  %vm1589 = vc.u32 %v1583, %v1585
  %v1590 = vadd.s32 %v1586, 1
  %v1591 = vsel %vm1589, %v1590, %v1586
  %v1592 = vadd.s32 %v1587, %v1591
  %v1593 = vadd.s32 %v1592, 536870912
  %v1594 = vshrl.u32 %v1593, 30
  %v1595 = vshll.u32 %v1594, 30
  %v1596 = vsub.s32 %v1592, %v1595
  %vm1597 = vcmp.lt.s32.totalorder %v1596, 0
  %v1598 = vsub.s32 0, %v1596
  %v1599 = vsel %vm1597, %v1598, %v1596
  %v1600 = vclz %v1599
  %v1601 = vsub.s32 %v1600, 2
  %vm1602 = vcmp.gt.s32.totalorder 0, %v1601
  %v1603 = vsel %vm1602, 0, %v1601
  %v1604 = vsub.s32 32, %v1603
  %v1605 = vshll.u32 %v1596, %v1603
  %v1606 = vshrl.u32 %v1588, %v1604
  %v1607 = vor.u32 %v1605, %v1606
  %v1608 = vsub.s32 4294967266, %v1603
  %v1609 = vadd.s32 %v1608, 127
  %v1610 = vshll.u32 %v1609, 23
  %v1611 = vor.u32 4788187, %v1610
  %v1612 = vand.u32 2147483647, %v1611
  %v1614 = vcvt.s32.f32 %v1607
  %v1615 = vmul.f32 %v1614, %v1612
  %v1616 = vxor.u32 %v1615, 2147483648
  %v1617 = vsel %vm1534, %v1616, %v1615
  %v1618 = vsub.s32 4, %v1594
  %v1619 = vsel %vm1534, %v1618, %v1594
  %v1620 = vsel %vm1533, %v470, %v1617
  %v1621 = vsel %vm1533, 0, %v1619
  %v1622 = vcosq.f32.pop %v1620
  %v1623 = vsinq.f32.pop %v1620
  %vm1624 = vweird.f32 %v470
  %v1625 = vadd.s32 %v1621, 3
  %v1626 = vand.u32 %v1625, 3
  %vm1627 = vcmp.lt.s32.totalorder %v1626, 2
  %vm1628 = vcmp.eq.s32.totalorder %v1626, 0
  %v1629 = vxor.u32 %v1623, 2147483648
  %v1630 = vsel %vm1628, %v1622, %v1629
  %vm1631 = vcmp.eq.s32.totalorder %v1626, 2
  %v1632 = vxor.u32 %v1622, 2147483648
  %v1633 = vsel %vm1631, %v1632, %v1623
  %v1634 = vsel %vm1627, %v1630, %v1633
  %v1635 = vsel %vm1624, nan, %v1634
  %v1636 = vand.u32 2147483647, %v471
  %vm1637 = vcmp.le.f32.partialorder %v1636, 0.7853982
  %vm1638 = vcmp.lt.s32.totalorder %v471, 0
  %v1639 = vand.u32 %v471, 2139095040
  %v1640 = vshrl.u32 %v1639, 23
  %v1641 = vsub.s32 %v1640, 127
  %v1642 = vand.u32 2147483647, %v471
  %v1643 = vand.u32 %v1642, 8388607
  %v1644 = vor.u32 %v1643, 8388608
  %v1645 = vsub.s32 0, %v1644
  %v1646 = vadd.s32 %v1641, 1
  %vm1647 = vcmp.gt.s32.totalorder %v1646, 0
  %v1648 = vsel %vm1647, %v1646, 0
  %v1649 = vshrl.u32 %v1648, 5
  %v1650 = vand.u32 %v1648, 31
  %v1651 = vsub.s32 32, %v1650
  %v1652 = vshrl.u32 683565275, %v1651
  %v1653 = vshll.u32 683565275, %v1650
  %v1654 = vshrl.u32 2475754826, %v1651
  %v1655 = vor.u32 %v1653, %v1654
  %v1656 = vshll.u32 2475754826, %v1650
  %v1657 = vshrl.u32 2131351028, %v1651
  %v1658 = vor.u32 %v1656, %v1657
  %v1659 = vshll.u32 2131351028, %v1650
  %v1660 = vshrl.u32 2102212464, %v1651
  %v1661 = vor.u32 %v1659, %v1660
  %v1662 = vshll.u32 2102212464, %v1650
  %v1663 = vshrl.u32 920167782, %v1651
  %v1664 = vor.u32 %v1662, %v1663
  %v1665 = vshll.u32 920167782, %v1650
  %v1666 = vshrl.u32 1326507024, %v1651
  %v1667 = vor.u32 %v1665, %v1666
  %vm1668 = vcmp.lt.s32.totalorder %v1649, 1
  %vm1669 = vcmp.lt.s32.totalorder %v1649, 2
  %vm1670 = vcmp.lt.s32.totalorder %v1649, 3
  %vm1671 = vcmp.lt.s32.totalorder %v1649, 4
  %v1672 = vsel %vm1668, %v1652, %v1655
  %v1673 = vsel %vm1671, %v1661, 2102212464
  %v1674 = vsel %vm1670, %v1658, %v1673
  %v1675 = vsel %vm1669, %v1672, %v1674
  %v1676 = vsel %vm1668, %v1655, %v1658
  %v1677 = vsel %vm1671, %v1664, 920167782
  %v1678 = vsel %vm1670, %v1661, %v1677
  %v1679 = vsel %vm1669, %v1676, %v1678
  %v1680 = vsel %vm1668, %v1658, %v1661
  %v1681 = vsel %vm1671, %v1667, 1326507024
  %v1682 = vsel %vm1670, %v1664, %v1681
  %v1683 = vsel %vm1669, %v1680, %v1682
  %v1684 = vshll.u32 %v1644, 8
  %v1685 = vmul.u32.u64.compose %v1684, %v1683
  %v1686 = vextract.low.u32 %v1685
  %v1687 = vextract.high.u32 %v1685
  %v1688 = vmul.u32.u64.compose %v1684, %v1679
  %v1689 = vextract.low.u32 %v1688
  %v1690 = vextract.high.u32 %v1688
  %v1691 = vmul.u32 %v1684, %v1675
  %v1692 = vadd.s32 %v1687, %v1689
  %vm1693 = vc.u32 %v1687, %v1689
  %v1694 = vadd.s32 %v1690, 1
  %v1695 = vsel %vm1693, %v1694, %v1690
  %v1696 = vadd.s32 %v1691, %v1695
  %v1697 = vadd.s32 %v1696, 536870912
  %v1698 = vshrl.u32 %v1697, 30
  %v1699 = vshll.u32 %v1698, 30
  %v1700 = vsub.s32 %v1696, %v1699
  %vm1701 = vcmp.lt.s32.totalorder %v1700, 0
  %v1702 = vsub.s32 0, %v1700
  %v1703 = vsel %vm1701, %v1702, %v1700
  %v1704 = vclz %v1703
  %v1705 = vsub.s32 %v1704, 2
  %vm1706 = vcmp.gt.s32.totalorder 0, %v1705
  %v1707 = vsel %vm1706, 0, %v1705
  %v1708 = vsub.s32 32, %v1707
  %v1709 = vshll.u32 %v1700, %v1707
  %v1710 = vshrl.u32 %v1692, %v1708
  %v1711 = vor.u32 %v1709, %v1710
  %v1712 = vsub.s32 4294967266, %v1707
  %v1713 = vadd.s32 %v1712, 127
  %v1714 = vshll.u32 %v1713, 23
  %v1715 = vor.u32 4788187, %v1714
  %v1716 = vand.u32 2147483647, %v1715
  %v1718 = vcvt.s32.f32 %v1711
  %v1719 = vmul.f32 %v1718, %v1716
  %v1720 = vxor.u32 %v1719, 2147483648
  %v1721 = vsel %vm1638, %v1720, %v1719
  %v1722 = vsub.s32 4, %v1698
  %v1723 = vsel %vm1638, %v1722, %v1698
  %v1724 = vsel %vm1637, %v471, %v1721
  %v1725 = vsel %vm1637, 0, %v1723
  %v1726 = vcosq.f32.pop %v1724
  %v1727 = vsinq.f32.pop %v1724
  %vm1728 = vweird.f32 %v471
  %v1729 = vadd.s32 %v1725, 3
  %v1730 = vand.u32 %v1729, 3
  %vm1731 = vcmp.lt.s32.totalorder %v1730, 2
  %vm1732 = vcmp.eq.s32.totalorder %v1730, 0
  %v1733 = vxor.u32 %v1727, 2147483648
  %v1734 = vsel %vm1732, %v1726, %v1733
  %vm1735 = vcmp.eq.s32.totalorder %v1730, 2
  %v1736 = vxor.u32 %v1726, 2147483648
  %v1737 = vsel %vm1735, %v1736, %v1727
  %v1738 = vsel %vm1731, %v1734, %v1737
  %v1739 = vsel %vm1728, nan, %v1738
  %v1740 = vand.u32 2147483647, %v472
  %vm1741 = vcmp.le.f32.partialorder %v1740, 0.7853982
  %vm1742 = vcmp.lt.s32.totalorder %v472, 0
  %v1743 = vand.u32 %v472, 2139095040
  %v1744 = vshrl.u32 %v1743, 23
  %v1745 = vsub.s32 %v1744, 127
  %v1746 = vand.u32 2147483647, %v472
  %v1747 = vand.u32 %v1746, 8388607
  %v1748 = vor.u32 %v1747, 8388608
  %v1749 = vsub.s32 0, %v1748
  %v1750 = vadd.s32 %v1745, 1
  %vm1751 = vcmp.gt.s32.totalorder %v1750, 0
  %v1752 = vsel %vm1751, %v1750, 0
  %v1753 = vshrl.u32 %v1752, 5
  %v1754 = vand.u32 %v1752, 31
  %v1755 = vsub.s32 32, %v1754
  %v1756 = vshrl.u32 683565275, %v1755
  %v1757 = vshll.u32 683565275, %v1754
  %v1758 = vshrl.u32 2475754826, %v1755
  %v1759 = vor.u32 %v1757, %v1758
  %v1760 = vshll.u32 2475754826, %v1754
  %v1761 = vshrl.u32 2131351028, %v1755
  %v1762 = vor.u32 %v1760, %v1761
  %v1763 = vshll.u32 2131351028, %v1754
  %v1764 = vshrl.u32 2102212464, %v1755
  %v1765 = vor.u32 %v1763, %v1764
  %v1766 = vshll.u32 2102212464, %v1754
  %v1767 = vshrl.u32 920167782, %v1755
  %v1768 = vor.u32 %v1766, %v1767
  %v1769 = vshll.u32 920167782, %v1754
  %v1770 = vshrl.u32 1326507024, %v1755
  %v1771 = vor.u32 %v1769, %v1770
  %vm1772 = vcmp.lt.s32.totalorder %v1753, 1
  %vm1773 = vcmp.lt.s32.totalorder %v1753, 2
  %vm1774 = vcmp.lt.s32.totalorder %v1753, 3
  %vm1775 = vcmp.lt.s32.totalorder %v1753, 4
  %v1776 = vsel %vm1772, %v1756, %v1759
  %v1777 = vsel %vm1775, %v1765, 2102212464
  %v1778 = vsel %vm1774, %v1762, %v1777
  %v1779 = vsel %vm1773, %v1776, %v1778
  %v1780 = vsel %vm1772, %v1759, %v1762
  %v1781 = vsel %vm1775, %v1768, 920167782
  %v1782 = vsel %vm1774, %v1765, %v1781
  %v1783 = vsel %vm1773, %v1780, %v1782
  %v1784 = vsel %vm1772, %v1762, %v1765
  %v1785 = vsel %vm1775, %v1771, 1326507024
  %v1786 = vsel %vm1774, %v1768, %v1785
  %v1787 = vsel %vm1773, %v1784, %v1786
  %v1788 = vshll.u32 %v1748, 8
  %v1789 = vmul.u32.u64.compose %v1788, %v1787
  %v1790 = vextract.low.u32 %v1789
  %v1791 = vextract.high.u32 %v1789
  %v1792 = vmul.u32.u64.compose %v1788, %v1783
  %v1793 = vextract.low.u32 %v1792
  %v1794 = vextract.high.u32 %v1792
  %v1795 = vmul.u32 %v1788, %v1779
  %v1796 = vadd.s32 %v1791, %v1793
  %vm1797 = vc.u32 %v1791, %v1793
  %v1798 = vadd.s32 %v1794, 1
  %v1799 = vsel %vm1797, %v1798, %v1794
  %v1800 = vadd.s32 %v1795, %v1799
  %v1801 = vadd.s32 %v1800, 536870912
  %v1802 = vshrl.u32 %v1801, 30
  %v1803 = vshll.u32 %v1802, 30
  %v1804 = vsub.s32 %v1800, %v1803
  %vm1805 = vcmp.lt.s32.totalorder %v1804, 0
  %v1806 = vsub.s32 0, %v1804
  %v1807 = vsel %vm1805, %v1806, %v1804
  %v1808 = vclz %v1807
  %v1809 = vsub.s32 %v1808, 2
  %vm1810 = vcmp.gt.s32.totalorder 0, %v1809
  %v1811 = vsel %vm1810, 0, %v1809
  %v1812 = vsub.s32 32, %v1811
  %v1813 = vshll.u32 %v1804, %v1811
  %v1814 = vshrl.u32 %v1796, %v1812
  %v1815 = vor.u32 %v1813, %v1814
  %v1816 = vsub.s32 4294967266, %v1811
  %v1817 = vadd.s32 %v1816, 127
  %v1818 = vshll.u32 %v1817, 23
  %v1819 = vor.u32 4788187, %v1818
  %v1820 = vand.u32 2147483647, %v1819
  %v1822 = vcvt.s32.f32 %v1815
  %v1823 = vmul.f32 %v1822, %v1820
  %v1824 = vxor.u32 %v1823, 2147483648
  %v1825 = vsel %vm1742, %v1824, %v1823
  %v1826 = vsub.s32 4, %v1802
  %v1827 = vsel %vm1742, %v1826, %v1802
  %v1828 = vsel %vm1741, %v472, %v1825
  %v1829 = vsel %vm1741, 0, %v1827
  %v1830 = vcosq.f32.pop %v1828
  %v1831 = vsinq.f32.pop %v1828
  %vm1832 = vweird.f32 %v472
  %v1833 = vadd.s32 %v1829, 3
  %v1834 = vand.u32 %v1833, 3
  %vm1835 = vcmp.lt.s32.totalorder %v1834, 2
  %vm1836 = vcmp.eq.s32.totalorder %v1834, 0
  %v1837 = vxor.u32 %v1831, 2147483648
  %v1838 = vsel %vm1836, %v1830, %v1837
  %vm1839 = vcmp.eq.s32.totalorder %v1834, 2
  %v1840 = vxor.u32 %v1830, 2147483648
  %v1841 = vsel %vm1839, %v1840, %v1831
  %v1842 = vsel %vm1835, %v1838, %v1841
  %v1843 = vsel %vm1832, nan, %v1842
  %v1844 = vand.u32 2147483647, %v473
  %vm1845 = vcmp.le.f32.partialorder %v1844, 0.7853982
  %vm1846 = vcmp.lt.s32.totalorder %v473, 0
  %v1847 = vand.u32 %v473, 2139095040
  %v1848 = vshrl.u32 %v1847, 23
  %v1849 = vsub.s32 %v1848, 127
  %v1850 = vand.u32 2147483647, %v473
  %v1851 = vand.u32 %v1850, 8388607
  %v1852 = vor.u32 %v1851, 8388608
  %v1853 = vsub.s32 0, %v1852
  %v1854 = vadd.s32 %v1849, 1
  %vm1855 = vcmp.gt.s32.totalorder %v1854, 0
  %v1856 = vsel %vm1855, %v1854, 0
  %v1857 = vshrl.u32 %v1856, 5
  %v1858 = vand.u32 %v1856, 31
  %v1859 = vsub.s32 32, %v1858
  %v1860 = vshrl.u32 683565275, %v1859
  %v1861 = vshll.u32 683565275, %v1858
  %v1862 = vshrl.u32 2475754826, %v1859
  %v1863 = vor.u32 %v1861, %v1862
  %v1864 = vshll.u32 2475754826, %v1858
  %v1865 = vshrl.u32 2131351028, %v1859
  %v1866 = vor.u32 %v1864, %v1865
  %v1867 = vshll.u32 2131351028, %v1858
  %v1868 = vshrl.u32 2102212464, %v1859
  %v1869 = vor.u32 %v1867, %v1868
  %v1870 = vshll.u32 2102212464, %v1858
  %v1871 = vshrl.u32 920167782, %v1859
  %v1872 = vor.u32 %v1870, %v1871
  %v1873 = vshll.u32 920167782, %v1858
  %v1874 = vshrl.u32 1326507024, %v1859
  %v1875 = vor.u32 %v1873, %v1874
  %vm1876 = vcmp.lt.s32.totalorder %v1857, 1
  %vm1877 = vcmp.lt.s32.totalorder %v1857, 2
  %vm1878 = vcmp.lt.s32.totalorder %v1857, 3
  %vm1879 = vcmp.lt.s32.totalorder %v1857, 4
  %v1880 = vsel %vm1876, %v1860, %v1863
  %v1881 = vsel %vm1879, %v1869, 2102212464
  %v1882 = vsel %vm1878, %v1866, %v1881
  %v1883 = vsel %vm1877, %v1880, %v1882
  %v1884 = vsel %vm1876, %v1863, %v1866
  %v1885 = vsel %vm1879, %v1872, 920167782
  %v1886 = vsel %vm1878, %v1869, %v1885
  %v1887 = vsel %vm1877, %v1884, %v1886
  %v1888 = vsel %vm1876, %v1866, %v1869
  %v1889 = vsel %vm1879, %v1875, 1326507024
  %v1890 = vsel %vm1878, %v1872, %v1889
  %v1891 = vsel %vm1877, %v1888, %v1890
  %v1892 = vshll.u32 %v1852, 8
  %v1893 = vmul.u32.u64.compose %v1892, %v1891
  %v1894 = vextract.low.u32 %v1893
  %v1895 = vextract.high.u32 %v1893
  %v1896 = vmul.u32.u64.compose %v1892, %v1887
  %v1897 = vextract.low.u32 %v1896
  %v1898 = vextract.high.u32 %v1896
  %v1899 = vmul.u32 %v1892, %v1883
  %v1900 = vadd.s32 %v1895, %v1897
  %vm1901 = vc.u32 %v1895, %v1897
  %v1902 = vadd.s32 %v1898, 1
  %v1903 = vsel %vm1901, %v1902, %v1898
  %v1904 = vadd.s32 %v1899, %v1903
  %v1905 = vadd.s32 %v1904, 536870912
  %v1906 = vshrl.u32 %v1905, 30
  %v1907 = vshll.u32 %v1906, 30
  %v1908 = vsub.s32 %v1904, %v1907
  %vm1909 = vcmp.lt.s32.totalorder %v1908, 0
  %v1910 = vsub.s32 0, %v1908
  %v1911 = vsel %vm1909, %v1910, %v1908
  %v1912 = vclz %v1911
  %v1913 = vsub.s32 %v1912, 2
  %vm1914 = vcmp.gt.s32.totalorder 0, %v1913
  %v1915 = vsel %vm1914, 0, %v1913
  %v1916 = vsub.s32 32, %v1915
  %v1917 = vshll.u32 %v1908, %v1915
  %v1918 = vshrl.u32 %v1900, %v1916
  %v1919 = vor.u32 %v1917, %v1918
  %v1920 = vsub.s32 4294967266, %v1915
  %v1921 = vadd.s32 %v1920, 127
  %v1922 = vshll.u32 %v1921, 23
  %v1923 = vor.u32 4788187, %v1922
  %v1924 = vand.u32 2147483647, %v1923
  %v1926 = vcvt.s32.f32 %v1919
  %v1927 = vmul.f32 %v1926, %v1924
  %v1928 = vxor.u32 %v1927, 2147483648
  %v1929 = vsel %vm1846, %v1928, %v1927
  %v1930 = vsub.s32 4, %v1906
  %v1931 = vsel %vm1846, %v1930, %v1906
  %v1932 = vsel %vm1845, %v473, %v1929
  %v1933 = vsel %vm1845, 0, %v1931
  %v1934 = vcosq.f32.pop %v1932
  %v1935 = vsinq.f32.pop %v1932
  %vm1936 = vweird.f32 %v473
  %v1937 = vadd.s32 %v1933, 3
  %v1938 = vand.u32 %v1937, 3
  %vm1939 = vcmp.lt.s32.totalorder %v1938, 2
  %vm1940 = vcmp.eq.s32.totalorder %v1938, 0
  %v1941 = vxor.u32 %v1935, 2147483648
  %v1942 = vsel %vm1940, %v1934, %v1941
  %vm1943 = vcmp.eq.s32.totalorder %v1938, 2
  %v1944 = vxor.u32 %v1934, 2147483648
  %v1945 = vsel %vm1943, %v1944, %v1935
  %v1946 = vsel %vm1939, %v1942, %v1945
  %v1947 = vsel %vm1936, nan, %v1946
  %v1948 = vand.u32 2147483647, %v474
  %vm1949 = vcmp.le.f32.partialorder %v1948, 0.7853982
  %vm1950 = vcmp.lt.s32.totalorder %v474, 0
  %v1951 = vand.u32 %v474, 2139095040
  %v1952 = vshrl.u32 %v1951, 23
  %v1953 = vsub.s32 %v1952, 127
  %v1954 = vand.u32 2147483647, %v474
  %v1955 = vand.u32 %v1954, 8388607
  %v1956 = vor.u32 %v1955, 8388608
  %v1957 = vsub.s32 0, %v1956
  %v1958 = vadd.s32 %v1953, 1
  %vm1959 = vcmp.gt.s32.totalorder %v1958, 0
  %v1960 = vsel %vm1959, %v1958, 0
  %v1961 = vshrl.u32 %v1960, 5
  %v1962 = vand.u32 %v1960, 31
  %v1963 = vsub.s32 32, %v1962
  %v1964 = vshrl.u32 683565275, %v1963
  %v1965 = vshll.u32 683565275, %v1962
  %v1966 = vshrl.u32 2475754826, %v1963
  %v1967 = vor.u32 %v1965, %v1966
  %v1968 = vshll.u32 2475754826, %v1962
  %v1969 = vshrl.u32 2131351028, %v1963
  %v1970 = vor.u32 %v1968, %v1969
  %v1971 = vshll.u32 2131351028, %v1962
  %v1972 = vshrl.u32 2102212464, %v1963
  %v1973 = vor.u32 %v1971, %v1972
  %v1974 = vshll.u32 2102212464, %v1962
  %v1975 = vshrl.u32 920167782, %v1963
  %v1976 = vor.u32 %v1974, %v1975
  %v1977 = vshll.u32 920167782, %v1962
  %v1978 = vshrl.u32 1326507024, %v1963
  %v1979 = vor.u32 %v1977, %v1978
  %vm1980 = vcmp.lt.s32.totalorder %v1961, 1
  %vm1981 = vcmp.lt.s32.totalorder %v1961, 2
  %vm1982 = vcmp.lt.s32.totalorder %v1961, 3
  %vm1983 = vcmp.lt.s32.totalorder %v1961, 4
  %v1984 = vsel %vm1980, %v1964, %v1967
  %v1985 = vsel %vm1983, %v1973, 2102212464
  %v1986 = vsel %vm1982, %v1970, %v1985
  %v1987 = vsel %vm1981, %v1984, %v1986
  %v1988 = vsel %vm1980, %v1967, %v1970
  %v1989 = vsel %vm1983, %v1976, 920167782
  %v1990 = vsel %vm1982, %v1973, %v1989
  %v1991 = vsel %vm1981, %v1988, %v1990
  %v1992 = vsel %vm1980, %v1970, %v1973
  %v1993 = vsel %vm1983, %v1979, 1326507024
  %v1994 = vsel %vm1982, %v1976, %v1993
  %v1995 = vsel %vm1981, %v1992, %v1994
  %v1996 = vshll.u32 %v1956, 8
  %v1997 = vmul.u32.u64.compose %v1996, %v1995
  %v1998 = vextract.low.u32 %v1997
  %v1999 = vextract.high.u32 %v1997
  %v2000 = vmul.u32.u64.compose %v1996, %v1991
  %v2001 = vextract.low.u32 %v2000
  %v2002 = vextract.high.u32 %v2000
  %v2003 = vmul.u32 %v1996, %v1987
  %v2004 = vadd.s32 %v1999, %v2001
  %vm2005 = vc.u32 %v1999, %v2001
  %v2006 = vadd.s32 %v2002, 1
  %v2007 = vsel %vm2005, %v2006, %v2002
  %v2008 = vadd.s32 %v2003, %v2007
  %v2009 = vadd.s32 %v2008, 536870912
  %v2010 = vshrl.u32 %v2009, 30
  %v2011 = vshll.u32 %v2010, 30
  %v2012 = vsub.s32 %v2008, %v2011
  %vm2013 = vcmp.lt.s32.totalorder %v2012, 0
  %v2014 = vsub.s32 0, %v2012
  %v2015 = vsel %vm2013, %v2014, %v2012
  %v2016 = vclz %v2015
  %v2017 = vsub.s32 %v2016, 2
  %vm2018 = vcmp.gt.s32.totalorder 0, %v2017
  %v2019 = vsel %vm2018, 0, %v2017
  %v2020 = vsub.s32 32, %v2019
  %v2021 = vshll.u32 %v2012, %v2019
  %v2022 = vshrl.u32 %v2004, %v2020
  %v2023 = vor.u32 %v2021, %v2022
  %v2024 = vsub.s32 4294967266, %v2019
  %v2025 = vadd.s32 %v2024, 127
  %v2026 = vshll.u32 %v2025, 23
  %v2027 = vor.u32 4788187, %v2026
  %v2028 = vand.u32 2147483647, %v2027
  %v2030 = vcvt.s32.f32 %v2023
  %v2031 = vmul.f32 %v2030, %v2028
  %v2032 = vxor.u32 %v2031, 2147483648
  %v2033 = vsel %vm1950, %v2032, %v2031
  %v2034 = vsub.s32 4, %v2010
  %v2035 = vsel %vm1950, %v2034, %v2010
  %v2036 = vsel %vm1949, %v474, %v2033
  %v2037 = vsel %vm1949, 0, %v2035
  %v2038 = vcosq.f32.pop %v2036
  %v2039 = vsinq.f32.pop %v2036
  %vm2040 = vweird.f32 %v474
  %v2041 = vadd.s32 %v2037, 3
  %v2042 = vand.u32 %v2041, 3
  %vm2043 = vcmp.lt.s32.totalorder %v2042, 2
  %vm2044 = vcmp.eq.s32.totalorder %v2042, 0
  %v2045 = vxor.u32 %v2039, 2147483648
  %v2046 = vsel %vm2044, %v2038, %v2045
  %vm2047 = vcmp.eq.s32.totalorder %v2042, 2
  %v2048 = vxor.u32 %v2038, 2147483648
  %v2049 = vsel %vm2047, %v2048, %v2039
  %v2050 = vsel %vm2043, %v2046, %v2049
  %v2051 = vsel %vm2040, nan, %v2050
  %v2052 = vand.u32 2147483647, %v475
  %vm2053 = vcmp.le.f32.partialorder %v2052, 0.7853982
  %vm2054 = vcmp.lt.s32.totalorder %v475, 0
  %v2055 = vand.u32 %v475, 2139095040
  %v2056 = vshrl.u32 %v2055, 23
  %v2057 = vsub.s32 %v2056, 127
  %v2058 = vand.u32 2147483647, %v475
  %v2059 = vand.u32 %v2058, 8388607
  %v2060 = vor.u32 %v2059, 8388608
  %v2061 = vsub.s32 0, %v2060
  %v2062 = vadd.s32 %v2057, 1
  %vm2063 = vcmp.gt.s32.totalorder %v2062, 0
  %v2064 = vsel %vm2063, %v2062, 0
  %v2065 = vshrl.u32 %v2064, 5
  %v2066 = vand.u32 %v2064, 31
  %v2067 = vsub.s32 32, %v2066
  %v2068 = vshrl.u32 683565275, %v2067
  %v2069 = vshll.u32 683565275, %v2066
  %v2070 = vshrl.u32 2475754826, %v2067
  %v2071 = vor.u32 %v2069, %v2070
  %v2072 = vshll.u32 2475754826, %v2066
  %v2073 = vshrl.u32 2131351028, %v2067
  %v2074 = vor.u32 %v2072, %v2073
  %v2075 = vshll.u32 2131351028, %v2066
  %v2076 = vshrl.u32 2102212464, %v2067
  %v2077 = vor.u32 %v2075, %v2076
  %v2078 = vshll.u32 2102212464, %v2066
  %v2079 = vshrl.u32 920167782, %v2067
  %v2080 = vor.u32 %v2078, %v2079
  %v2081 = vshll.u32 920167782, %v2066
  %v2082 = vshrl.u32 1326507024, %v2067
  %v2083 = vor.u32 %v2081, %v2082
  %vm2084 = vcmp.lt.s32.totalorder %v2065, 1
  %vm2085 = vcmp.lt.s32.totalorder %v2065, 2
  %vm2086 = vcmp.lt.s32.totalorder %v2065, 3
  %vm2087 = vcmp.lt.s32.totalorder %v2065, 4
  %v2088 = vsel %vm2084, %v2068, %v2071
  %v2089 = vsel %vm2087, %v2077, 2102212464
  %v2090 = vsel %vm2086, %v2074, %v2089
  %v2091 = vsel %vm2085, %v2088, %v2090
  %v2092 = vsel %vm2084, %v2071, %v2074
  %v2093 = vsel %vm2087, %v2080, 920167782
  %v2094 = vsel %vm2086, %v2077, %v2093
  %v2095 = vsel %vm2085, %v2092, %v2094
  %v2096 = vsel %vm2084, %v2074, %v2077
  %v2097 = vsel %vm2087, %v2083, 1326507024
  %v2098 = vsel %vm2086, %v2080, %v2097
  %v2099 = vsel %vm2085, %v2096, %v2098
  %v2100 = vshll.u32 %v2060, 8
  %v2101 = vmul.u32.u64.compose %v2100, %v2099
  %v2102 = vextract.low.u32 %v2101
  %v2103 = vextract.high.u32 %v2101
  %v2104 = vmul.u32.u64.compose %v2100, %v2095
  %v2105 = vextract.low.u32 %v2104
  %v2106 = vextract.high.u32 %v2104
  %v2107 = vmul.u32 %v2100, %v2091
  %v2108 = vadd.s32 %v2103, %v2105
  %vm2109 = vc.u32 %v2103, %v2105
  %v2110 = vadd.s32 %v2106, 1
  %v2111 = vsel %vm2109, %v2110, %v2106
  %v2112 = vadd.s32 %v2107, %v2111
  %v2113 = vadd.s32 %v2112, 536870912
  %v2114 = vshrl.u32 %v2113, 30
  %v2115 = vshll.u32 %v2114, 30
  %v2116 = vsub.s32 %v2112, %v2115
  %vm2117 = vcmp.lt.s32.totalorder %v2116, 0
  %v2118 = vsub.s32 0, %v2116
  %v2119 = vsel %vm2117, %v2118, %v2116
  %v2120 = vclz %v2119
  %v2121 = vsub.s32 %v2120, 2
  %vm2122 = vcmp.gt.s32.totalorder 0, %v2121
  %v2123 = vsel %vm2122, 0, %v2121
  %v2124 = vsub.s32 32, %v2123
  %v2125 = vshll.u32 %v2116, %v2123
  %v2126 = vshrl.u32 %v2108, %v2124
  %v2127 = vor.u32 %v2125, %v2126
  %v2128 = vsub.s32 4294967266, %v2123
  %v2129 = vadd.s32 %v2128, 127
  %v2130 = vshll.u32 %v2129, 23
  %v2131 = vor.u32 4788187, %v2130
  %v2132 = vand.u32 2147483647, %v2131
  %v2134 = vcvt.s32.f32 %v2127
  %v2135 = vmul.f32 %v2134, %v2132
  %v2136 = vxor.u32 %v2135, 2147483648
  %v2137 = vsel %vm2054, %v2136, %v2135
  %v2138 = vsub.s32 4, %v2114
  %v2139 = vsel %vm2054, %v2138, %v2114
  %v2140 = vsel %vm2053, %v475, %v2137
  %v2141 = vsel %vm2053, 0, %v2139
  %v2142 = vcosq.f32.pop %v2140
  %v2143 = vsinq.f32.pop %v2140
  %vm2144 = vweird.f32 %v475
  %v2145 = vadd.s32 %v2141, 3
  %v2146 = vand.u32 %v2145, 3
  %vm2147 = vcmp.lt.s32.totalorder %v2146, 2
  %vm2148 = vcmp.eq.s32.totalorder %v2146, 0
  %v2149 = vxor.u32 %v2143, 2147483648
  %v2150 = vsel %vm2148, %v2142, %v2149
  %vm2151 = vcmp.eq.s32.totalorder %v2146, 2
  %v2152 = vxor.u32 %v2142, 2147483648
  %v2153 = vsel %vm2151, %v2152, %v2143
  %v2154 = vsel %vm2147, %v2150, %v2153
  %v2155 = vsel %vm2144, nan, %v2154
  %v2156 = vand.u32 2147483647, %v476
  %vm2157 = vcmp.le.f32.partialorder %v2156, 0.7853982
  %vm2158 = vcmp.lt.s32.totalorder %v476, 0
  %v2159 = vand.u32 %v476, 2139095040
  %v2160 = vshrl.u32 %v2159, 23
  %v2161 = vsub.s32 %v2160, 127
  %v2162 = vand.u32 2147483647, %v476
  %v2163 = vand.u32 %v2162, 8388607
  %v2164 = vor.u32 %v2163, 8388608
  %v2165 = vsub.s32 0, %v2164
  %v2166 = vadd.s32 %v2161, 1
  %vm2167 = vcmp.gt.s32.totalorder %v2166, 0
  %v2168 = vsel %vm2167, %v2166, 0
  %v2169 = vshrl.u32 %v2168, 5
  %v2170 = vand.u32 %v2168, 31
  %v2171 = vsub.s32 32, %v2170
  %v2172 = vshrl.u32 683565275, %v2171
  %v2173 = vshll.u32 683565275, %v2170
  %v2174 = vshrl.u32 2475754826, %v2171
  %v2175 = vor.u32 %v2173, %v2174
  %v2176 = vshll.u32 2475754826, %v2170
  %v2177 = vshrl.u32 2131351028, %v2171
  %v2178 = vor.u32 %v2176, %v2177
  %v2179 = vshll.u32 2131351028, %v2170
  %v2180 = vshrl.u32 2102212464, %v2171
  %v2181 = vor.u32 %v2179, %v2180
  %v2182 = vshll.u32 2102212464, %v2170
  %v2183 = vshrl.u32 920167782, %v2171
  %v2184 = vor.u32 %v2182, %v2183
  %v2185 = vshll.u32 920167782, %v2170
  %v2186 = vshrl.u32 1326507024, %v2171
  %v2187 = vor.u32 %v2185, %v2186
  %vm2188 = vcmp.lt.s32.totalorder %v2169, 1
  %vm2189 = vcmp.lt.s32.totalorder %v2169, 2
  %vm2190 = vcmp.lt.s32.totalorder %v2169, 3
  %vm2191 = vcmp.lt.s32.totalorder %v2169, 4
  %v2192 = vsel %vm2188, %v2172, %v2175
  %v2193 = vsel %vm2191, %v2181, 2102212464
  %v2194 = vsel %vm2190, %v2178, %v2193
  %v2195 = vsel %vm2189, %v2192, %v2194
  %v2196 = vsel %vm2188, %v2175, %v2178
  %v2197 = vsel %vm2191, %v2184, 920167782
  %v2198 = vsel %vm2190, %v2181, %v2197
  %v2199 = vsel %vm2189, %v2196, %v2198
  %v2200 = vsel %vm2188, %v2178, %v2181
  %v2201 = vsel %vm2191, %v2187, 1326507024
  %v2202 = vsel %vm2190, %v2184, %v2201
  %v2203 = vsel %vm2189, %v2200, %v2202
  %v2204 = vshll.u32 %v2164, 8
  %v2205 = vmul.u32.u64.compose %v2204, %v2203
  %v2206 = vextract.low.u32 %v2205
  %v2207 = vextract.high.u32 %v2205
  %v2208 = vmul.u32.u64.compose %v2204, %v2199
  %v2209 = vextract.low.u32 %v2208
  %v2210 = vextract.high.u32 %v2208
  %v2211 = vmul.u32 %v2204, %v2195
  %v2212 = vadd.s32 %v2207, %v2209
  %vm2213 = vc.u32 %v2207, %v2209
  %v2214 = vadd.s32 %v2210, 1
  %v2215 = vsel %vm2213, %v2214, %v2210
  %v2216 = vadd.s32 %v2211, %v2215
  %v2217 = vadd.s32 %v2216, 536870912
  %v2218 = vshrl.u32 %v2217, 30
  %v2219 = vshll.u32 %v2218, 30
  %v2220 = vsub.s32 %v2216, %v2219
  %vm2221 = vcmp.lt.s32.totalorder %v2220, 0
  %v2222 = vsub.s32 0, %v2220
  %v2223 = vsel %vm2221, %v2222, %v2220
  %v2224 = vclz %v2223
  %v2225 = vsub.s32 %v2224, 2
  %vm2226 = vcmp.gt.s32.totalorder 0, %v2225
  %v2227 = vsel %vm2226, 0, %v2225
  %v2228 = vsub.s32 32, %v2227
  %v2229 = vshll.u32 %v2220, %v2227
  %v2230 = vshrl.u32 %v2212, %v2228
  %v2231 = vor.u32 %v2229, %v2230
  %v2232 = vsub.s32 4294967266, %v2227
  %v2233 = vadd.s32 %v2232, 127
  %v2234 = vshll.u32 %v2233, 23
  %v2235 = vor.u32 4788187, %v2234
  %v2236 = vand.u32 2147483647, %v2235
  %v2238 = vcvt.s32.f32 %v2231
  %v2239 = vmul.f32 %v2238, %v2236
  %v2240 = vxor.u32 %v2239, 2147483648
  %v2241 = vsel %vm2158, %v2240, %v2239
  %v2242 = vsub.s32 4, %v2218
  %v2243 = vsel %vm2158, %v2242, %v2218
  %v2244 = vsel %vm2157, %v476, %v2241
  %v2245 = vsel %vm2157, 0, %v2243
  %v2246 = vcosq.f32.pop %v2244
  %v2247 = vsinq.f32.pop %v2244
  %vm2248 = vweird.f32 %v476
  %v2249 = vadd.s32 %v2245, 3
  %v2250 = vand.u32 %v2249, 3
  %vm2251 = vcmp.lt.s32.totalorder %v2250, 2
  %vm2252 = vcmp.eq.s32.totalorder %v2250, 0
  %v2253 = vxor.u32 %v2247, 2147483648
  %v2254 = vsel %vm2252, %v2246, %v2253
  %vm2255 = vcmp.eq.s32.totalorder %v2250, 2
  %v2256 = vxor.u32 %v2246, 2147483648
  %v2257 = vsel %vm2255, %v2256, %v2247
  %v2258 = vsel %vm2251, %v2254, %v2257
  %v2259 = vsel %vm2248, nan, %v2258
  %v2260 = vand.u32 2147483647, %v477
  %vm2261 = vcmp.le.f32.partialorder %v2260, 0.7853982
  %vm2262 = vcmp.lt.s32.totalorder %v477, 0
  %v2263 = vand.u32 %v477, 2139095040
  %v2264 = vshrl.u32 %v2263, 23
  %v2265 = vsub.s32 %v2264, 127
  %v2266 = vand.u32 2147483647, %v477
  %v2267 = vand.u32 %v2266, 8388607
  %v2268 = vor.u32 %v2267, 8388608
  %v2269 = vsub.s32 0, %v2268
  %v2270 = vadd.s32 %v2265, 1
  %vm2271 = vcmp.gt.s32.totalorder %v2270, 0
  %v2272 = vsel %vm2271, %v2270, 0
  %v2273 = vshrl.u32 %v2272, 5
  %v2274 = vand.u32 %v2272, 31
  %v2275 = vsub.s32 32, %v2274
  %v2276 = vshrl.u32 683565275, %v2275
  %v2277 = vshll.u32 683565275, %v2274
  %v2278 = vshrl.u32 2475754826, %v2275
  %v2279 = vor.u32 %v2277, %v2278
  %v2280 = vshll.u32 2475754826, %v2274
  %v2281 = vshrl.u32 2131351028, %v2275
  %v2282 = vor.u32 %v2280, %v2281
  %v2283 = vshll.u32 2131351028, %v2274
  %v2284 = vshrl.u32 2102212464, %v2275
  %v2285 = vor.u32 %v2283, %v2284
  %v2286 = vshll.u32 2102212464, %v2274
  %v2287 = vshrl.u32 920167782, %v2275
  %v2288 = vor.u32 %v2286, %v2287
  %v2289 = vshll.u32 920167782, %v2274
  %v2290 = vshrl.u32 1326507024, %v2275
  %v2291 = vor.u32 %v2289, %v2290
  %vm2292 = vcmp.lt.s32.totalorder %v2273, 1
  %vm2293 = vcmp.lt.s32.totalorder %v2273, 2
  %vm2294 = vcmp.lt.s32.totalorder %v2273, 3
  %vm2295 = vcmp.lt.s32.totalorder %v2273, 4
  %v2296 = vsel %vm2292, %v2276, %v2279
  %v2297 = vsel %vm2295, %v2285, 2102212464
  %v2298 = vsel %vm2294, %v2282, %v2297
  %v2299 = vsel %vm2293, %v2296, %v2298
  %v2300 = vsel %vm2292, %v2279, %v2282
  %v2301 = vsel %vm2295, %v2288, 920167782
  %v2302 = vsel %vm2294, %v2285, %v2301
  %v2303 = vsel %vm2293, %v2300, %v2302
  %v2304 = vsel %vm2292, %v2282, %v2285
  %v2305 = vsel %vm2295, %v2291, 1326507024
  %v2306 = vsel %vm2294, %v2288, %v2305
  %v2307 = vsel %vm2293, %v2304, %v2306
  %v2308 = vshll.u32 %v2268, 8
  %v2309 = vmul.u32.u64.compose %v2308, %v2307
  %v2310 = vextract.low.u32 %v2309
  %v2311 = vextract.high.u32 %v2309
  %v2312 = vmul.u32.u64.compose %v2308, %v2303
  %v2313 = vextract.low.u32 %v2312
  %v2314 = vextract.high.u32 %v2312
  %v2315 = vmul.u32 %v2308, %v2299
  %v2316 = vadd.s32 %v2311, %v2313
  %vm2317 = vc.u32 %v2311, %v2313
  %v2318 = vadd.s32 %v2314, 1
  %v2319 = vsel %vm2317, %v2318, %v2314
  %v2320 = vadd.s32 %v2315, %v2319
  %v2321 = vadd.s32 %v2320, 536870912
  %v2322 = vshrl.u32 %v2321, 30
  %v2323 = vshll.u32 %v2322, 30
  %v2324 = vsub.s32 %v2320, %v2323
  %vm2325 = vcmp.lt.s32.totalorder %v2324, 0
  %v2326 = vsub.s32 0, %v2324
  %v2327 = vsel %vm2325, %v2326, %v2324
  %v2328 = vclz %v2327
  %v2329 = vsub.s32 %v2328, 2
  %vm2330 = vcmp.gt.s32.totalorder 0, %v2329
  %v2331 = vsel %vm2330, 0, %v2329
  %v2332 = vsub.s32 32, %v2331
  %v2333 = vshll.u32 %v2324, %v2331
  %v2334 = vshrl.u32 %v2316, %v2332
  %v2335 = vor.u32 %v2333, %v2334
  %v2336 = vsub.s32 4294967266, %v2331
  %v2337 = vadd.s32 %v2336, 127
  %v2338 = vshll.u32 %v2337, 23
  %v2339 = vor.u32 4788187, %v2338
  %v2340 = vand.u32 2147483647, %v2339
  %v2342 = vcvt.s32.f32 %v2335
  %v2343 = vmul.f32 %v2342, %v2340
  %v2344 = vxor.u32 %v2343, 2147483648
  %v2345 = vsel %vm2262, %v2344, %v2343
  %v2346 = vsub.s32 4, %v2322
  %v2347 = vsel %vm2262, %v2346, %v2322
  %v2348 = vsel %vm2261, %v477, %v2345
  %v2349 = vsel %vm2261, 0, %v2347
  %v2350 = vcosq.f32.pop %v2348
  %v2351 = vsinq.f32.pop %v2348
  %vm2352 = vweird.f32 %v477
  %v2353 = vadd.s32 %v2349, 3
  %v2354 = vand.u32 %v2353, 3
  %vm2355 = vcmp.lt.s32.totalorder %v2354, 2
  %vm2356 = vcmp.eq.s32.totalorder %v2354, 0
  %v2357 = vxor.u32 %v2351, 2147483648
  %v2358 = vsel %vm2356, %v2350, %v2357
  %vm2359 = vcmp.eq.s32.totalorder %v2354, 2
  %v2360 = vxor.u32 %v2350, 2147483648
  %v2361 = vsel %vm2359, %v2360, %v2351
  %v2362 = vsel %vm2355, %v2358, %v2361
  %v2363 = vsel %vm2352, nan, %v2362
  %v2364 = vand.u32 2147483647, %v478
  %vm2365 = vcmp.le.f32.partialorder %v2364, 0.7853982
  %vm2366 = vcmp.lt.s32.totalorder %v478, 0
  %v2367 = vand.u32 %v478, 2139095040
  %v2368 = vshrl.u32 %v2367, 23
  %v2369 = vsub.s32 %v2368, 127
  %v2370 = vand.u32 2147483647, %v478
  %v2371 = vand.u32 %v2370, 8388607
  %v2372 = vor.u32 %v2371, 8388608
  %v2373 = vsub.s32 0, %v2372
  %v2374 = vadd.s32 %v2369, 1
  %vm2375 = vcmp.gt.s32.totalorder %v2374, 0
  %v2376 = vsel %vm2375, %v2374, 0
  %v2377 = vshrl.u32 %v2376, 5
  %v2378 = vand.u32 %v2376, 31
  %v2379 = vsub.s32 32, %v2378
  %v2380 = vshrl.u32 683565275, %v2379
  %v2381 = vshll.u32 683565275, %v2378
  %v2382 = vshrl.u32 2475754826, %v2379
  %v2383 = vor.u32 %v2381, %v2382
  %v2384 = vshll.u32 2475754826, %v2378
  %v2385 = vshrl.u32 2131351028, %v2379
  %v2386 = vor.u32 %v2384, %v2385
  %v2387 = vshll.u32 2131351028, %v2378
  %v2388 = vshrl.u32 2102212464, %v2379
  %v2389 = vor.u32 %v2387, %v2388
  %v2390 = vshll.u32 2102212464, %v2378
  %v2391 = vshrl.u32 920167782, %v2379
  %v2392 = vor.u32 %v2390, %v2391
  %v2393 = vshll.u32 920167782, %v2378
  %v2394 = vshrl.u32 1326507024, %v2379
  %v2395 = vor.u32 %v2393, %v2394
  %vm2396 = vcmp.lt.s32.totalorder %v2377, 1
  %vm2397 = vcmp.lt.s32.totalorder %v2377, 2
  %vm2398 = vcmp.lt.s32.totalorder %v2377, 3
  %vm2399 = vcmp.lt.s32.totalorder %v2377, 4
  %v2400 = vsel %vm2396, %v2380, %v2383
  %v2401 = vsel %vm2399, %v2389, 2102212464
  %v2402 = vsel %vm2398, %v2386, %v2401
  %v2403 = vsel %vm2397, %v2400, %v2402
  %v2404 = vsel %vm2396, %v2383, %v2386
  %v2405 = vsel %vm2399, %v2392, 920167782
  %v2406 = vsel %vm2398, %v2389, %v2405
  %v2407 = vsel %vm2397, %v2404, %v2406
  %v2408 = vsel %vm2396, %v2386, %v2389
  %v2409 = vsel %vm2399, %v2395, 1326507024
  %v2410 = vsel %vm2398, %v2392, %v2409
  %v2411 = vsel %vm2397, %v2408, %v2410
  %v2412 = vshll.u32 %v2372, 8
  %v2413 = vmul.u32.u64.compose %v2412, %v2411
  %v2414 = vextract.low.u32 %v2413
  %v2415 = vextract.high.u32 %v2413
  %v2416 = vmul.u32.u64.compose %v2412, %v2407
  %v2417 = vextract.low.u32 %v2416
  %v2418 = vextract.high.u32 %v2416
  %v2419 = vmul.u32 %v2412, %v2403
  %v2420 = vadd.s32 %v2415, %v2417
  %vm2421 = vc.u32 %v2415, %v2417
  %v2422 = vadd.s32 %v2418, 1
  %v2423 = vsel %vm2421, %v2422, %v2418
  %v2424 = vadd.s32 %v2419, %v2423
  %v2425 = vadd.s32 %v2424, 536870912
  %v2426 = vshrl.u32 %v2425, 30
  %v2427 = vshll.u32 %v2426, 30
  %v2428 = vsub.s32 %v2424, %v2427
  %vm2429 = vcmp.lt.s32.totalorder %v2428, 0
  %v2430 = vsub.s32 0, %v2428
  %v2431 = vsel %vm2429, %v2430, %v2428
  %v2432 = vclz %v2431
  %v2433 = vsub.s32 %v2432, 2
  %vm2434 = vcmp.gt.s32.totalorder 0, %v2433
  %v2435 = vsel %vm2434, 0, %v2433
  %v2436 = vsub.s32 32, %v2435
  %v2437 = vshll.u32 %v2428, %v2435
  %v2438 = vshrl.u32 %v2420, %v2436
  %v2439 = vor.u32 %v2437, %v2438
  %v2440 = vsub.s32 4294967266, %v2435
  %v2441 = vadd.s32 %v2440, 127
  %v2442 = vshll.u32 %v2441, 23
  %v2443 = vor.u32 4788187, %v2442
  %v2444 = vand.u32 2147483647, %v2443
  %v2446 = vcvt.s32.f32 %v2439
  %v2447 = vmul.f32 %v2446, %v2444
  %v2448 = vxor.u32 %v2447, 2147483648
  %v2449 = vsel %vm2366, %v2448, %v2447
  %v2450 = vsub.s32 4, %v2426
  %v2451 = vsel %vm2366, %v2450, %v2426
  %v2452 = vsel %vm2365, %v478, %v2449
  %v2453 = vsel %vm2365, 0, %v2451
  %v2454 = vcosq.f32.pop %v2452
  %v2455 = vsinq.f32.pop %v2452
  %vm2456 = vweird.f32 %v478
  %v2457 = vadd.s32 %v2453, 3
  %v2458 = vand.u32 %v2457, 3
  %vm2459 = vcmp.lt.s32.totalorder %v2458, 2
  %vm2460 = vcmp.eq.s32.totalorder %v2458, 0
  %v2461 = vxor.u32 %v2455, 2147483648
  %v2462 = vsel %vm2460, %v2454, %v2461
  %vm2463 = vcmp.eq.s32.totalorder %v2458, 2
  %v2464 = vxor.u32 %v2454, 2147483648
  %v2465 = vsel %vm2463, %v2464, %v2455
  %v2466 = vsel %vm2459, %v2462, %v2465
  %v2467 = vsel %vm2456, nan, %v2466
  %v2468 = vand.u32 2147483647, %v479
  %vm2469 = vcmp.le.f32.partialorder %v2468, 0.7853982
  %vm2470 = vcmp.lt.s32.totalorder %v479, 0
  %v2471 = vand.u32 %v479, 2139095040
  %v2472 = vshrl.u32 %v2471, 23
  %v2473 = vsub.s32 %v2472, 127
  %v2474 = vand.u32 2147483647, %v479
  %v2475 = vand.u32 %v2474, 8388607
  %v2476 = vor.u32 %v2475, 8388608
  %v2477 = vsub.s32 0, %v2476
  %v2478 = vadd.s32 %v2473, 1
  %vm2479 = vcmp.gt.s32.totalorder %v2478, 0
  %v2480 = vsel %vm2479, %v2478, 0
  %v2481 = vshrl.u32 %v2480, 5
  %v2482 = vand.u32 %v2480, 31
  %v2483 = vsub.s32 32, %v2482
  %v2484 = vshrl.u32 683565275, %v2483
  %v2485 = vshll.u32 683565275, %v2482
  %v2486 = vshrl.u32 2475754826, %v2483
  %v2487 = vor.u32 %v2485, %v2486
  %v2488 = vshll.u32 2475754826, %v2482
  %v2489 = vshrl.u32 2131351028, %v2483
  %v2490 = vor.u32 %v2488, %v2489
  %v2491 = vshll.u32 2131351028, %v2482
  %v2492 = vshrl.u32 2102212464, %v2483
  %v2493 = vor.u32 %v2491, %v2492
  %v2494 = vshll.u32 2102212464, %v2482
  %v2495 = vshrl.u32 920167782, %v2483
  %v2496 = vor.u32 %v2494, %v2495
  %v2497 = vshll.u32 920167782, %v2482
  %v2498 = vshrl.u32 1326507024, %v2483
  %v2499 = vor.u32 %v2497, %v2498
  %vm2500 = vcmp.lt.s32.totalorder %v2481, 1
  %vm2501 = vcmp.lt.s32.totalorder %v2481, 2
  %vm2502 = vcmp.lt.s32.totalorder %v2481, 3
  %vm2503 = vcmp.lt.s32.totalorder %v2481, 4
  %v2504 = vsel %vm2500, %v2484, %v2487
  %v2505 = vsel %vm2503, %v2493, 2102212464
  %v2506 = vsel %vm2502, %v2490, %v2505
  %v2507 = vsel %vm2501, %v2504, %v2506
  %v2508 = vsel %vm2500, %v2487, %v2490
  %v2509 = vsel %vm2503, %v2496, 920167782
  %v2510 = vsel %vm2502, %v2493, %v2509
  %v2511 = vsel %vm2501, %v2508, %v2510
  %v2512 = vsel %vm2500, %v2490, %v2493
  %v2513 = vsel %vm2503, %v2499, 1326507024
  %v2514 = vsel %vm2502, %v2496, %v2513
  %v2515 = vsel %vm2501, %v2512, %v2514
  %v2516 = vshll.u32 %v2476, 8
  %v2517 = vmul.u32.u64.compose %v2516, %v2515
  %v2518 = vextract.low.u32 %v2517
  %v2519 = vextract.high.u32 %v2517
  %v2520 = vmul.u32.u64.compose %v2516, %v2511
  %v2521 = vextract.low.u32 %v2520
  %v2522 = vextract.high.u32 %v2520
  %v2523 = vmul.u32 %v2516, %v2507
  %v2524 = vadd.s32 %v2519, %v2521
  %vm2525 = vc.u32 %v2519, %v2521
  %v2526 = vadd.s32 %v2522, 1
  %v2527 = vsel %vm2525, %v2526, %v2522
  %v2528 = vadd.s32 %v2523, %v2527
  %v2529 = vadd.s32 %v2528, 536870912
  %v2530 = vshrl.u32 %v2529, 30
  %v2531 = vshll.u32 %v2530, 30
  %v2532 = vsub.s32 %v2528, %v2531
  %vm2533 = vcmp.lt.s32.totalorder %v2532, 0
  %v2534 = vsub.s32 0, %v2532
  %v2535 = vsel %vm2533, %v2534, %v2532
  %v2536 = vclz %v2535
  %v2537 = vsub.s32 %v2536, 2
  %vm2538 = vcmp.gt.s32.totalorder 0, %v2537
  %v2539 = vsel %vm2538, 0, %v2537
  %v2540 = vsub.s32 32, %v2539
  %v2541 = vshll.u32 %v2532, %v2539
  %v2542 = vshrl.u32 %v2524, %v2540
  %v2543 = vor.u32 %v2541, %v2542
  %v2544 = vsub.s32 4294967266, %v2539
  %v2545 = vadd.s32 %v2544, 127
  %v2546 = vshll.u32 %v2545, 23
  %v2547 = vor.u32 4788187, %v2546
  %v2548 = vand.u32 2147483647, %v2547
  %v2550 = vcvt.s32.f32 %v2543
  %v2551 = vmul.f32 %v2550, %v2548
  %v2552 = vxor.u32 %v2551, 2147483648
  %v2553 = vsel %vm2470, %v2552, %v2551
  %v2554 = vsub.s32 4, %v2530
  %v2555 = vsel %vm2470, %v2554, %v2530
  %v2556 = vsel %vm2469, %v479, %v2553
  %v2557 = vsel %vm2469, 0, %v2555
  %v2558 = vcosq.f32.pop %v2556
  %v2559 = vsinq.f32.pop %v2556
  %vm2560 = vweird.f32 %v479
  %v2561 = vadd.s32 %v2557, 3
  %v2562 = vand.u32 %v2561, 3
  %vm2563 = vcmp.lt.s32.totalorder %v2562, 2
  %vm2564 = vcmp.eq.s32.totalorder %v2562, 0
  %v2565 = vxor.u32 %v2559, 2147483648
  %v2566 = vsel %vm2564, %v2558, %v2565
  %vm2567 = vcmp.eq.s32.totalorder %v2562, 2
  %v2568 = vxor.u32 %v2558, 2147483648
  %v2569 = vsel %vm2567, %v2568, %v2559
  %v2570 = vsel %vm2563, %v2566, %v2569
  %v2571 = vsel %vm2560, nan, %v2570
  %v2572 = vand.u32 2147483647, %v480
  %vm2573 = vcmp.le.f32.partialorder %v2572, 0.7853982
  %vm2574 = vcmp.lt.s32.totalorder %v480, 0
  %v2575 = vand.u32 %v480, 2139095040
  %v2576 = vshrl.u32 %v2575, 23
  %v2577 = vsub.s32 %v2576, 127
  %v2578 = vand.u32 2147483647, %v480
  %v2579 = vand.u32 %v2578, 8388607
  %v2580 = vor.u32 %v2579, 8388608
  %v2581 = vsub.s32 0, %v2580
  %v2582 = vadd.s32 %v2577, 1
  %vm2583 = vcmp.gt.s32.totalorder %v2582, 0
  %v2584 = vsel %vm2583, %v2582, 0
  %v2585 = vshrl.u32 %v2584, 5
  %v2586 = vand.u32 %v2584, 31
  %v2587 = vsub.s32 32, %v2586
  %v2588 = vshrl.u32 683565275, %v2587
  %v2589 = vshll.u32 683565275, %v2586
  %v2590 = vshrl.u32 2475754826, %v2587
  %v2591 = vor.u32 %v2589, %v2590
  %v2592 = vshll.u32 2475754826, %v2586
  %v2593 = vshrl.u32 2131351028, %v2587
  %v2594 = vor.u32 %v2592, %v2593
  %v2595 = vshll.u32 2131351028, %v2586
  %v2596 = vshrl.u32 2102212464, %v2587
  %v2597 = vor.u32 %v2595, %v2596
  %v2598 = vshll.u32 2102212464, %v2586
  %v2599 = vshrl.u32 920167782, %v2587
  %v2600 = vor.u32 %v2598, %v2599
  %v2601 = vshll.u32 920167782, %v2586
  %v2602 = vshrl.u32 1326507024, %v2587
  %v2603 = vor.u32 %v2601, %v2602
  %vm2604 = vcmp.lt.s32.totalorder %v2585, 1
  %vm2605 = vcmp.lt.s32.totalorder %v2585, 2
  %vm2606 = vcmp.lt.s32.totalorder %v2585, 3
  %vm2607 = vcmp.lt.s32.totalorder %v2585, 4
  %v2608 = vsel %vm2604, %v2588, %v2591
  %v2609 = vsel %vm2607, %v2597, 2102212464
  %v2610 = vsel %vm2606, %v2594, %v2609
  %v2611 = vsel %vm2605, %v2608, %v2610
  %v2612 = vsel %vm2604, %v2591, %v2594
  %v2613 = vsel %vm2607, %v2600, 920167782
  %v2614 = vsel %vm2606, %v2597, %v2613
  %v2615 = vsel %vm2605, %v2612, %v2614
  %v2616 = vsel %vm2604, %v2594, %v2597
  %v2617 = vsel %vm2607, %v2603, 1326507024
  %v2618 = vsel %vm2606, %v2600, %v2617
  %v2619 = vsel %vm2605, %v2616, %v2618
  %v2620 = vshll.u32 %v2580, 8
  %v2621 = vmul.u32.u64.compose %v2620, %v2619
  %v2622 = vextract.low.u32 %v2621
  %v2623 = vextract.high.u32 %v2621
  %v2624 = vmul.u32.u64.compose %v2620, %v2615
  %v2625 = vextract.low.u32 %v2624
  %v2626 = vextract.high.u32 %v2624
  %v2627 = vmul.u32 %v2620, %v2611
  %v2628 = vadd.s32 %v2623, %v2625
  %vm2629 = vc.u32 %v2623, %v2625
  %v2630 = vadd.s32 %v2626, 1
  %v2631 = vsel %vm2629, %v2630, %v2626
  %v2632 = vadd.s32 %v2627, %v2631
  %v2633 = vadd.s32 %v2632, 536870912
  %v2634 = vshrl.u32 %v2633, 30
  %v2635 = vshll.u32 %v2634, 30
  %v2636 = vsub.s32 %v2632, %v2635
  %vm2637 = vcmp.lt.s32.totalorder %v2636, 0
  %v2638 = vsub.s32 0, %v2636
  %v2639 = vsel %vm2637, %v2638, %v2636
  %v2640 = vclz %v2639
  %v2641 = vsub.s32 %v2640, 2
  %vm2642 = vcmp.gt.s32.totalorder 0, %v2641
  %v2643 = vsel %vm2642, 0, %v2641
  %v2644 = vsub.s32 32, %v2643
  %v2645 = vshll.u32 %v2636, %v2643
  %v2646 = vshrl.u32 %v2628, %v2644
  %v2647 = vor.u32 %v2645, %v2646
  %v2648 = vsub.s32 4294967266, %v2643
  %v2649 = vadd.s32 %v2648, 127
  %v2650 = vshll.u32 %v2649, 23
  %v2651 = vor.u32 4788187, %v2650
  %v2652 = vand.u32 2147483647, %v2651
  %v2654 = vcvt.s32.f32 %v2647
  %v2655 = vmul.f32 %v2654, %v2652
  %v2656 = vxor.u32 %v2655, 2147483648
  %v2657 = vsel %vm2574, %v2656, %v2655
  %v2658 = vsub.s32 4, %v2634
  %v2659 = vsel %vm2574, %v2658, %v2634
  %v2660 = vsel %vm2573, %v480, %v2657
  %v2661 = vsel %vm2573, 0, %v2659
  %v2662 = vcosq.f32.pop %v2660
  %v2663 = vsinq.f32.pop %v2660
  %vm2664 = vweird.f32 %v480
  %v2665 = vadd.s32 %v2661, 3
  %v2666 = vand.u32 %v2665, 3
  %vm2667 = vcmp.lt.s32.totalorder %v2666, 2
  %vm2668 = vcmp.eq.s32.totalorder %v2666, 0
  %v2669 = vxor.u32 %v2663, 2147483648
  %v2670 = vsel %vm2668, %v2662, %v2669
  %vm2671 = vcmp.eq.s32.totalorder %v2666, 2
  %v2672 = vxor.u32 %v2662, 2147483648
  %v2673 = vsel %vm2671, %v2672, %v2663
  %v2674 = vsel %vm2667, %v2670, %v2673
  %v2675 = vsel %vm2664, nan, %v2674
  %v2676 = vand.u32 2147483647, %v481
  %vm2677 = vcmp.le.f32.partialorder %v2676, 0.7853982
  %vm2678 = vcmp.lt.s32.totalorder %v481, 0
  %v2679 = vand.u32 %v481, 2139095040
  %v2680 = vshrl.u32 %v2679, 23
  %v2681 = vsub.s32 %v2680, 127
  %v2682 = vand.u32 2147483647, %v481
  %v2683 = vand.u32 %v2682, 8388607
  %v2684 = vor.u32 %v2683, 8388608
  %v2685 = vsub.s32 0, %v2684
  %v2686 = vadd.s32 %v2681, 1
  %vm2687 = vcmp.gt.s32.totalorder %v2686, 0
  %v2688 = vsel %vm2687, %v2686, 0
  %v2689 = vshrl.u32 %v2688, 5
  %v2690 = vand.u32 %v2688, 31
  %v2691 = vsub.s32 32, %v2690
  %v2692 = vshrl.u32 683565275, %v2691
  %v2693 = vshll.u32 683565275, %v2690
  %v2694 = vshrl.u32 2475754826, %v2691
  %v2695 = vor.u32 %v2693, %v2694
  %v2696 = vshll.u32 2475754826, %v2690
  %v2697 = vshrl.u32 2131351028, %v2691
  %v2698 = vor.u32 %v2696, %v2697
  %v2699 = vshll.u32 2131351028, %v2690
  %v2700 = vshrl.u32 2102212464, %v2691
  %v2701 = vor.u32 %v2699, %v2700
  %v2702 = vshll.u32 2102212464, %v2690
  %v2703 = vshrl.u32 920167782, %v2691
  %v2704 = vor.u32 %v2702, %v2703
  %v2705 = vshll.u32 920167782, %v2690
  %v2706 = vshrl.u32 1326507024, %v2691
  %v2707 = vor.u32 %v2705, %v2706
  %vm2708 = vcmp.lt.s32.totalorder %v2689, 1
  %vm2709 = vcmp.lt.s32.totalorder %v2689, 2
  %vm2710 = vcmp.lt.s32.totalorder %v2689, 3
  %vm2711 = vcmp.lt.s32.totalorder %v2689, 4
  %v2712 = vsel %vm2708, %v2692, %v2695
  %v2713 = vsel %vm2711, %v2701, 2102212464
  %v2714 = vsel %vm2710, %v2698, %v2713
  %v2715 = vsel %vm2709, %v2712, %v2714
  %v2716 = vsel %vm2708, %v2695, %v2698
  %v2717 = vsel %vm2711, %v2704, 920167782
  %v2718 = vsel %vm2710, %v2701, %v2717
  %v2719 = vsel %vm2709, %v2716, %v2718
  %v2720 = vsel %vm2708, %v2698, %v2701
  %v2721 = vsel %vm2711, %v2707, 1326507024
  %v2722 = vsel %vm2710, %v2704, %v2721
  %v2723 = vsel %vm2709, %v2720, %v2722
  %v2724 = vshll.u32 %v2684, 8
  %v2725 = vmul.u32.u64.compose %v2724, %v2723
  %v2726 = vextract.low.u32 %v2725
  %v2727 = vextract.high.u32 %v2725
  %v2728 = vmul.u32.u64.compose %v2724, %v2719
  %v2729 = vextract.low.u32 %v2728
  %v2730 = vextract.high.u32 %v2728
  %v2731 = vmul.u32 %v2724, %v2715
  %v2732 = vadd.s32 %v2727, %v2729
  %vm2733 = vc.u32 %v2727, %v2729
  %v2734 = vadd.s32 %v2730, 1
  %v2735 = vsel %vm2733, %v2734, %v2730
  %v2736 = vadd.s32 %v2731, %v2735
  %v2737 = vadd.s32 %v2736, 536870912
  %v2738 = vshrl.u32 %v2737, 30
  %v2739 = vshll.u32 %v2738, 30
  %v2740 = vsub.s32 %v2736, %v2739
  %vm2741 = vcmp.lt.s32.totalorder %v2740, 0
  %v2742 = vsub.s32 0, %v2740
  %v2743 = vsel %vm2741, %v2742, %v2740
  %v2744 = vclz %v2743
  %v2745 = vsub.s32 %v2744, 2
  %vm2746 = vcmp.gt.s32.totalorder 0, %v2745
  %v2747 = vsel %vm2746, 0, %v2745
  %v2748 = vsub.s32 32, %v2747
  %v2749 = vshll.u32 %v2740, %v2747
  %v2750 = vshrl.u32 %v2732, %v2748
  %v2751 = vor.u32 %v2749, %v2750
  %v2752 = vsub.s32 4294967266, %v2747
  %v2753 = vadd.s32 %v2752, 127
  %v2754 = vshll.u32 %v2753, 23
  %v2755 = vor.u32 4788187, %v2754
  %v2756 = vand.u32 2147483647, %v2755
  %v2758 = vcvt.s32.f32 %v2751
  %v2759 = vmul.f32 %v2758, %v2756
  %v2760 = vxor.u32 %v2759, 2147483648
  %v2761 = vsel %vm2678, %v2760, %v2759
  %v2762 = vsub.s32 4, %v2738
  %v2763 = vsel %vm2678, %v2762, %v2738
  %v2764 = vsel %vm2677, %v481, %v2761
  %v2765 = vsel %vm2677, 0, %v2763
  %v2766 = vcosq.f32.pop %v2764
  %v2767 = vsinq.f32.pop %v2764
  %vm2768 = vweird.f32 %v481
  %v2769 = vadd.s32 %v2765, 3
  %v2770 = vand.u32 %v2769, 3
  %vm2771 = vcmp.lt.s32.totalorder %v2770, 2
  %vm2772 = vcmp.eq.s32.totalorder %v2770, 0
  %v2773 = vxor.u32 %v2767, 2147483648
  %v2774 = vsel %vm2772, %v2766, %v2773
  %vm2775 = vcmp.eq.s32.totalorder %v2770, 2
  %v2776 = vxor.u32 %v2766, 2147483648
  %v2777 = vsel %vm2775, %v2776, %v2767
  %v2778 = vsel %vm2771, %v2774, %v2777
  %v2779 = vsel %vm2768, nan, %v2778
  %v2780 = vand.u32 2147483647, %v482
  %vm2781 = vcmp.le.f32.partialorder %v2780, 0.7853982
  %vm2782 = vcmp.lt.s32.totalorder %v482, 0
  %v2783 = vand.u32 %v482, 2139095040
  %v2784 = vshrl.u32 %v2783, 23
  %v2785 = vsub.s32 %v2784, 127
  %v2786 = vand.u32 2147483647, %v482
  %v2787 = vand.u32 %v2786, 8388607
  %v2788 = vor.u32 %v2787, 8388608
  %v2789 = vsub.s32 0, %v2788
  %v2790 = vadd.s32 %v2785, 1
  %vm2791 = vcmp.gt.s32.totalorder %v2790, 0
  %v2792 = vsel %vm2791, %v2790, 0
  %v2793 = vshrl.u32 %v2792, 5
  %v2794 = vand.u32 %v2792, 31
  %v2795 = vsub.s32 32, %v2794
  %v2796 = vshrl.u32 683565275, %v2795
  %v2797 = vshll.u32 683565275, %v2794
  %v2798 = vshrl.u32 2475754826, %v2795
  %v2799 = vor.u32 %v2797, %v2798
  %v2800 = vshll.u32 2475754826, %v2794
  %v2801 = vshrl.u32 2131351028, %v2795
  %v2802 = vor.u32 %v2800, %v2801
  %v2803 = vshll.u32 2131351028, %v2794
  %v2804 = vshrl.u32 2102212464, %v2795
  %v2805 = vor.u32 %v2803, %v2804
  %v2806 = vshll.u32 2102212464, %v2794
  %v2807 = vshrl.u32 920167782, %v2795
  %v2808 = vor.u32 %v2806, %v2807
  %v2809 = vshll.u32 920167782, %v2794
  %v2810 = vshrl.u32 1326507024, %v2795
  %v2811 = vor.u32 %v2809, %v2810
  %vm2812 = vcmp.lt.s32.totalorder %v2793, 1
  %vm2813 = vcmp.lt.s32.totalorder %v2793, 2
  %vm2814 = vcmp.lt.s32.totalorder %v2793, 3
  %vm2815 = vcmp.lt.s32.totalorder %v2793, 4
  %v2816 = vsel %vm2812, %v2796, %v2799
  %v2817 = vsel %vm2815, %v2805, 2102212464
  %v2818 = vsel %vm2814, %v2802, %v2817
  %v2819 = vsel %vm2813, %v2816, %v2818
  %v2820 = vsel %vm2812, %v2799, %v2802
  %v2821 = vsel %vm2815, %v2808, 920167782
  %v2822 = vsel %vm2814, %v2805, %v2821
  %v2823 = vsel %vm2813, %v2820, %v2822
  %v2824 = vsel %vm2812, %v2802, %v2805
  %v2825 = vsel %vm2815, %v2811, 1326507024
  %v2826 = vsel %vm2814, %v2808, %v2825
  %v2827 = vsel %vm2813, %v2824, %v2826
  %v2828 = vshll.u32 %v2788, 8
  %v2829 = vmul.u32.u64.compose %v2828, %v2827
  %v2830 = vextract.low.u32 %v2829
  %v2831 = vextract.high.u32 %v2829
  %v2832 = vmul.u32.u64.compose %v2828, %v2823
  %v2833 = vextract.low.u32 %v2832
  %v2834 = vextract.high.u32 %v2832
  %v2835 = vmul.u32 %v2828, %v2819
  %v2836 = vadd.s32 %v2831, %v2833
  %vm2837 = vc.u32 %v2831, %v2833
  %v2838 = vadd.s32 %v2834, 1
  %v2839 = vsel %vm2837, %v2838, %v2834
  %v2840 = vadd.s32 %v2835, %v2839
  %v2841 = vadd.s32 %v2840, 536870912
  %v2842 = vshrl.u32 %v2841, 30
  %v2843 = vshll.u32 %v2842, 30
  %v2844 = vsub.s32 %v2840, %v2843
  %vm2845 = vcmp.lt.s32.totalorder %v2844, 0
  %v2846 = vsub.s32 0, %v2844
  %v2847 = vsel %vm2845, %v2846, %v2844
  %v2848 = vclz %v2847
  %v2849 = vsub.s32 %v2848, 2
  %vm2850 = vcmp.gt.s32.totalorder 0, %v2849
  %v2851 = vsel %vm2850, 0, %v2849
  %v2852 = vsub.s32 32, %v2851
  %v2853 = vshll.u32 %v2844, %v2851
  %v2854 = vshrl.u32 %v2836, %v2852
  %v2855 = vor.u32 %v2853, %v2854
  %v2856 = vsub.s32 4294967266, %v2851
  %v2857 = vadd.s32 %v2856, 127
  %v2858 = vshll.u32 %v2857, 23
  %v2859 = vor.u32 4788187, %v2858
  %v2860 = vand.u32 2147483647, %v2859
  %v2862 = vcvt.s32.f32 %v2855
  %v2863 = vmul.f32 %v2862, %v2860
  %v2864 = vxor.u32 %v2863, 2147483648
  %v2865 = vsel %vm2782, %v2864, %v2863
  %v2866 = vsub.s32 4, %v2842
  %v2867 = vsel %vm2782, %v2866, %v2842
  %v2868 = vsel %vm2781, %v482, %v2865
  %v2869 = vsel %vm2781, 0, %v2867
  %v2870 = vcosq.f32.pop %v2868
  %v2871 = vsinq.f32.pop %v2868
  %vm2872 = vweird.f32 %v482
  %v2873 = vadd.s32 %v2869, 3
  %v2874 = vand.u32 %v2873, 3
  %vm2875 = vcmp.lt.s32.totalorder %v2874, 2
  %vm2876 = vcmp.eq.s32.totalorder %v2874, 0
  %v2877 = vxor.u32 %v2871, 2147483648
  %v2878 = vsel %vm2876, %v2870, %v2877
  %vm2879 = vcmp.eq.s32.totalorder %v2874, 2
  %v2880 = vxor.u32 %v2870, 2147483648
  %v2881 = vsel %vm2879, %v2880, %v2871
  %v2882 = vsel %vm2875, %v2878, %v2881
  %v2883 = vsel %vm2872, nan, %v2882
  %v2884 = vand.u32 2147483647, %v483
  %vm2885 = vcmp.le.f32.partialorder %v2884, 0.7853982
  %vm2886 = vcmp.lt.s32.totalorder %v483, 0
  %v2887 = vand.u32 %v483, 2139095040
  %v2888 = vshrl.u32 %v2887, 23
  %v2889 = vsub.s32 %v2888, 127
  %v2890 = vand.u32 2147483647, %v483
  %v2891 = vand.u32 %v2890, 8388607
  %v2892 = vor.u32 %v2891, 8388608
  %v2893 = vsub.s32 0, %v2892
  %v2894 = vadd.s32 %v2889, 1
  %vm2895 = vcmp.gt.s32.totalorder %v2894, 0
  %v2896 = vsel %vm2895, %v2894, 0
  %v2897 = vshrl.u32 %v2896, 5
  %v2898 = vand.u32 %v2896, 31
  %v2899 = vsub.s32 32, %v2898
  %v2900 = vshrl.u32 683565275, %v2899
  %v2901 = vshll.u32 683565275, %v2898
  %v2902 = vshrl.u32 2475754826, %v2899
  %v2903 = vor.u32 %v2901, %v2902
  %v2904 = vshll.u32 2475754826, %v2898
  %v2905 = vshrl.u32 2131351028, %v2899
  %v2906 = vor.u32 %v2904, %v2905
  %v2907 = vshll.u32 2131351028, %v2898
  %v2908 = vshrl.u32 2102212464, %v2899
  %v2909 = vor.u32 %v2907, %v2908
  %v2910 = vshll.u32 2102212464, %v2898
  %v2911 = vshrl.u32 920167782, %v2899
  %v2912 = vor.u32 %v2910, %v2911
  %v2913 = vshll.u32 920167782, %v2898
  %v2914 = vshrl.u32 1326507024, %v2899
  %v2915 = vor.u32 %v2913, %v2914
  %vm2916 = vcmp.lt.s32.totalorder %v2897, 1
  %vm2917 = vcmp.lt.s32.totalorder %v2897, 2
  %vm2918 = vcmp.lt.s32.totalorder %v2897, 3
  %vm2919 = vcmp.lt.s32.totalorder %v2897, 4
  %v2920 = vsel %vm2916, %v2900, %v2903
  %v2921 = vsel %vm2919, %v2909, 2102212464
  %v2922 = vsel %vm2918, %v2906, %v2921
  %v2923 = vsel %vm2917, %v2920, %v2922
  %v2924 = vsel %vm2916, %v2903, %v2906
  %v2925 = vsel %vm2919, %v2912, 920167782
  %v2926 = vsel %vm2918, %v2909, %v2925
  %v2927 = vsel %vm2917, %v2924, %v2926
  %v2928 = vsel %vm2916, %v2906, %v2909
  %v2929 = vsel %vm2919, %v2915, 1326507024
  %v2930 = vsel %vm2918, %v2912, %v2929
  %v2931 = vsel %vm2917, %v2928, %v2930
  %v2932 = vshll.u32 %v2892, 8
  %v2933 = vmul.u32.u64.compose %v2932, %v2931
  %v2934 = vextract.low.u32 %v2933
  %v2935 = vextract.high.u32 %v2933
  %v2936 = vmul.u32.u64.compose %v2932, %v2927
  %v2937 = vextract.low.u32 %v2936
  %v2938 = vextract.high.u32 %v2936
  %v2939 = vmul.u32 %v2932, %v2923
  %v2940 = vadd.s32 %v2935, %v2937
  %vm2941 = vc.u32 %v2935, %v2937
  %v2942 = vadd.s32 %v2938, 1
  %v2943 = vsel %vm2941, %v2942, %v2938
  %v2944 = vadd.s32 %v2939, %v2943
  %v2945 = vadd.s32 %v2944, 536870912
  %v2946 = vshrl.u32 %v2945, 30
  %v2947 = vshll.u32 %v2946, 30
  %v2948 = vsub.s32 %v2944, %v2947
  %vm2949 = vcmp.lt.s32.totalorder %v2948, 0
  %v2950 = vsub.s32 0, %v2948
  %v2951 = vsel %vm2949, %v2950, %v2948
  %v2952 = vclz %v2951
  %v2953 = vsub.s32 %v2952, 2
  %vm2954 = vcmp.gt.s32.totalorder 0, %v2953
  %v2955 = vsel %vm2954, 0, %v2953
  %v2956 = vsub.s32 32, %v2955
  %v2957 = vshll.u32 %v2948, %v2955
  %v2958 = vshrl.u32 %v2940, %v2956
  %v2959 = vor.u32 %v2957, %v2958
  %v2960 = vsub.s32 4294967266, %v2955
  %v2961 = vadd.s32 %v2960, 127
  %v2962 = vshll.u32 %v2961, 23
  %v2963 = vor.u32 4788187, %v2962
  %v2964 = vand.u32 2147483647, %v2963
  %v2966 = vcvt.s32.f32 %v2959
  %v2967 = vmul.f32 %v2966, %v2964
  %v2968 = vxor.u32 %v2967, 2147483648
  %v2969 = vsel %vm2886, %v2968, %v2967
  %v2970 = vsub.s32 4, %v2946
  %v2971 = vsel %vm2886, %v2970, %v2946
  %v2972 = vsel %vm2885, %v483, %v2969
  %v2973 = vsel %vm2885, 0, %v2971
  %v2974 = vcosq.f32.pop %v2972
  %v2975 = vsinq.f32.pop %v2972
  %vm2976 = vweird.f32 %v483
  %v2977 = vadd.s32 %v2973, 3
  %v2978 = vand.u32 %v2977, 3
  %vm2979 = vcmp.lt.s32.totalorder %v2978, 2
  %vm2980 = vcmp.eq.s32.totalorder %v2978, 0
  %v2981 = vxor.u32 %v2975, 2147483648
  %v2982 = vsel %vm2980, %v2974, %v2981
  %vm2983 = vcmp.eq.s32.totalorder %v2978, 2
  %v2984 = vxor.u32 %v2974, 2147483648
  %v2985 = vsel %vm2983, %v2984, %v2975
  %v2986 = vsel %vm2979, %v2982, %v2985
  %v2987 = vsel %vm2976, nan, %v2986
  %v2988 = vand.u32 2147483647, %v484
  %vm2989 = vcmp.le.f32.partialorder %v2988, 0.7853982
  %vm2990 = vcmp.lt.s32.totalorder %v484, 0
  %v2991 = vand.u32 %v484, 2139095040
  %v2992 = vshrl.u32 %v2991, 23
  %v2993 = vsub.s32 %v2992, 127
  %v2994 = vand.u32 2147483647, %v484
  %v2995 = vand.u32 %v2994, 8388607
  %v2996 = vor.u32 %v2995, 8388608
  %v2997 = vsub.s32 0, %v2996
  %v2998 = vadd.s32 %v2993, 1
  %vm2999 = vcmp.gt.s32.totalorder %v2998, 0
  %v3000 = vsel %vm2999, %v2998, 0
  %v3001 = vshrl.u32 %v3000, 5
  %v3002 = vand.u32 %v3000, 31
  %v3003 = vsub.s32 32, %v3002
  %v3004 = vshrl.u32 683565275, %v3003
  %v3005 = vshll.u32 683565275, %v3002
  %v3006 = vshrl.u32 2475754826, %v3003
  %v3007 = vor.u32 %v3005, %v3006
  %v3008 = vshll.u32 2475754826, %v3002
  %v3009 = vshrl.u32 2131351028, %v3003
  %v3010 = vor.u32 %v3008, %v3009
  %v3011 = vshll.u32 2131351028, %v3002
  %v3012 = vshrl.u32 2102212464, %v3003
  %v3013 = vor.u32 %v3011, %v3012
  %v3014 = vshll.u32 2102212464, %v3002
  %v3015 = vshrl.u32 920167782, %v3003
  %v3016 = vor.u32 %v3014, %v3015
  %v3017 = vshll.u32 920167782, %v3002
  %v3018 = vshrl.u32 1326507024, %v3003
  %v3019 = vor.u32 %v3017, %v3018
  %vm3020 = vcmp.lt.s32.totalorder %v3001, 1
  %vm3021 = vcmp.lt.s32.totalorder %v3001, 2
  %vm3022 = vcmp.lt.s32.totalorder %v3001, 3
  %vm3023 = vcmp.lt.s32.totalorder %v3001, 4
  %v3024 = vsel %vm3020, %v3004, %v3007
  %v3025 = vsel %vm3023, %v3013, 2102212464
  %v3026 = vsel %vm3022, %v3010, %v3025
  %v3027 = vsel %vm3021, %v3024, %v3026
  %v3028 = vsel %vm3020, %v3007, %v3010
  %v3029 = vsel %vm3023, %v3016, 920167782
  %v3030 = vsel %vm3022, %v3013, %v3029
  %v3031 = vsel %vm3021, %v3028, %v3030
  %v3032 = vsel %vm3020, %v3010, %v3013
  %v3033 = vsel %vm3023, %v3019, 1326507024
  %v3034 = vsel %vm3022, %v3016, %v3033
  %v3035 = vsel %vm3021, %v3032, %v3034
  %v3036 = vshll.u32 %v2996, 8
  %v3037 = vmul.u32.u64.compose %v3036, %v3035
  %v3038 = vextract.low.u32 %v3037
  %v3039 = vextract.high.u32 %v3037
  %v3040 = vmul.u32.u64.compose %v3036, %v3031
  %v3041 = vextract.low.u32 %v3040
  %v3042 = vextract.high.u32 %v3040
  %v3043 = vmul.u32 %v3036, %v3027
  %v3044 = vadd.s32 %v3039, %v3041
  %vm3045 = vc.u32 %v3039, %v3041
  %v3046 = vadd.s32 %v3042, 1
  %v3047 = vsel %vm3045, %v3046, %v3042
  %v3048 = vadd.s32 %v3043, %v3047
  %v3049 = vadd.s32 %v3048, 536870912
  %v3050 = vshrl.u32 %v3049, 30
  %v3051 = vshll.u32 %v3050, 30
  %v3052 = vsub.s32 %v3048, %v3051
  %vm3053 = vcmp.lt.s32.totalorder %v3052, 0
  %v3054 = vsub.s32 0, %v3052
  %v3055 = vsel %vm3053, %v3054, %v3052
  %v3056 = vclz %v3055
  %v3057 = vsub.s32 %v3056, 2
  %vm3058 = vcmp.gt.s32.totalorder 0, %v3057
  %v3059 = vsel %vm3058, 0, %v3057
  %v3060 = vsub.s32 32, %v3059
  %v3061 = vshll.u32 %v3052, %v3059
  %v3062 = vshrl.u32 %v3044, %v3060
  %v3063 = vor.u32 %v3061, %v3062
  %v3064 = vsub.s32 4294967266, %v3059
  %v3065 = vadd.s32 %v3064, 127
  %v3066 = vshll.u32 %v3065, 23
  %v3067 = vor.u32 4788187, %v3066
  %v3068 = vand.u32 2147483647, %v3067
  %v3070 = vcvt.s32.f32 %v3063
  %v3071 = vmul.f32 %v3070, %v3068
  %v3072 = vxor.u32 %v3071, 2147483648
  %v3073 = vsel %vm2990, %v3072, %v3071
  %v3074 = vsub.s32 4, %v3050
  %v3075 = vsel %vm2990, %v3074, %v3050
  %v3076 = vsel %vm2989, %v484, %v3073
  %v3077 = vsel %vm2989, 0, %v3075
  %v3078 = vcosq.f32.pop %v3076
  %v3079 = vsinq.f32.pop %v3076
  %vm3080 = vweird.f32 %v484
  %v3081 = vadd.s32 %v3077, 3
  %v3082 = vand.u32 %v3081, 3
  %vm3083 = vcmp.lt.s32.totalorder %v3082, 2
  %vm3084 = vcmp.eq.s32.totalorder %v3082, 0
  %v3085 = vxor.u32 %v3079, 2147483648
  %v3086 = vsel %vm3084, %v3078, %v3085
  %vm3087 = vcmp.eq.s32.totalorder %v3082, 2
  %v3088 = vxor.u32 %v3078, 2147483648
  %v3089 = vsel %vm3087, %v3088, %v3079
  %v3090 = vsel %vm3083, %v3086, %v3089
  %v3091 = vsel %vm3080, nan, %v3090
  %v3092 = vand.u32 2147483647, %v485
  %vm3093 = vcmp.le.f32.partialorder %v3092, 0.7853982
  %vm3094 = vcmp.lt.s32.totalorder %v485, 0
  %v3095 = vand.u32 %v485, 2139095040
  %v3096 = vshrl.u32 %v3095, 23
  %v3097 = vsub.s32 %v3096, 127
  %v3098 = vand.u32 2147483647, %v485
  %v3099 = vand.u32 %v3098, 8388607
  %v3100 = vor.u32 %v3099, 8388608
  %v3101 = vsub.s32 0, %v3100
  %v3102 = vadd.s32 %v3097, 1
  %vm3103 = vcmp.gt.s32.totalorder %v3102, 0
  %v3104 = vsel %vm3103, %v3102, 0
  %v3105 = vshrl.u32 %v3104, 5
  %v3106 = vand.u32 %v3104, 31
  %v3107 = vsub.s32 32, %v3106
  %v3108 = vshrl.u32 683565275, %v3107
  %v3109 = vshll.u32 683565275, %v3106
  %v3110 = vshrl.u32 2475754826, %v3107
  %v3111 = vor.u32 %v3109, %v3110
  %v3112 = vshll.u32 2475754826, %v3106
  %v3113 = vshrl.u32 2131351028, %v3107
  %v3114 = vor.u32 %v3112, %v3113
  %v3115 = vshll.u32 2131351028, %v3106
  %v3116 = vshrl.u32 2102212464, %v3107
  %v3117 = vor.u32 %v3115, %v3116
  %v3118 = vshll.u32 2102212464, %v3106
  %v3119 = vshrl.u32 920167782, %v3107
  %v3120 = vor.u32 %v3118, %v3119
  %v3121 = vshll.u32 920167782, %v3106
  %v3122 = vshrl.u32 1326507024, %v3107
  %v3123 = vor.u32 %v3121, %v3122
  %vm3124 = vcmp.lt.s32.totalorder %v3105, 1
  %vm3125 = vcmp.lt.s32.totalorder %v3105, 2
  %vm3126 = vcmp.lt.s32.totalorder %v3105, 3
  %vm3127 = vcmp.lt.s32.totalorder %v3105, 4
  %v3128 = vsel %vm3124, %v3108, %v3111
  %v3129 = vsel %vm3127, %v3117, 2102212464
  %v3130 = vsel %vm3126, %v3114, %v3129
  %v3131 = vsel %vm3125, %v3128, %v3130
  %v3132 = vsel %vm3124, %v3111, %v3114
  %v3133 = vsel %vm3127, %v3120, 920167782
  %v3134 = vsel %vm3126, %v3117, %v3133
  %v3135 = vsel %vm3125, %v3132, %v3134
  %v3136 = vsel %vm3124, %v3114, %v3117
  %v3137 = vsel %vm3127, %v3123, 1326507024
  %v3138 = vsel %vm3126, %v3120, %v3137
  %v3139 = vsel %vm3125, %v3136, %v3138
  %v3140 = vshll.u32 %v3100, 8
  %v3141 = vmul.u32.u64.compose %v3140, %v3139
  %v3142 = vextract.low.u32 %v3141
  %v3143 = vextract.high.u32 %v3141
  %v3144 = vmul.u32.u64.compose %v3140, %v3135
  %v3145 = vextract.low.u32 %v3144
  %v3146 = vextract.high.u32 %v3144
  %v3147 = vmul.u32 %v3140, %v3131
  %v3148 = vadd.s32 %v3143, %v3145
  %vm3149 = vc.u32 %v3143, %v3145
  %v3150 = vadd.s32 %v3146, 1
  %v3151 = vsel %vm3149, %v3150, %v3146
  %v3152 = vadd.s32 %v3147, %v3151
  %v3153 = vadd.s32 %v3152, 536870912
  %v3154 = vshrl.u32 %v3153, 30
  %v3155 = vshll.u32 %v3154, 30
  %v3156 = vsub.s32 %v3152, %v3155
  %vm3157 = vcmp.lt.s32.totalorder %v3156, 0
  %v3158 = vsub.s32 0, %v3156
  %v3159 = vsel %vm3157, %v3158, %v3156
  %v3160 = vclz %v3159
  %v3161 = vsub.s32 %v3160, 2
  %vm3162 = vcmp.gt.s32.totalorder 0, %v3161
  %v3163 = vsel %vm3162, 0, %v3161
  %v3164 = vsub.s32 32, %v3163
  %v3165 = vshll.u32 %v3156, %v3163
  %v3166 = vshrl.u32 %v3148, %v3164
  %v3167 = vor.u32 %v3165, %v3166
  %v3168 = vsub.s32 4294967266, %v3163
  %v3169 = vadd.s32 %v3168, 127
  %v3170 = vshll.u32 %v3169, 23
  %v3171 = vor.u32 4788187, %v3170
  %v3172 = vand.u32 2147483647, %v3171
  %v3174 = vcvt.s32.f32 %v3167
  %v3175 = vmul.f32 %v3174, %v3172
  %v3176 = vxor.u32 %v3175, 2147483648
  %v3177 = vsel %vm3094, %v3176, %v3175
  %v3178 = vsub.s32 4, %v3154
  %v3179 = vsel %vm3094, %v3178, %v3154
  %v3180 = vsel %vm3093, %v485, %v3177
  %v3181 = vsel %vm3093, 0, %v3179
  %v3182 = vcosq.f32.pop %v3180
  %v3183 = vsinq.f32.pop %v3180
  %vm3184 = vweird.f32 %v485
  %v3185 = vadd.s32 %v3181, 3
  %v3186 = vand.u32 %v3185, 3
  %vm3187 = vcmp.lt.s32.totalorder %v3186, 2
  %vm3188 = vcmp.eq.s32.totalorder %v3186, 0
  %v3189 = vxor.u32 %v3183, 2147483648
  %v3190 = vsel %vm3188, %v3182, %v3189
  %vm3191 = vcmp.eq.s32.totalorder %v3186, 2
  %v3192 = vxor.u32 %v3182, 2147483648
  %v3193 = vsel %vm3191, %v3192, %v3183
  %v3194 = vsel %vm3187, %v3190, %v3193
  %v3195 = vsel %vm3184, nan, %v3194
  %v3196 = vand.u32 2147483647, %v486
  %vm3197 = vcmp.le.f32.partialorder %v3196, 0.7853982
  %vm3198 = vcmp.lt.s32.totalorder %v486, 0
  %v3199 = vand.u32 %v486, 2139095040
  %v3200 = vshrl.u32 %v3199, 23
  %v3201 = vsub.s32 %v3200, 127
  %v3202 = vand.u32 2147483647, %v486
  %v3203 = vand.u32 %v3202, 8388607
  %v3204 = vor.u32 %v3203, 8388608
  %v3205 = vsub.s32 0, %v3204
  %v3206 = vadd.s32 %v3201, 1
  %vm3207 = vcmp.gt.s32.totalorder %v3206, 0
  %v3208 = vsel %vm3207, %v3206, 0
  %v3209 = vshrl.u32 %v3208, 5
  %v3210 = vand.u32 %v3208, 31
  %v3211 = vsub.s32 32, %v3210
  %v3212 = vshrl.u32 683565275, %v3211
  %v3213 = vshll.u32 683565275, %v3210
  %v3214 = vshrl.u32 2475754826, %v3211
  %v3215 = vor.u32 %v3213, %v3214
  %v3216 = vshll.u32 2475754826, %v3210
  %v3217 = vshrl.u32 2131351028, %v3211
  %v3218 = vor.u32 %v3216, %v3217
  %v3219 = vshll.u32 2131351028, %v3210
  %v3220 = vshrl.u32 2102212464, %v3211
  %v3221 = vor.u32 %v3219, %v3220
  %v3222 = vshll.u32 2102212464, %v3210
  %v3223 = vshrl.u32 920167782, %v3211
  %v3224 = vor.u32 %v3222, %v3223
  %v3225 = vshll.u32 920167782, %v3210
  %v3226 = vshrl.u32 1326507024, %v3211
  %v3227 = vor.u32 %v3225, %v3226
  %vm3228 = vcmp.lt.s32.totalorder %v3209, 1
  %vm3229 = vcmp.lt.s32.totalorder %v3209, 2
  %vm3230 = vcmp.lt.s32.totalorder %v3209, 3
  %vm3231 = vcmp.lt.s32.totalorder %v3209, 4
  %v3232 = vsel %vm3228, %v3212, %v3215
  %v3233 = vsel %vm3231, %v3221, 2102212464
  %v3234 = vsel %vm3230, %v3218, %v3233
  %v3235 = vsel %vm3229, %v3232, %v3234
  %v3236 = vsel %vm3228, %v3215, %v3218
  %v3237 = vsel %vm3231, %v3224, 920167782
  %v3238 = vsel %vm3230, %v3221, %v3237
  %v3239 = vsel %vm3229, %v3236, %v3238
  %v3240 = vsel %vm3228, %v3218, %v3221
  %v3241 = vsel %vm3231, %v3227, 1326507024
  %v3242 = vsel %vm3230, %v3224, %v3241
  %v3243 = vsel %vm3229, %v3240, %v3242
  %v3244 = vshll.u32 %v3204, 8
  %v3245 = vmul.u32.u64.compose %v3244, %v3243
  %v3246 = vextract.low.u32 %v3245
  %v3247 = vextract.high.u32 %v3245
  %v3248 = vmul.u32.u64.compose %v3244, %v3239
  %v3249 = vextract.low.u32 %v3248
  %v3250 = vextract.high.u32 %v3248
  %v3251 = vmul.u32 %v3244, %v3235
  %v3252 = vadd.s32 %v3247, %v3249
  %vm3253 = vc.u32 %v3247, %v3249
  %v3254 = vadd.s32 %v3250, 1
  %v3255 = vsel %vm3253, %v3254, %v3250
  %v3256 = vadd.s32 %v3251, %v3255
  %v3257 = vadd.s32 %v3256, 536870912
  %v3258 = vshrl.u32 %v3257, 30
  %v3259 = vshll.u32 %v3258, 30
  %v3260 = vsub.s32 %v3256, %v3259
  %vm3261 = vcmp.lt.s32.totalorder %v3260, 0
  %v3262 = vsub.s32 0, %v3260
  %v3263 = vsel %vm3261, %v3262, %v3260
  %v3264 = vclz %v3263
  %v3265 = vsub.s32 %v3264, 2
  %vm3266 = vcmp.gt.s32.totalorder 0, %v3265
  %v3267 = vsel %vm3266, 0, %v3265
  %v3268 = vsub.s32 32, %v3267
  %v3269 = vshll.u32 %v3260, %v3267
  %v3270 = vshrl.u32 %v3252, %v3268
  %v3271 = vor.u32 %v3269, %v3270
  %v3272 = vsub.s32 4294967266, %v3267
  %v3273 = vadd.s32 %v3272, 127
  %v3274 = vshll.u32 %v3273, 23
  %v3275 = vor.u32 4788187, %v3274
  %v3276 = vand.u32 2147483647, %v3275
  %v3278 = vcvt.s32.f32 %v3271
  %v3279 = vmul.f32 %v3278, %v3276
  %v3280 = vxor.u32 %v3279, 2147483648
  %v3281 = vsel %vm3198, %v3280, %v3279
  %v3282 = vsub.s32 4, %v3258
  %v3283 = vsel %vm3198, %v3282, %v3258
  %v3284 = vsel %vm3197, %v486, %v3281
  %v3285 = vsel %vm3197, 0, %v3283
  %v3286 = vcosq.f32.pop %v3284
  %v3287 = vsinq.f32.pop %v3284
  %vm3288 = vweird.f32 %v486
  %v3289 = vadd.s32 %v3285, 3
  %v3290 = vand.u32 %v3289, 3
  %vm3291 = vcmp.lt.s32.totalorder %v3290, 2
  %vm3292 = vcmp.eq.s32.totalorder %v3290, 0
  %v3293 = vxor.u32 %v3287, 2147483648
  %v3294 = vsel %vm3292, %v3286, %v3293
  %vm3295 = vcmp.eq.s32.totalorder %v3290, 2
  %v3296 = vxor.u32 %v3286, 2147483648
  %v3297 = vsel %vm3295, %v3296, %v3287
  %v3298 = vsel %vm3291, %v3294, %v3297
  %v3299 = vsel %vm3288, nan, %v3298
  %v3300 = vand.u32 2147483647, %v487
  %vm3301 = vcmp.le.f32.partialorder %v3300, 0.7853982
  %vm3302 = vcmp.lt.s32.totalorder %v487, 0
  %v3303 = vand.u32 %v487, 2139095040
  %v3304 = vshrl.u32 %v3303, 23
  %v3305 = vsub.s32 %v3304, 127
  %v3306 = vand.u32 2147483647, %v487
  %v3307 = vand.u32 %v3306, 8388607
  %v3308 = vor.u32 %v3307, 8388608
  %v3309 = vsub.s32 0, %v3308
  %v3310 = vadd.s32 %v3305, 1
  %vm3311 = vcmp.gt.s32.totalorder %v3310, 0
  %v3312 = vsel %vm3311, %v3310, 0
  %v3313 = vshrl.u32 %v3312, 5
  %v3314 = vand.u32 %v3312, 31
  %v3315 = vsub.s32 32, %v3314
  %v3316 = vshrl.u32 683565275, %v3315
  %v3317 = vshll.u32 683565275, %v3314
  %v3318 = vshrl.u32 2475754826, %v3315
  %v3319 = vor.u32 %v3317, %v3318
  %v3320 = vshll.u32 2475754826, %v3314
  %v3321 = vshrl.u32 2131351028, %v3315
  %v3322 = vor.u32 %v3320, %v3321
  %v3323 = vshll.u32 2131351028, %v3314
  %v3324 = vshrl.u32 2102212464, %v3315
  %v3325 = vor.u32 %v3323, %v3324
  %v3326 = vshll.u32 2102212464, %v3314
  %v3327 = vshrl.u32 920167782, %v3315
  %v3328 = vor.u32 %v3326, %v3327
  %v3329 = vshll.u32 920167782, %v3314
  %v3330 = vshrl.u32 1326507024, %v3315
  %v3331 = vor.u32 %v3329, %v3330
  %vm3332 = vcmp.lt.s32.totalorder %v3313, 1
  %vm3333 = vcmp.lt.s32.totalorder %v3313, 2
  %vm3334 = vcmp.lt.s32.totalorder %v3313, 3
  %vm3335 = vcmp.lt.s32.totalorder %v3313, 4
  %v3336 = vsel %vm3332, %v3316, %v3319
  %v3337 = vsel %vm3335, %v3325, 2102212464
  %v3338 = vsel %vm3334, %v3322, %v3337
  %v3339 = vsel %vm3333, %v3336, %v3338
  %v3340 = vsel %vm3332, %v3319, %v3322
  %v3341 = vsel %vm3335, %v3328, 920167782
  %v3342 = vsel %vm3334, %v3325, %v3341
  %v3343 = vsel %vm3333, %v3340, %v3342
  %v3344 = vsel %vm3332, %v3322, %v3325
  %v3345 = vsel %vm3335, %v3331, 1326507024
  %v3346 = vsel %vm3334, %v3328, %v3345
  %v3347 = vsel %vm3333, %v3344, %v3346
  %v3348 = vshll.u32 %v3308, 8
  %v3349 = vmul.u32.u64.compose %v3348, %v3347
  %v3350 = vextract.low.u32 %v3349
  %v3351 = vextract.high.u32 %v3349
  %v3352 = vmul.u32.u64.compose %v3348, %v3343
  %v3353 = vextract.low.u32 %v3352
  %v3354 = vextract.high.u32 %v3352
  %v3355 = vmul.u32 %v3348, %v3339
  %v3356 = vadd.s32 %v3351, %v3353
  %vm3357 = vc.u32 %v3351, %v3353
  %v3358 = vadd.s32 %v3354, 1
  %v3359 = vsel %vm3357, %v3358, %v3354
  %v3360 = vadd.s32 %v3355, %v3359
  %v3361 = vadd.s32 %v3360, 536870912
  %v3362 = vshrl.u32 %v3361, 30
  %v3363 = vshll.u32 %v3362, 30
  %v3364 = vsub.s32 %v3360, %v3363
  %vm3365 = vcmp.lt.s32.totalorder %v3364, 0
  %v3366 = vsub.s32 0, %v3364
  %v3367 = vsel %vm3365, %v3366, %v3364
  %v3368 = vclz %v3367
  %v3369 = vsub.s32 %v3368, 2
  %vm3370 = vcmp.gt.s32.totalorder 0, %v3369
  %v3371 = vsel %vm3370, 0, %v3369
  %v3372 = vsub.s32 32, %v3371
  %v3373 = vshll.u32 %v3364, %v3371
  %v3374 = vshrl.u32 %v3356, %v3372
  %v3375 = vor.u32 %v3373, %v3374
  %v3376 = vsub.s32 4294967266, %v3371
  %v3377 = vadd.s32 %v3376, 127
  %v3378 = vshll.u32 %v3377, 23
  %v3379 = vor.u32 4788187, %v3378
  %v3380 = vand.u32 2147483647, %v3379
  %v3382 = vcvt.s32.f32 %v3375
  %v3383 = vmul.f32 %v3382, %v3380
  %v3384 = vxor.u32 %v3383, 2147483648
  %v3385 = vsel %vm3302, %v3384, %v3383
  %v3386 = vsub.s32 4, %v3362
  %v3387 = vsel %vm3302, %v3386, %v3362
  %v3388 = vsel %vm3301, %v487, %v3385
  %v3389 = vsel %vm3301, 0, %v3387
  %v3390 = vcosq.f32.pop %v3388
  %v3391 = vsinq.f32.pop %v3388
  %vm3392 = vweird.f32 %v487
  %v3393 = vadd.s32 %v3389, 3
  %v3394 = vand.u32 %v3393, 3
  %vm3395 = vcmp.lt.s32.totalorder %v3394, 2
  %vm3396 = vcmp.eq.s32.totalorder %v3394, 0
  %v3397 = vxor.u32 %v3391, 2147483648
  %v3398 = vsel %vm3396, %v3390, %v3397
  %vm3399 = vcmp.eq.s32.totalorder %v3394, 2
  %v3400 = vxor.u32 %v3390, 2147483648
  %v3401 = vsel %vm3399, %v3400, %v3391
  %v3402 = vsel %vm3395, %v3398, %v3401
  %v3403 = vsel %vm3392, nan, %v3402
  %v3404 = vand.u32 2147483647, %v488
  %vm3405 = vcmp.le.f32.partialorder %v3404, 0.7853982
  %vm3406 = vcmp.lt.s32.totalorder %v488, 0
  %v3407 = vand.u32 %v488, 2139095040
  %v3408 = vshrl.u32 %v3407, 23
  %v3409 = vsub.s32 %v3408, 127
  %v3410 = vand.u32 2147483647, %v488
  %v3411 = vand.u32 %v3410, 8388607
  %v3412 = vor.u32 %v3411, 8388608
  %v3413 = vsub.s32 0, %v3412
  %v3414 = vadd.s32 %v3409, 1
  %vm3415 = vcmp.gt.s32.totalorder %v3414, 0
  %v3416 = vsel %vm3415, %v3414, 0
  %v3417 = vshrl.u32 %v3416, 5
  %v3418 = vand.u32 %v3416, 31
  %v3419 = vsub.s32 32, %v3418
  %v3420 = vshrl.u32 683565275, %v3419
  %v3421 = vshll.u32 683565275, %v3418
  %v3422 = vshrl.u32 2475754826, %v3419
  %v3423 = vor.u32 %v3421, %v3422
  %v3424 = vshll.u32 2475754826, %v3418
  %v3425 = vshrl.u32 2131351028, %v3419
  %v3426 = vor.u32 %v3424, %v3425
  %v3427 = vshll.u32 2131351028, %v3418
  %v3428 = vshrl.u32 2102212464, %v3419
  %v3429 = vor.u32 %v3427, %v3428
  %v3430 = vshll.u32 2102212464, %v3418
  %v3431 = vshrl.u32 920167782, %v3419
  %v3432 = vor.u32 %v3430, %v3431
  %v3433 = vshll.u32 920167782, %v3418
  %v3434 = vshrl.u32 1326507024, %v3419
  %v3435 = vor.u32 %v3433, %v3434
  %vm3436 = vcmp.lt.s32.totalorder %v3417, 1
  %vm3437 = vcmp.lt.s32.totalorder %v3417, 2
  %vm3438 = vcmp.lt.s32.totalorder %v3417, 3
  %vm3439 = vcmp.lt.s32.totalorder %v3417, 4
  %v3440 = vsel %vm3436, %v3420, %v3423
  %v3441 = vsel %vm3439, %v3429, 2102212464
  %v3442 = vsel %vm3438, %v3426, %v3441
  %v3443 = vsel %vm3437, %v3440, %v3442
  %v3444 = vsel %vm3436, %v3423, %v3426
  %v3445 = vsel %vm3439, %v3432, 920167782
  %v3446 = vsel %vm3438, %v3429, %v3445
  %v3447 = vsel %vm3437, %v3444, %v3446
  %v3448 = vsel %vm3436, %v3426, %v3429
  %v3449 = vsel %vm3439, %v3435, 1326507024
  %v3450 = vsel %vm3438, %v3432, %v3449
  %v3451 = vsel %vm3437, %v3448, %v3450
  %v3452 = vshll.u32 %v3412, 8
  %v3453 = vmul.u32.u64.compose %v3452, %v3451
  %v3454 = vextract.low.u32 %v3453
  %v3455 = vextract.high.u32 %v3453
  %v3456 = vmul.u32.u64.compose %v3452, %v3447
  %v3457 = vextract.low.u32 %v3456
  %v3458 = vextract.high.u32 %v3456
  %v3459 = vmul.u32 %v3452, %v3443
  %v3460 = vadd.s32 %v3455, %v3457
  %vm3461 = vc.u32 %v3455, %v3457
  %v3462 = vadd.s32 %v3458, 1
  %v3463 = vsel %vm3461, %v3462, %v3458
  %v3464 = vadd.s32 %v3459, %v3463
  %v3465 = vadd.s32 %v3464, 536870912
  %v3466 = vshrl.u32 %v3465, 30
  %v3467 = vshll.u32 %v3466, 30
  %v3468 = vsub.s32 %v3464, %v3467
  %vm3469 = vcmp.lt.s32.totalorder %v3468, 0
  %v3470 = vsub.s32 0, %v3468
  %v3471 = vsel %vm3469, %v3470, %v3468
  %v3472 = vclz %v3471
  %v3473 = vsub.s32 %v3472, 2
  %vm3474 = vcmp.gt.s32.totalorder 0, %v3473
  %v3475 = vsel %vm3474, 0, %v3473
  %v3476 = vsub.s32 32, %v3475
  %v3477 = vshll.u32 %v3468, %v3475
  %v3478 = vshrl.u32 %v3460, %v3476
  %v3479 = vor.u32 %v3477, %v3478
  %v3480 = vsub.s32 4294967266, %v3475
  %v3481 = vadd.s32 %v3480, 127
  %v3482 = vshll.u32 %v3481, 23
  %v3483 = vor.u32 4788187, %v3482
  %v3484 = vand.u32 2147483647, %v3483
  %v3486 = vcvt.s32.f32 %v3479
  %v3487 = vmul.f32 %v3486, %v3484
  %v3488 = vxor.u32 %v3487, 2147483648
  %v3489 = vsel %vm3406, %v3488, %v3487
  %v3490 = vsub.s32 4, %v3466
  %v3491 = vsel %vm3406, %v3490, %v3466
  %v3492 = vsel %vm3405, %v488, %v3489
  %v3493 = vsel %vm3405, 0, %v3491
  %v3494 = vcosq.f32.pop %v3492
  %v3495 = vsinq.f32.pop %v3492
  %vm3496 = vweird.f32 %v488
  %v3497 = vadd.s32 %v3493, 3
  %v3498 = vand.u32 %v3497, 3
  %vm3499 = vcmp.lt.s32.totalorder %v3498, 2
  %vm3500 = vcmp.eq.s32.totalorder %v3498, 0
  %v3501 = vxor.u32 %v3495, 2147483648
  %v3502 = vsel %vm3500, %v3494, %v3501
  %vm3503 = vcmp.eq.s32.totalorder %v3498, 2
  %v3504 = vxor.u32 %v3494, 2147483648
  %v3505 = vsel %vm3503, %v3504, %v3495
  %v3506 = vsel %vm3499, %v3502, %v3505
  %v3507 = vsel %vm3496, nan, %v3506
  %v3508 = vand.u32 2147483647, %v489
  %vm3509 = vcmp.le.f32.partialorder %v3508, 0.7853982
  %vm3510 = vcmp.lt.s32.totalorder %v489, 0
  %v3511 = vand.u32 %v489, 2139095040
  %v3512 = vshrl.u32 %v3511, 23
  %v3513 = vsub.s32 %v3512, 127
  %v3514 = vand.u32 2147483647, %v489
  %v3515 = vand.u32 %v3514, 8388607
  %v3516 = vor.u32 %v3515, 8388608
  %v3517 = vsub.s32 0, %v3516
  %v3518 = vadd.s32 %v3513, 1
  %vm3519 = vcmp.gt.s32.totalorder %v3518, 0
  %v3520 = vsel %vm3519, %v3518, 0
  %v3521 = vshrl.u32 %v3520, 5
  %v3522 = vand.u32 %v3520, 31
  %v3523 = vsub.s32 32, %v3522
  %v3524 = vshrl.u32 683565275, %v3523
  %v3525 = vshll.u32 683565275, %v3522
  %v3526 = vshrl.u32 2475754826, %v3523
  %v3527 = vor.u32 %v3525, %v3526
  %v3528 = vshll.u32 2475754826, %v3522
  %v3529 = vshrl.u32 2131351028, %v3523
  %v3530 = vor.u32 %v3528, %v3529
  %v3531 = vshll.u32 2131351028, %v3522
  %v3532 = vshrl.u32 2102212464, %v3523
  %v3533 = vor.u32 %v3531, %v3532
  %v3534 = vshll.u32 2102212464, %v3522
  %v3535 = vshrl.u32 920167782, %v3523
  %v3536 = vor.u32 %v3534, %v3535
  %v3537 = vshll.u32 920167782, %v3522
  %v3538 = vshrl.u32 1326507024, %v3523
  %v3539 = vor.u32 %v3537, %v3538
  %vm3540 = vcmp.lt.s32.totalorder %v3521, 1
  %vm3541 = vcmp.lt.s32.totalorder %v3521, 2
  %vm3542 = vcmp.lt.s32.totalorder %v3521, 3
  %vm3543 = vcmp.lt.s32.totalorder %v3521, 4
  %v3544 = vsel %vm3540, %v3524, %v3527
  %v3545 = vsel %vm3543, %v3533, 2102212464
  %v3546 = vsel %vm3542, %v3530, %v3545
  %v3547 = vsel %vm3541, %v3544, %v3546
  %v3548 = vsel %vm3540, %v3527, %v3530
  %v3549 = vsel %vm3543, %v3536, 920167782
  %v3550 = vsel %vm3542, %v3533, %v3549
  %v3551 = vsel %vm3541, %v3548, %v3550
  %v3552 = vsel %vm3540, %v3530, %v3533
  %v3553 = vsel %vm3543, %v3539, 1326507024
  %v3554 = vsel %vm3542, %v3536, %v3553
  %v3555 = vsel %vm3541, %v3552, %v3554
  %v3556 = vshll.u32 %v3516, 8
  %v3557 = vmul.u32.u64.compose %v3556, %v3555
  %v3558 = vextract.low.u32 %v3557
  %v3559 = vextract.high.u32 %v3557
  %v3560 = vmul.u32.u64.compose %v3556, %v3551
  %v3561 = vextract.low.u32 %v3560
  %v3562 = vextract.high.u32 %v3560
  %v3563 = vmul.u32 %v3556, %v3547
  %v3564 = vadd.s32 %v3559, %v3561
  %vm3565 = vc.u32 %v3559, %v3561
  %v3566 = vadd.s32 %v3562, 1
  %v3567 = vsel %vm3565, %v3566, %v3562
  %v3568 = vadd.s32 %v3563, %v3567
  %v3569 = vadd.s32 %v3568, 536870912
  %v3570 = vshrl.u32 %v3569, 30
  %v3571 = vshll.u32 %v3570, 30
  %v3572 = vsub.s32 %v3568, %v3571
  %vm3573 = vcmp.lt.s32.totalorder %v3572, 0
  %v3574 = vsub.s32 0, %v3572
  %v3575 = vsel %vm3573, %v3574, %v3572
  %v3576 = vclz %v3575
  %v3577 = vsub.s32 %v3576, 2
  %vm3578 = vcmp.gt.s32.totalorder 0, %v3577
  %v3579 = vsel %vm3578, 0, %v3577
  %v3580 = vsub.s32 32, %v3579
  %v3581 = vshll.u32 %v3572, %v3579
  %v3582 = vshrl.u32 %v3564, %v3580
  %v3583 = vor.u32 %v3581, %v3582
  %v3584 = vsub.s32 4294967266, %v3579
  %v3585 = vadd.s32 %v3584, 127
  %v3586 = vshll.u32 %v3585, 23
  %v3587 = vor.u32 4788187, %v3586
  %v3588 = vand.u32 2147483647, %v3587
  %v3590 = vcvt.s32.f32 %v3583
  %v3591 = vmul.f32 %v3590, %v3588
  %v3592 = vxor.u32 %v3591, 2147483648
  %v3593 = vsel %vm3510, %v3592, %v3591
  %v3594 = vsub.s32 4, %v3570
  %v3595 = vsel %vm3510, %v3594, %v3570
  %v3596 = vsel %vm3509, %v489, %v3593
  %v3597 = vsel %vm3509, 0, %v3595
  %v3598 = vcosq.f32.pop %v3596
  %v3599 = vsinq.f32.pop %v3596
  %vm3600 = vweird.f32 %v489
  %v3601 = vadd.s32 %v3597, 3
  %v3602 = vand.u32 %v3601, 3
  %vm3603 = vcmp.lt.s32.totalorder %v3602, 2
  %vm3604 = vcmp.eq.s32.totalorder %v3602, 0
  %v3605 = vxor.u32 %v3599, 2147483648
  %v3606 = vsel %vm3604, %v3598, %v3605
  %vm3607 = vcmp.eq.s32.totalorder %v3602, 2
  %v3608 = vxor.u32 %v3598, 2147483648
  %v3609 = vsel %vm3607, %v3608, %v3599
  %v3610 = vsel %vm3603, %v3606, %v3609
  %v3611 = vsel %vm3600, nan, %v3610
  %v3612 = vand.u32 2147483647, %v490
  %vm3613 = vcmp.le.f32.partialorder %v3612, 0.7853982
  %vm3614 = vcmp.lt.s32.totalorder %v490, 0
  %v3615 = vand.u32 %v490, 2139095040
  %v3616 = vshrl.u32 %v3615, 23
  %v3617 = vsub.s32 %v3616, 127
  %v3618 = vand.u32 2147483647, %v490
  %v3619 = vand.u32 %v3618, 8388607
  %v3620 = vor.u32 %v3619, 8388608
  %v3621 = vsub.s32 0, %v3620
  %v3622 = vadd.s32 %v3617, 1
  %vm3623 = vcmp.gt.s32.totalorder %v3622, 0
  %v3624 = vsel %vm3623, %v3622, 0
  %v3625 = vshrl.u32 %v3624, 5
  %v3626 = vand.u32 %v3624, 31
  %v3627 = vsub.s32 32, %v3626
  %v3628 = vshrl.u32 683565275, %v3627
  %v3629 = vshll.u32 683565275, %v3626
  %v3630 = vshrl.u32 2475754826, %v3627
  %v3631 = vor.u32 %v3629, %v3630
  %v3632 = vshll.u32 2475754826, %v3626
  %v3633 = vshrl.u32 2131351028, %v3627
  %v3634 = vor.u32 %v3632, %v3633
  %v3635 = vshll.u32 2131351028, %v3626
  %v3636 = vshrl.u32 2102212464, %v3627
  %v3637 = vor.u32 %v3635, %v3636
  %v3638 = vshll.u32 2102212464, %v3626
  %v3639 = vshrl.u32 920167782, %v3627
  %v3640 = vor.u32 %v3638, %v3639
  %v3641 = vshll.u32 920167782, %v3626
  %v3642 = vshrl.u32 1326507024, %v3627
  %v3643 = vor.u32 %v3641, %v3642
  %vm3644 = vcmp.lt.s32.totalorder %v3625, 1
  %vm3645 = vcmp.lt.s32.totalorder %v3625, 2
  %vm3646 = vcmp.lt.s32.totalorder %v3625, 3
  %vm3647 = vcmp.lt.s32.totalorder %v3625, 4
  %v3648 = vsel %vm3644, %v3628, %v3631
  %v3649 = vsel %vm3647, %v3637, 2102212464
  %v3650 = vsel %vm3646, %v3634, %v3649
  %v3651 = vsel %vm3645, %v3648, %v3650
  %v3652 = vsel %vm3644, %v3631, %v3634
  %v3653 = vsel %vm3647, %v3640, 920167782
  %v3654 = vsel %vm3646, %v3637, %v3653
  %v3655 = vsel %vm3645, %v3652, %v3654
  %v3656 = vsel %vm3644, %v3634, %v3637
  %v3657 = vsel %vm3647, %v3643, 1326507024
  %v3658 = vsel %vm3646, %v3640, %v3657
  %v3659 = vsel %vm3645, %v3656, %v3658
  %v3660 = vshll.u32 %v3620, 8
  %v3661 = vmul.u32.u64.compose %v3660, %v3659
  %v3662 = vextract.low.u32 %v3661
  %v3663 = vextract.high.u32 %v3661
  %v3664 = vmul.u32.u64.compose %v3660, %v3655
  %v3665 = vextract.low.u32 %v3664
  %v3666 = vextract.high.u32 %v3664
  %v3667 = vmul.u32 %v3660, %v3651
  %v3668 = vadd.s32 %v3663, %v3665
  %vm3669 = vc.u32 %v3663, %v3665
  %v3670 = vadd.s32 %v3666, 1
  %v3671 = vsel %vm3669, %v3670, %v3666
  %v3672 = vadd.s32 %v3667, %v3671
  %v3673 = vadd.s32 %v3672, 536870912
  %v3674 = vshrl.u32 %v3673, 30
  %v3675 = vshll.u32 %v3674, 30
  %v3676 = vsub.s32 %v3672, %v3675
  %vm3677 = vcmp.lt.s32.totalorder %v3676, 0
  %v3678 = vsub.s32 0, %v3676
  %v3679 = vsel %vm3677, %v3678, %v3676
  %v3680 = vclz %v3679
  %v3681 = vsub.s32 %v3680, 2
  %vm3682 = vcmp.gt.s32.totalorder 0, %v3681
  %v3683 = vsel %vm3682, 0, %v3681
  %v3684 = vsub.s32 32, %v3683
  %v3685 = vshll.u32 %v3676, %v3683
  %v3686 = vshrl.u32 %v3668, %v3684
  %v3687 = vor.u32 %v3685, %v3686
  %v3688 = vsub.s32 4294967266, %v3683
  %v3689 = vadd.s32 %v3688, 127
  %v3690 = vshll.u32 %v3689, 23
  %v3691 = vor.u32 4788187, %v3690
  %v3692 = vand.u32 2147483647, %v3691
  %v3694 = vcvt.s32.f32 %v3687
  %v3695 = vmul.f32 %v3694, %v3692
  %v3696 = vxor.u32 %v3695, 2147483648
  %v3697 = vsel %vm3614, %v3696, %v3695
  %v3698 = vsub.s32 4, %v3674
  %v3699 = vsel %vm3614, %v3698, %v3674
  %v3700 = vsel %vm3613, %v490, %v3697
  %v3701 = vsel %vm3613, 0, %v3699
  %v3702 = vcosq.f32.pop %v3700
  %v3703 = vsinq.f32.pop %v3700
  %vm3704 = vweird.f32 %v490
  %v3705 = vadd.s32 %v3701, 3
  %v3706 = vand.u32 %v3705, 3
  %vm3707 = vcmp.lt.s32.totalorder %v3706, 2
  %vm3708 = vcmp.eq.s32.totalorder %v3706, 0
  %v3709 = vxor.u32 %v3703, 2147483648
  %v3710 = vsel %vm3708, %v3702, %v3709
  %vm3711 = vcmp.eq.s32.totalorder %v3706, 2
  %v3712 = vxor.u32 %v3702, 2147483648
  %v3713 = vsel %vm3711, %v3712, %v3703
  %v3714 = vsel %vm3707, %v3710, %v3713
  %v3715 = vsel %vm3704, nan, %v3714
  %v3716 = vand.u32 2147483647, %v491
  %vm3717 = vcmp.le.f32.partialorder %v3716, 0.7853982
  %vm3718 = vcmp.lt.s32.totalorder %v491, 0
  %v3719 = vand.u32 %v491, 2139095040
  %v3720 = vshrl.u32 %v3719, 23
  %v3721 = vsub.s32 %v3720, 127
  %v3722 = vand.u32 2147483647, %v491
  %v3723 = vand.u32 %v3722, 8388607
  %v3724 = vor.u32 %v3723, 8388608
  %v3725 = vsub.s32 0, %v3724
  %v3726 = vadd.s32 %v3721, 1
  %vm3727 = vcmp.gt.s32.totalorder %v3726, 0
  %v3728 = vsel %vm3727, %v3726, 0
  %v3729 = vshrl.u32 %v3728, 5
  %v3730 = vand.u32 %v3728, 31
  %v3731 = vsub.s32 32, %v3730
  %v3732 = vshrl.u32 683565275, %v3731
  %v3733 = vshll.u32 683565275, %v3730
  %v3734 = vshrl.u32 2475754826, %v3731
  %v3735 = vor.u32 %v3733, %v3734
  %v3736 = vshll.u32 2475754826, %v3730
  %v3737 = vshrl.u32 2131351028, %v3731
  %v3738 = vor.u32 %v3736, %v3737
  %v3739 = vshll.u32 2131351028, %v3730
  %v3740 = vshrl.u32 2102212464, %v3731
  %v3741 = vor.u32 %v3739, %v3740
  %v3742 = vshll.u32 2102212464, %v3730
  %v3743 = vshrl.u32 920167782, %v3731
  %v3744 = vor.u32 %v3742, %v3743
  %v3745 = vshll.u32 920167782, %v3730
  %v3746 = vshrl.u32 1326507024, %v3731
  %v3747 = vor.u32 %v3745, %v3746
  %vm3748 = vcmp.lt.s32.totalorder %v3729, 1
  %vm3749 = vcmp.lt.s32.totalorder %v3729, 2
  %vm3750 = vcmp.lt.s32.totalorder %v3729, 3
  %vm3751 = vcmp.lt.s32.totalorder %v3729, 4
  %v3752 = vsel %vm3748, %v3732, %v3735
  %v3753 = vsel %vm3751, %v3741, 2102212464
  %v3754 = vsel %vm3750, %v3738, %v3753
  %v3755 = vsel %vm3749, %v3752, %v3754
  %v3756 = vsel %vm3748, %v3735, %v3738
  %v3757 = vsel %vm3751, %v3744, 920167782
  %v3758 = vsel %vm3750, %v3741, %v3757
  %v3759 = vsel %vm3749, %v3756, %v3758
  %v3760 = vsel %vm3748, %v3738, %v3741
  %v3761 = vsel %vm3751, %v3747, 1326507024
  %v3762 = vsel %vm3750, %v3744, %v3761
  %v3763 = vsel %vm3749, %v3760, %v3762
  %v3764 = vshll.u32 %v3724, 8
  %v3765 = vmul.u32.u64.compose %v3764, %v3763
  %v3766 = vextract.low.u32 %v3765
  %v3767 = vextract.high.u32 %v3765
  %v3768 = vmul.u32.u64.compose %v3764, %v3759
  %v3769 = vextract.low.u32 %v3768
  %v3770 = vextract.high.u32 %v3768
  %v3771 = vmul.u32 %v3764, %v3755
  %v3772 = vadd.s32 %v3767, %v3769
  %vm3773 = vc.u32 %v3767, %v3769
  %v3774 = vadd.s32 %v3770, 1
  %v3775 = vsel %vm3773, %v3774, %v3770
  %v3776 = vadd.s32 %v3771, %v3775
  %v3777 = vadd.s32 %v3776, 536870912
  %v3778 = vshrl.u32 %v3777, 30
  %v3779 = vshll.u32 %v3778, 30
  %v3780 = vsub.s32 %v3776, %v3779
  %vm3781 = vcmp.lt.s32.totalorder %v3780, 0
  %v3782 = vsub.s32 0, %v3780
  %v3783 = vsel %vm3781, %v3782, %v3780
  %v3784 = vclz %v3783
  %v3785 = vsub.s32 %v3784, 2
  %vm3786 = vcmp.gt.s32.totalorder 0, %v3785
  %v3787 = vsel %vm3786, 0, %v3785
  %v3788 = vsub.s32 32, %v3787
  %v3789 = vshll.u32 %v3780, %v3787
  %v3790 = vshrl.u32 %v3772, %v3788
  %v3791 = vor.u32 %v3789, %v3790
  %v3792 = vsub.s32 4294967266, %v3787
  %v3793 = vadd.s32 %v3792, 127
  %v3794 = vshll.u32 %v3793, 23
  %v3795 = vor.u32 4788187, %v3794
  %v3796 = vand.u32 2147483647, %v3795
  %v3798 = vcvt.s32.f32 %v3791
  %v3799 = vmul.f32 %v3798, %v3796
  %v3800 = vxor.u32 %v3799, 2147483648
  %v3801 = vsel %vm3718, %v3800, %v3799
  %v3802 = vsub.s32 4, %v3778
  %v3803 = vsel %vm3718, %v3802, %v3778
  %v3804 = vsel %vm3717, %v491, %v3801
  %v3805 = vsel %vm3717, 0, %v3803
  %v3806 = vcosq.f32.pop %v3804
  %v3807 = vsinq.f32.pop %v3804
  %vm3808 = vweird.f32 %v491
  %v3809 = vadd.s32 %v3805, 3
  %v3810 = vand.u32 %v3809, 3
  %vm3811 = vcmp.lt.s32.totalorder %v3810, 2
  %vm3812 = vcmp.eq.s32.totalorder %v3810, 0
  %v3813 = vxor.u32 %v3807, 2147483648
  %v3814 = vsel %vm3812, %v3806, %v3813
  %vm3815 = vcmp.eq.s32.totalorder %v3810, 2
  %v3816 = vxor.u32 %v3806, 2147483648
  %v3817 = vsel %vm3815, %v3816, %v3807
  %v3818 = vsel %vm3811, %v3814, %v3817
  %v3819 = vsel %vm3808, nan, %v3818
  %v3820 = vpack.c.bf16 %v699, %v595
  %v3821 = vpack.c.bf16 %v907, %v803
  %v3822 = vpack.c.bf16 %v1115, %v1011
  %v3823 = vpack.c.bf16 %v1323, %v1219
  %v3824 = vpack.c.bf16 %v1531, %v1427
  %v3825 = vpack.c.bf16 %v1739, %v1635
  %v3826 = vpack.c.bf16 %v1947, %v1843
  %v3827 = vpack.c.bf16 %v2155, %v2051
  %v3828 = vpack.c.bf16 %v2363, %v2259
  %v3829 = vpack.c.bf16 %v2571, %v2467
  %v3830 = vpack.c.bf16 %v2779, %v2675
  %v3831 = vpack.c.bf16 %v2987, %v2883
  %v3832 = vpack.c.bf16 %v3195, %v3091
  %v3833 = vpack.c.bf16 %v3403, %v3299
  %v3834 = vpack.c.bf16 %v3611, %v3507
  %v3835 = vpack.c.bf16 %v3819, %v3715
  %v3836 = vld [vmem:[%s3] sm:$0xf]
  %v3837 = vld [vmem:[%s3 + $0x4] sm:$0xf]
  %v3838 = vld [vmem:[%s3 + $0x8] sm:$0xf]
  %v3839 = vld [vmem:[%s3 + $0xc] sm:$0xf]
  %v3840 = vld [vmem:[%s4] sm:$0x1]
  %v3841 = vlaneseq
  %v3842 = vshrl.u32 %v3841, 7
  %v3843 = vsub.s32 0, %v3842
  %v3844 = vrot.slane %v3840, %v3843
  %v3849 = vunpack.c.l.b16 %v3836
  %v3850 = vunpack.c.l.b16 %v3837
  %v3851 = vunpack.c.l.b16 %v3838
  %v3852 = vunpack.c.l.b16 %v3839
  %v3853 = vpack.c.b16 %v3850, %v3849
  %v3854 = vpack.c.b16 %v3852, %v3851
  %vm3857 = vcmask 261120
  %v3859 = vsel %vm3857, %v3820, 0
  %v3862 = vsel %vm3857, %v3821, 0
  %v3865 = vsel %vm3857, %v3822, 0
  %v3868 = vsel %vm3857, %v3823, 0
  %v3871 = vsel %vm3857, %v3824, 0
  %v3874 = vsel %vm3857, %v3825, 0
  %v3877 = vsel %vm3857, %v3826, 0
  %v3880 = vsel %vm3857, %v3827, 0
  %v3883 = vsel %vm3857, %v3828, 0
  %v3886 = vsel %vm3857, %v3829, 0
  %v3889 = vsel %vm3857, %v3830, 0
  %v3892 = vsel %vm3857, %v3831, 0
  %v3895 = vsel %vm3857, %v3832, 0
  %v3898 = vsel %vm3857, %v3833, 0
  %v3901 = vsel %vm3857, %v3834, 0
  %v3904 = vsel %vm3857, %v3835, 0
  %3906 = vmatprep.subr.bf16.mxu0 0
  %3907 = vmatpush1.bf16.msra.mxu0 %v3853
  %3908 = vmatprep.subr.bf16.mxu0 0
  %3909 = vmatpush1.bf16.msra.mxu0 %v3854
  %3910 = vmatprep.subr.bf16.mxu0 0
  %3911 = vmatpush1.bf16.msra.mxu0 0
  %3912 = vmatprep.subr.bf16.mxu0 0
  %3913 = vmatpush1.bf16.msra.mxu0 0
  %3914 = vmatprep.subr.bf16.mxu0 0
  %3915 = vmatpush1.bf16.msra.mxu0 0
  %3916 = vmatprep.subr.bf16.mxu0 0
  %3917 = vmatpush1.bf16.msra.mxu0 0
  %3918 = vmatprep.subr.bf16.mxu0 0
  %3919 = vmatpush1.bf16.msra.mxu0 0
  %3920 = vmatprep.subr.bf16.mxu0 0
  %3921 = vmatpush1.bf16.msra.mxu0 0
  %3922 = vmatprep.subr.bf16.mxu0 0
  %3923 = vmatpush1.bf16.msra.mxu0 0
  %3924 = vmatprep.subr.bf16.mxu0 0
  %3925 = vmatpush1.bf16.msra.mxu0 0
  %3926 = vmatprep.subr.bf16.mxu0 0
  %3927 = vmatpush1.bf16.msra.mxu0 0
  %3928 = vmatprep.subr.bf16.mxu0 0
  %3929 = vmatpush1.bf16.msra.mxu0 0
  %3930 = vmatprep.subr.bf16.mxu0 0
  %3931 = vmatpush1.bf16.msra.mxu0 0
  %3932 = vmatprep.subr.bf16.mxu0 0
  %3933 = vmatpush1.bf16.msra.mxu0 0
  %3934 = vmatprep.subr.bf16.mxu0 0
  %3935 = vmatpush1.bf16.msra.mxu0 0
  %3936 = vmatprep.subr.bf16.mxu0 0
  %3937 = vmatpush1.bf16.msra.mxu0 0
  %3938 = vmatprep.mubr.bf16.mxu0 0
  %3939 = vmatmul.mubr.bf16.gmra.mrb[0].mxu0 %v3859
  %v3940 = vpop.f32.mrb[0].mxu0
  %v3941 = vadd.f32 %v3844, %v3940
  %v3942 = vpop.f32.mrb[0].mxu0
  %v3943 = vpop.f32.mrb[0].mxu0
  %v3944 = vadd.f32 %v3844, %v3943
  %v3945 = vpop.f32.mrb[0].mxu0
  %3946 = vmatprep.mubr.bf16.mxu0 0
  %3947 = vmatmul.mubr.bf16.gmra.mrb[0].mxu0 %v3862
  %v3948 = vpop.f32.mrb[0].mxu0
  %v3949 = vadd.f32 %v3844, %v3948
  %v3950 = vpop.f32.mrb[0].mxu0
  %v3951 = vpop.f32.mrb[0].mxu0
  %v3952 = vadd.f32 %v3844, %v3951
  %v3953 = vpop.f32.mrb[0].mxu0
  %3954 = vmatprep.mubr.bf16.mxu0 0
  %3955 = vmatmul.mubr.bf16.gmra.mrb[0].mxu0 %v3865
  %v3956 = vpop.f32.mrb[0].mxu0
  %v3957 = vadd.f32 %v3844, %v3956
  %v3958 = vpop.f32.mrb[0].mxu0
  %v3959 = vpop.f32.mrb[0].mxu0
  %v3960 = vadd.f32 %v3844, %v3959
  %v3961 = vpop.f32.mrb[0].mxu0
  %3962 = vmatprep.mubr.bf16.mxu0 0
  %3963 = vmatmul.mubr.bf16.gmra.mrb[0].mxu0 %v3868
  %v3964 = vpop.f32.mrb[0].mxu0
  %v3965 = vadd.f32 %v3844, %v3964
  %v3966 = vpop.f32.mrb[0].mxu0
  %v3967 = vpop.f32.mrb[0].mxu0
  %v3968 = vadd.f32 %v3844, %v3967
  %v3969 = vpop.f32.mrb[0].mxu0
  %3970 = vmatprep.mubr.bf16.mxu0 0
  %3971 = vmatmul.mubr.bf16.gmra.mrb[0].mxu0 %v3871
  %v3972 = vpop.f32.mrb[0].mxu0
  %v3973 = vadd.f32 %v3844, %v3972
  %v3974 = vpop.f32.mrb[0].mxu0
  %v3975 = vpop.f32.mrb[0].mxu0
  %v3976 = vadd.f32 %v3844, %v3975
  %v3977 = vpop.f32.mrb[0].mxu0
  %3978 = vmatprep.mubr.bf16.mxu0 0
  %3979 = vmatmul.mubr.bf16.gmra.mrb[0].mxu0 %v3874
  %v3980 = vpop.f32.mrb[0].mxu0
  %v3981 = vadd.f32 %v3844, %v3980
  %v3982 = vpop.f32.mrb[0].mxu0
  %v3983 = vpop.f32.mrb[0].mxu0
  %v3984 = vadd.f32 %v3844, %v3983
  %v3985 = vpop.f32.mrb[0].mxu0
  %3986 = vmatprep.mubr.bf16.mxu0 0
  %3987 = vmatmul.mubr.bf16.gmra.mrb[0].mxu0 %v3877
  %v3988 = vpop.f32.mrb[0].mxu0
  %v3989 = vadd.f32 %v3844, %v3988
  %v3990 = vpop.f32.mrb[0].mxu0
  %v3991 = vpop.f32.mrb[0].mxu0
  %v3992 = vadd.f32 %v3844, %v3991
  %v3993 = vpop.f32.mrb[0].mxu0
  %3994 = vmatprep.mubr.bf16.mxu0 0
  %3995 = vmatmul.mubr.bf16.gmra.mrb[0].mxu0 %v3880
  %v3996 = vpop.f32.mrb[0].mxu0
  %v3997 = vadd.f32 %v3844, %v3996
  %v3998 = vpop.f32.mrb[0].mxu0
  %v3999 = vpop.f32.mrb[0].mxu0
  %v4000 = vadd.f32 %v3844, %v3999
  %v4001 = vpop.f32.mrb[0].mxu0
  %4002 = vmatprep.mubr.bf16.mxu0 0
  %4003 = vmatmul.mubr.bf16.gmra.mrb[0].mxu0 %v3883
  %v4004 = vpop.f32.mrb[0].mxu0
  %v4005 = vadd.f32 %v3844, %v4004
  %v4006 = vpop.f32.mrb[0].mxu0
  %v4007 = vpop.f32.mrb[0].mxu0
  %v4008 = vadd.f32 %v3844, %v4007
  %v4009 = vpop.f32.mrb[0].mxu0
  %4010 = vmatprep.mubr.bf16.mxu0 0
  %4011 = vmatmul.mubr.bf16.gmra.mrb[0].mxu0 %v3886
  %v4012 = vpop.f32.mrb[0].mxu0
  %v4013 = vadd.f32 %v3844, %v4012
  %v4014 = vpop.f32.mrb[0].mxu0
  %v4015 = vpop.f32.mrb[0].mxu0
  %v4016 = vadd.f32 %v3844, %v4015
  %v4017 = vpop.f32.mrb[0].mxu0
  %4018 = vmatprep.mubr.bf16.mxu0 0
  %4019 = vmatmul.mubr.bf16.gmra.mrb[0].mxu0 %v3889
  %v4020 = vpop.f32.mrb[0].mxu0
  %v4021 = vadd.f32 %v3844, %v4020
  %v4022 = vpop.f32.mrb[0].mxu0
  %v4023 = vpop.f32.mrb[0].mxu0
  %v4024 = vadd.f32 %v3844, %v4023
  %v4025 = vpop.f32.mrb[0].mxu0
  %4026 = vmatprep.mubr.bf16.mxu0 0
  %4027 = vmatmul.mubr.bf16.gmra.mrb[0].mxu0 %v3892
  %v4028 = vpop.f32.mrb[0].mxu0
  %v4029 = vadd.f32 %v3844, %v4028
  %v4030 = vpop.f32.mrb[0].mxu0
  %v4031 = vpop.f32.mrb[0].mxu0
  %v4032 = vadd.f32 %v3844, %v4031
  %v4033 = vpop.f32.mrb[0].mxu0
  %4034 = vmatprep.mubr.bf16.mxu0 0
  %4035 = vmatmul.mubr.bf16.gmra.mrb[0].mxu0 %v3895
  %v4036 = vpop.f32.mrb[0].mxu0
  %v4037 = vadd.f32 %v3844, %v4036
  %v4038 = vpop.f32.mrb[0].mxu0
  %v4039 = vpop.f32.mrb[0].mxu0
  %v4040 = vadd.f32 %v3844, %v4039
  %v4041 = vpop.f32.mrb[0].mxu0
  %4042 = vmatprep.mubr.bf16.mxu0 0
  %4043 = vmatmul.mubr.bf16.gmra.mrb[0].mxu0 %v3898
  %v4044 = vpop.f32.mrb[0].mxu0
  %v4045 = vadd.f32 %v3844, %v4044
  %v4046 = vpop.f32.mrb[0].mxu0
  %v4047 = vpop.f32.mrb[0].mxu0
  %v4048 = vadd.f32 %v3844, %v4047
  %v4049 = vpop.f32.mrb[0].mxu0
  %4050 = vmatprep.mubr.bf16.mxu0 0
  %4051 = vmatmul.mubr.bf16.gmra.mrb[0].mxu0 %v3901
  %v4052 = vpop.f32.mrb[0].mxu0
  %v4053 = vadd.f32 %v3844, %v4052
  %v4054 = vpop.f32.mrb[0].mxu0
  %v4055 = vpop.f32.mrb[0].mxu0
  %v4056 = vadd.f32 %v3844, %v4055
  %v4057 = vpop.f32.mrb[0].mxu0
  %4058 = vmatprep.mubr.bf16.mxu0 0
  %4059 = vmatmul.mubr.bf16.gmra.mrb[0].mxu0 %v3904
  %v4060 = vpop.f32.mrb[0].mxu0
  %v4061 = vadd.f32 %v3844, %v4060
  %v4062 = vpop.f32.mrb[0].mxu0
  %v4063 = vpop.f32.mrb[0].mxu0
  %v4064 = vadd.f32 %v3844, %v4063
  %v4065 = vpop.f32.mrb[0].mxu0
  %4066 = vdwg.mxu0
  %4099 = vrot.lane.b32.xlu0 %v3941, 32
  %v4100 = vpop.permute.xlu0 %4099
  %4101 = vrot.lane.b32.xlu0 %v3944, 32
  %v4102 = vpop.permute.xlu0 %4101
  %4103 = vrot.lane.b32.xlu0 %v3949, 32
  %v4104 = vpop.permute.xlu0 %4103
  %4105 = vrot.lane.b32.xlu0 %v3952, 32
  %v4106 = vpop.permute.xlu0 %4105
  %4107 = vrot.lane.b32.xlu0 %v3957, 32
  %v4108 = vpop.permute.xlu0 %4107
  %4109 = vrot.lane.b32.xlu0 %v3960, 32
  %v4110 = vpop.permute.xlu0 %4109
  %4111 = vrot.lane.b32.xlu0 %v3965, 32
  %v4112 = vpop.permute.xlu0 %4111
  %4113 = vrot.lane.b32.xlu0 %v3968, 32
  %v4114 = vpop.permute.xlu0 %4113
  %4115 = vrot.lane.b32.xlu0 %v3973, 32
  %v4116 = vpop.permute.xlu0 %4115
  %4117 = vrot.lane.b32.xlu0 %v3976, 32
  %v4118 = vpop.permute.xlu0 %4117
  %4119 = vrot.lane.b32.xlu0 %v3981, 32
  %v4120 = vpop.permute.xlu0 %4119
  %4121 = vrot.lane.b32.xlu0 %v3984, 32
  %v4122 = vpop.permute.xlu0 %4121
  %4123 = vrot.lane.b32.xlu0 %v3989, 32
  %v4124 = vpop.permute.xlu0 %4123
  %4125 = vrot.lane.b32.xlu0 %v3992, 32
  %v4126 = vpop.permute.xlu0 %4125
  %4127 = vrot.lane.b32.xlu0 %v3997, 32
  %v4128 = vpop.permute.xlu0 %4127
  %4129 = vrot.lane.b32.xlu0 %v4000, 32
  %v4130 = vpop.permute.xlu0 %4129
  %4131 = vrot.lane.b32.xlu0 %v4005, 32
  %v4132 = vpop.permute.xlu0 %4131
  %4133 = vrot.lane.b32.xlu0 %v4008, 32
  %v4134 = vpop.permute.xlu0 %4133
  %4135 = vrot.lane.b32.xlu0 %v4013, 32
  %v4136 = vpop.permute.xlu0 %4135
  %4137 = vrot.lane.b32.xlu0 %v4016, 32
  %v4138 = vpop.permute.xlu0 %4137
  %4139 = vrot.lane.b32.xlu0 %v4021, 32
  %v4140 = vpop.permute.xlu0 %4139
  %4141 = vrot.lane.b32.xlu0 %v4024, 32
  %v4142 = vpop.permute.xlu0 %4141
  %4143 = vrot.lane.b32.xlu0 %v4029, 32
  %v4144 = vpop.permute.xlu0 %4143
  %4145 = vrot.lane.b32.xlu0 %v4032, 32
  %v4146 = vpop.permute.xlu0 %4145
  %4147 = vrot.lane.b32.xlu0 %v4037, 32
  %v4148 = vpop.permute.xlu0 %4147
  %4149 = vrot.lane.b32.xlu0 %v4040, 32
  %v4150 = vpop.permute.xlu0 %4149
  %4151 = vrot.lane.b32.xlu0 %v4045, 32
  %v4152 = vpop.permute.xlu0 %4151
  %4153 = vrot.lane.b32.xlu0 %v4048, 32
  %v4154 = vpop.permute.xlu0 %4153
  %4155 = vrot.lane.b32.xlu0 %v4053, 32
  %v4156 = vpop.permute.xlu0 %4155
  %4157 = vrot.lane.b32.xlu0 %v4056, 32
  %v4158 = vpop.permute.xlu0 %4157
  %4159 = vrot.lane.b32.xlu0 %v4061, 32
  %v4160 = vpop.permute.xlu0 %4159
  %4161 = vrot.lane.b32.xlu0 %v4064, 32
  %v4162 = vpop.permute.xlu0 %4161
  %v4195 = vmul.f32 %v595, %v4100
  %v4196 = vmul.f32 %v699, %v4102
  %v4197 = vmul.f32 %v803, %v4104
  %v4198 = vmul.f32 %v907, %v4106
  %v4199 = vmul.f32 %v1011, %v4108
  %v4200 = vmul.f32 %v1115, %v4110
  %v4201 = vmul.f32 %v1219, %v4112
  %v4202 = vmul.f32 %v1323, %v4114
  %v4203 = vmul.f32 %v1427, %v4116
  %v4204 = vmul.f32 %v1531, %v4118
  %v4205 = vmul.f32 %v1635, %v4120
  %v4206 = vmul.f32 %v1739, %v4122
  %v4207 = vmul.f32 %v1843, %v4124
  %v4208 = vmul.f32 %v1947, %v4126
  %v4209 = vmul.f32 %v2051, %v4128
  %v4210 = vmul.f32 %v2155, %v4130
  %v4211 = vmul.f32 %v2259, %v4132
  %v4212 = vmul.f32 %v2363, %v4134
  %v4213 = vmul.f32 %v2467, %v4136
  %v4214 = vmul.f32 %v2571, %v4138
  %v4215 = vmul.f32 %v2675, %v4140
  %v4216 = vmul.f32 %v2779, %v4142
  %v4217 = vmul.f32 %v2883, %v4144
  %v4218 = vmul.f32 %v2987, %v4146
  %v4219 = vmul.f32 %v3091, %v4148
  %v4220 = vmul.f32 %v3195, %v4150
  %v4221 = vmul.f32 %v3299, %v4152
  %v4222 = vmul.f32 %v3403, %v4154
  %v4223 = vmul.f32 %v3507, %v4156
  %v4224 = vmul.f32 %v3611, %v4158
  %v4225 = vmul.f32 %v3715, %v4160
  %v4226 = vmul.f32 %v3819, %v4162
  %v4227 = vpack.c.bf16 %v4196, %v4195
  %v4228 = vpack.c.bf16 %v4198, %v4197
  %v4229 = vpack.c.bf16 %v4200, %v4199
  %v4230 = vpack.c.bf16 %v4202, %v4201
  %v4231 = vpack.c.bf16 %v4204, %v4203
  %v4232 = vpack.c.bf16 %v4206, %v4205
  %v4233 = vpack.c.bf16 %v4208, %v4207
  %v4234 = vpack.c.bf16 %v4210, %v4209
  %v4235 = vpack.c.bf16 %v4212, %v4211
  %v4236 = vpack.c.bf16 %v4214, %v4213
  %v4237 = vpack.c.bf16 %v4216, %v4215
  %v4238 = vpack.c.bf16 %v4218, %v4217
  %v4239 = vpack.c.bf16 %v4220, %v4219
  %v4240 = vpack.c.bf16 %v4222, %v4221
  %v4241 = vpack.c.bf16 %v4224, %v4223
  %v4242 = vpack.c.bf16 %v4226, %v4225
  %s4243 = scalar_lea.vmem %s3, 16
  %v4244 = vld [vmem:[%s4243] sm:$0xf]
  %v4245 = vld [vmem:[%s4243 + $0x4] sm:$0xf]
  %v4246 = vld [vmem:[%s4243 + $0x8] sm:$0xf]
  %v4247 = vld [vmem:[%s4243 + $0xc] sm:$0xf]
  %v4248 = vld [vmem:[%s4 + $0x1] sm:$0x1]
  %v4249 = vlaneseq
  %v4250 = vshrl.u32 %v4249, 7
  %v4251 = vsub.s32 0, %v4250
  %v4252 = vrot.slane %v4248, %v4251
  %4269 = vrot.lane.b32.xlu0 %v4227, 96
  %v4270 = vpop.permute.xlu0 %4269
  %4271 = vrot.lane.b32.xlu0 %v4228, 96
  %v4272 = vpop.permute.xlu0 %4271
  %4273 = vrot.lane.b32.xlu0 %v4229, 96
  %v4274 = vpop.permute.xlu0 %4273
  %4275 = vrot.lane.b32.xlu0 %v4230, 96
  %v4276 = vpop.permute.xlu0 %4275
  %4277 = vrot.lane.b32.xlu0 %v4231, 96
  %v4278 = vpop.permute.xlu0 %4277
  %4279 = vrot.lane.b32.xlu0 %v4232, 96
  %v4280 = vpop.permute.xlu0 %4279
  %4281 = vrot.lane.b32.xlu0 %v4233, 96
  %v4282 = vpop.permute.xlu0 %4281
  %4283 = vrot.lane.b32.xlu0 %v4234, 96
  %v4284 = vpop.permute.xlu0 %4283
  %4285 = vrot.lane.b32.xlu0 %v4235, 96
  %v4286 = vpop.permute.xlu0 %4285
  %4287 = vrot.lane.b32.xlu0 %v4236, 96
  %v4288 = vpop.permute.xlu0 %4287
  %4289 = vrot.lane.b32.xlu0 %v4237, 96
  %v4290 = vpop.permute.xlu0 %4289
  %4291 = vrot.lane.b32.xlu0 %v4238, 96
  %v4292 = vpop.permute.xlu0 %4291
  %4293 = vrot.lane.b32.xlu0 %v4239, 96
  %v4294 = vpop.permute.xlu0 %4293
  %4295 = vrot.lane.b32.xlu0 %v4240, 96
  %v4296 = vpop.permute.xlu0 %4295
  %4297 = vrot.lane.b32.xlu0 %v4241, 96
  %v4298 = vpop.permute.xlu0 %4297
  %4299 = vrot.lane.b32.xlu0 %v4242, 96
  %v4300 = vpop.permute.xlu0 %4299
  %v4305 = vunpack.c.l.b16 %v4244
  %v4306 = vunpack.c.l.b16 %v4245
  %v4307 = vunpack.c.l.b16 %v4246
  %v4308 = vunpack.c.l.b16 %v4247
  %v4309 = vpack.c.b16 %v4306, %v4305
  %v4310 = vpack.c.b16 %v4308, %v4307
  %v4314 = vsel %vm3857, %v4270, 0
  %v4317 = vsel %vm3857, %v4272, 0
  %v4320 = vsel %vm3857, %v4274, 0
  %v4323 = vsel %vm3857, %v4276, 0
  %v4326 = vsel %vm3857, %v4278, 0
  %v4329 = vsel %vm3857, %v4280, 0
  %v4332 = vsel %vm3857, %v4282, 0
  %v4335 = vsel %vm3857, %v4284, 0
  %v4338 = vsel %vm3857, %v4286, 0
  %v4341 = vsel %vm3857, %v4288, 0
  %v4344 = vsel %vm3857, %v4290, 0
  %v4347 = vsel %vm3857, %v4292, 0
  %v4350 = vsel %vm3857, %v4294, 0
  %v4353 = vsel %vm3857, %v4296, 0
  %v4356 = vsel %vm3857, %v4298, 0
  %v4359 = vsel %vm3857, %v4300, 0
  %4361 = vmatprep.subr.bf16.mxu0 0
  %4362 = vmatpush1.bf16.msra.mxu0 %v4309
  %4363 = vmatprep.subr.bf16.mxu0 0
  %4364 = vmatpush1.bf16.msra.mxu0 %v4310
  %4365 = vmatprep.subr.bf16.mxu0 0
  %4366 = vmatpush1.bf16.msra.mxu0 0
  %4367 = vmatprep.subr.bf16.mxu0 0
  %4368 = vmatpush1.bf16.msra.mxu0 0
  %4369 = vmatprep.subr.bf16.mxu0 0
  %4370 = vmatpush1.bf16.msra.mxu0 0
  %4371 = vmatprep.subr.bf16.mxu0 0
  %4372 = vmatpush1.bf16.msra.mxu0 0
  %4373 = vmatprep.subr.bf16.mxu0 0
  %4374 = vmatpush1.bf16.msra.mxu0 0
  %4375 = vmatprep.subr.bf16.mxu0 0
  %4376 = vmatpush1.bf16.msra.mxu0 0
  %4377 = vmatprep.subr.bf16.mxu0 0
  %4378 = vmatpush1.bf16.msra.mxu0 0
  %4379 = vmatprep.subr.bf16.mxu0 0
  %4380 = vmatpush1.bf16.msra.mxu0 0
  %4381 = vmatprep.subr.bf16.mxu0 0
  %4382 = vmatpush1.bf16.msra.mxu0 0
  %4383 = vmatprep.subr.bf16.mxu0 0
  %4384 = vmatpush1.bf16.msra.mxu0 0
  %4385 = vmatprep.subr.bf16.mxu0 0
  %4386 = vmatpush1.bf16.msra.mxu0 0
  %4387 = vmatprep.subr.bf16.mxu0 0
  %4388 = vmatpush1.bf16.msra.mxu0 0
  %4389 = vmatprep.subr.bf16.mxu0 0
  %4390 = vmatpush1.bf16.msra.mxu0 0
  %4391 = vmatprep.subr.bf16.mxu0 0
  %4392 = vmatpush1.bf16.msra.mxu0 0
  %4393 = vmatprep.mubr.bf16.mxu0 0
  %4394 = vmatmul.mubr.bf16.gmra.mrb[0].mxu0 %v4314
  %v4395 = vpop.f32.mrb[0].mxu0
  %v4396 = vadd.f32 %v4252, %v4395
  %v4397 = vpop.f32.mrb[0].mxu0
  %v4398 = vpop.f32.mrb[0].mxu0
  %v4399 = vadd.f32 %v4252, %v4398
  %v4400 = vpop.f32.mrb[0].mxu0
  %4401 = vmatprep.mubr.bf16.mxu0 0
  %4402 = vmatmul.mubr.bf16.gmra.mrb[0].mxu0 %v4317
  %v4403 = vpop.f32.mrb[0].mxu0
  %v4404 = vadd.f32 %v4252, %v4403
  %v4405 = vpop.f32.mrb[0].mxu0
  %v4406 = vpop.f32.mrb[0].mxu0
  %v4407 = vadd.f32 %v4252, %v4406
  %v4408 = vpop.f32.mrb[0].mxu0
  %4409 = vmatprep.mubr.bf16.mxu0 0
  %4410 = vmatmul.mubr.bf16.gmra.mrb[0].mxu0 %v4320
  %v4411 = vpop.f32.mrb[0].mxu0
  %v4412 = vadd.f32 %v4252, %v4411
  %v4413 = vpop.f32.mrb[0].mxu0
  %v4414 = vpop.f32.mrb[0].mxu0
  %v4415 = vadd.f32 %v4252, %v4414
  %v4416 = vpop.f32.mrb[0].mxu0
  %4417 = vmatprep.mubr.bf16.mxu0 0
  %4418 = vmatmul.mubr.bf16.gmra.mrb[0].mxu0 %v4323
  %v4419 = vpop.f32.mrb[0].mxu0
  %v4420 = vadd.f32 %v4252, %v4419
  %v4421 = vpop.f32.mrb[0].mxu0
  %v4422 = vpop.f32.mrb[0].mxu0
  %v4423 = vadd.f32 %v4252, %v4422
  %v4424 = vpop.f32.mrb[0].mxu0
  %4425 = vmatprep.mubr.bf16.mxu0 0
  %4426 = vmatmul.mubr.bf16.gmra.mrb[0].mxu0 %v4326
  %v4427 = vpop.f32.mrb[0].mxu0
  %v4428 = vadd.f32 %v4252, %v4427
  %v4429 = vpop.f32.mrb[0].mxu0
  %v4430 = vpop.f32.mrb[0].mxu0
  %v4431 = vadd.f32 %v4252, %v4430
  %v4432 = vpop.f32.mrb[0].mxu0
  %4433 = vmatprep.mubr.bf16.mxu0 0
  %4434 = vmatmul.mubr.bf16.gmra.mrb[0].mxu0 %v4329
  %v4435 = vpop.f32.mrb[0].mxu0
  %v4436 = vadd.f32 %v4252, %v4435
  %v4437 = vpop.f32.mrb[0].mxu0
  %v4438 = vpop.f32.mrb[0].mxu0
  %v4439 = vadd.f32 %v4252, %v4438
  %v4440 = vpop.f32.mrb[0].mxu0
  %4441 = vmatprep.mubr.bf16.mxu0 0
  %4442 = vmatmul.mubr.bf16.gmra.mrb[0].mxu0 %v4332
  %v4443 = vpop.f32.mrb[0].mxu0
  %v4444 = vadd.f32 %v4252, %v4443
  %v4445 = vpop.f32.mrb[0].mxu0
  %v4446 = vpop.f32.mrb[0].mxu0
  %v4447 = vadd.f32 %v4252, %v4446
  %v4448 = vpop.f32.mrb[0].mxu0
  %4449 = vmatprep.mubr.bf16.mxu0 0
  %4450 = vmatmul.mubr.bf16.gmra.mrb[0].mxu0 %v4335
  %v4451 = vpop.f32.mrb[0].mxu0
  %v4452 = vadd.f32 %v4252, %v4451
  %v4453 = vpop.f32.mrb[0].mxu0
  %v4454 = vpop.f32.mrb[0].mxu0
  %v4455 = vadd.f32 %v4252, %v4454
  %v4456 = vpop.f32.mrb[0].mxu0
  %4457 = vmatprep.mubr.bf16.mxu0 0
  %4458 = vmatmul.mubr.bf16.gmra.mrb[0].mxu0 %v4338
  %v4459 = vpop.f32.mrb[0].mxu0
  %v4460 = vadd.f32 %v4252, %v4459
  %v4461 = vpop.f32.mrb[0].mxu0
  %v4462 = vpop.f32.mrb[0].mxu0
  %v4463 = vadd.f32 %v4252, %v4462
  %v4464 = vpop.f32.mrb[0].mxu0
  %4465 = vmatprep.mubr.bf16.mxu0 0
  %4466 = vmatmul.mubr.bf16.gmra.mrb[0].mxu0 %v4341
  %v4467 = vpop.f32.mrb[0].mxu0
  %v4468 = vadd.f32 %v4252, %v4467
  %v4469 = vpop.f32.mrb[0].mxu0
  %v4470 = vpop.f32.mrb[0].mxu0
  %v4471 = vadd.f32 %v4252, %v4470
  %v4472 = vpop.f32.mrb[0].mxu0
  %4473 = vmatprep.mubr.bf16.mxu0 0
  %4474 = vmatmul.mubr.bf16.gmra.mrb[0].mxu0 %v4344
  %v4475 = vpop.f32.mrb[0].mxu0
  %v4476 = vadd.f32 %v4252, %v4475
  %v4477 = vpop.f32.mrb[0].mxu0
  %v4478 = vpop.f32.mrb[0].mxu0
  %v4479 = vadd.f32 %v4252, %v4478
  %v4480 = vpop.f32.mrb[0].mxu0
  %4481 = vmatprep.mubr.bf16.mxu0 0
  %4482 = vmatmul.mubr.bf16.gmra.mrb[0].mxu0 %v4347
  %v4483 = vpop.f32.mrb[0].mxu0
  %v4484 = vadd.f32 %v4252, %v4483
  %v4485 = vpop.f32.mrb[0].mxu0
  %v4486 = vpop.f32.mrb[0].mxu0
  %v4487 = vadd.f32 %v4252, %v4486
  %v4488 = vpop.f32.mrb[0].mxu0
  %4489 = vmatprep.mubr.bf16.mxu0 0
  %4490 = vmatmul.mubr.bf16.gmra.mrb[0].mxu0 %v4350
  %v4491 = vpop.f32.mrb[0].mxu0
  %v4492 = vadd.f32 %v4252, %v4491
  %v4493 = vpop.f32.mrb[0].mxu0
  %v4494 = vpop.f32.mrb[0].mxu0
  %v4495 = vadd.f32 %v4252, %v4494
  %v4496 = vpop.f32.mrb[0].mxu0
  %4497 = vmatprep.mubr.bf16.mxu0 0
  %4498 = vmatmul.mubr.bf16.gmra.mrb[0].mxu0 %v4353
  %v4499 = vpop.f32.mrb[0].mxu0
  %v4500 = vadd.f32 %v4252, %v4499
  %v4501 = vpop.f32.mrb[0].mxu0
  %v4502 = vpop.f32.mrb[0].mxu0
  %v4503 = vadd.f32 %v4252, %v4502
  %v4504 = vpop.f32.mrb[0].mxu0
  %4505 = vmatprep.mubr.bf16.mxu0 0
  %4506 = vmatmul.mubr.bf16.gmra.mrb[0].mxu0 %v4356
  %v4507 = vpop.f32.mrb[0].mxu0
  %v4508 = vadd.f32 %v4252, %v4507
  %v4509 = vpop.f32.mrb[0].mxu0
  %v4510 = vpop.f32.mrb[0].mxu0
  %v4511 = vadd.f32 %v4252, %v4510
  %v4512 = vpop.f32.mrb[0].mxu0
  %4513 = vmatprep.mubr.bf16.mxu0 0
  %4514 = vmatmul.mubr.bf16.gmra.mrb[0].mxu0 %v4359
  %v4515 = vpop.f32.mrb[0].mxu0
  %v4516 = vadd.f32 %v4252, %v4515
  %v4517 = vpop.f32.mrb[0].mxu0
  %v4518 = vpop.f32.mrb[0].mxu0
  %v4519 = vadd.f32 %v4252, %v4518
  %v4520 = vpop.f32.mrb[0].mxu0
  %4521 = vdwg.mxu0
  %4554 = vrot.lane.b32.xlu0 %v4396, 64
  %v4555 = vpop.permute.xlu0 %4554
  %4556 = vrot.lane.b32.xlu0 %v4399, 64
  %v4557 = vpop.permute.xlu0 %4556
  %4558 = vrot.lane.b32.xlu0 %v4404, 64
  %v4559 = vpop.permute.xlu0 %4558
  %4560 = vrot.lane.b32.xlu0 %v4407, 64
  %v4561 = vpop.permute.xlu0 %4560
  %4562 = vrot.lane.b32.xlu0 %v4412, 64
  %v4563 = vpop.permute.xlu0 %4562
  %4564 = vrot.lane.b32.xlu0 %v4415, 64
  %v4565 = vpop.permute.xlu0 %4564
  %4566 = vrot.lane.b32.xlu0 %v4420, 64
  %v4567 = vpop.permute.xlu0 %4566
  %4568 = vrot.lane.b32.xlu0 %v4423, 64
  %v4569 = vpop.permute.xlu0 %4568
  %4570 = vrot.lane.b32.xlu0 %v4428, 64
  %v4571 = vpop.permute.xlu0 %4570
  %4572 = vrot.lane.b32.xlu0 %v4431, 64
  %v4573 = vpop.permute.xlu0 %4572
  %4574 = vrot.lane.b32.xlu0 %v4436, 64
  %v4575 = vpop.permute.xlu0 %4574
  %4576 = vrot.lane.b32.xlu0 %v4439, 64
  %v4577 = vpop.permute.xlu0 %4576
  %4578 = vrot.lane.b32.xlu0 %v4444, 64
  %v4579 = vpop.permute.xlu0 %4578
  %4580 = vrot.lane.b32.xlu0 %v4447, 64
  %v4581 = vpop.permute.xlu0 %4580
  %4582 = vrot.lane.b32.xlu0 %v4452, 64
  %v4583 = vpop.permute.xlu0 %4582
  %4584 = vrot.lane.b32.xlu0 %v4455, 64
  %v4585 = vpop.permute.xlu0 %4584
  %4586 = vrot.lane.b32.xlu0 %v4460, 64
  %v4587 = vpop.permute.xlu0 %4586
  %4588 = vrot.lane.b32.xlu0 %v4463, 64
  %v4589 = vpop.permute.xlu0 %4588
  %4590 = vrot.lane.b32.xlu0 %v4468, 64
  %v4591 = vpop.permute.xlu0 %4590
  %4592 = vrot.lane.b32.xlu0 %v4471, 64
  %v4593 = vpop.permute.xlu0 %4592
  %4594 = vrot.lane.b32.xlu0 %v4476, 64
  %v4595 = vpop.permute.xlu0 %4594
  %4596 = vrot.lane.b32.xlu0 %v4479, 64
  %v4597 = vpop.permute.xlu0 %4596
  %4598 = vrot.lane.b32.xlu0 %v4484, 64
  %v4599 = vpop.permute.xlu0 %4598
  %4600 = vrot.lane.b32.xlu0 %v4487, 64
  %v4601 = vpop.permute.xlu0 %4600
  %4602 = vrot.lane.b32.xlu0 %v4492, 64
  %v4603 = vpop.permute.xlu0 %4602
  %4604 = vrot.lane.b32.xlu0 %v4495, 64
  %v4605 = vpop.permute.xlu0 %4604
  %4606 = vrot.lane.b32.xlu0 %v4500, 64
  %v4607 = vpop.permute.xlu0 %4606
  %4608 = vrot.lane.b32.xlu0 %v4503, 64
  %v4609 = vpop.permute.xlu0 %4608
  %4610 = vrot.lane.b32.xlu0 %v4508, 64
  %v4611 = vpop.permute.xlu0 %4610
  %4612 = vrot.lane.b32.xlu0 %v4511, 64
  %v4613 = vpop.permute.xlu0 %4612
  %4614 = vrot.lane.b32.xlu0 %v4516, 64
  %v4615 = vpop.permute.xlu0 %4614
  %4616 = vrot.lane.b32.xlu0 %v4519, 64
  %v4617 = vpop.permute.xlu0 %4616
  %v4650 = vmul.f32 %v595, %v4555
  %v4651 = vmul.f32 %v699, %v4557
  %v4652 = vmul.f32 %v803, %v4559
  %v4653 = vmul.f32 %v907, %v4561
  %v4654 = vmul.f32 %v1011, %v4563
  %v4655 = vmul.f32 %v1115, %v4565
  %v4656 = vmul.f32 %v1219, %v4567
  %v4657 = vmul.f32 %v1323, %v4569
  %v4658 = vmul.f32 %v1427, %v4571
  %v4659 = vmul.f32 %v1531, %v4573
  %v4660 = vmul.f32 %v1635, %v4575
  %v4661 = vmul.f32 %v1739, %v4577
  %v4662 = vmul.f32 %v1843, %v4579
  %v4663 = vmul.f32 %v1947, %v4581
  %v4664 = vmul.f32 %v2051, %v4583
  %v4665 = vmul.f32 %v2155, %v4585
  %v4666 = vmul.f32 %v2259, %v4587
  %v4667 = vmul.f32 %v2363, %v4589
  %v4668 = vmul.f32 %v2467, %v4591
  %v4669 = vmul.f32 %v2571, %v4593
  %v4670 = vmul.f32 %v2675, %v4595
  %v4671 = vmul.f32 %v2779, %v4597
  %v4672 = vmul.f32 %v2883, %v4599
  %v4673 = vmul.f32 %v2987, %v4601
  %v4674 = vmul.f32 %v3091, %v4603
  %v4675 = vmul.f32 %v3195, %v4605
  %v4676 = vmul.f32 %v3299, %v4607
  %v4677 = vmul.f32 %v3403, %v4609
  %v4678 = vmul.f32 %v3507, %v4611
  %v4679 = vmul.f32 %v3611, %v4613
  %v4680 = vmul.f32 %v3715, %v4615
  %v4681 = vmul.f32 %v3819, %v4617
  %v4682 = vpack.c.bf16 %v4651, %v4650
  %v4683 = vpack.c.bf16 %v4653, %v4652
  %v4684 = vpack.c.bf16 %v4655, %v4654
  %v4685 = vpack.c.bf16 %v4657, %v4656
  %v4686 = vpack.c.bf16 %v4659, %v4658
  %v4687 = vpack.c.bf16 %v4661, %v4660
  %v4688 = vpack.c.bf16 %v4663, %v4662
  %v4689 = vpack.c.bf16 %v4665, %v4664
  %v4690 = vpack.c.bf16 %v4667, %v4666
  %v4691 = vpack.c.bf16 %v4669, %v4668
  %v4692 = vpack.c.bf16 %v4671, %v4670
  %v4693 = vpack.c.bf16 %v4673, %v4672
  %v4694 = vpack.c.bf16 %v4675, %v4674
  %v4695 = vpack.c.bf16 %v4677, %v4676
  %v4696 = vpack.c.bf16 %v4679, %v4678
  %v4697 = vpack.c.bf16 %v4681, %v4680
  %s4698 = scalar_lea.vmem %s3, 32
  %v4699 = vld [vmem:[%s4698] sm:$0xf]
  %v4700 = vld [vmem:[%s4698 + $0x4] sm:$0xf]
  %v4701 = vld [vmem:[%s4698 + $0x8] sm:$0xf]
  %v4702 = vld [vmem:[%s4698 + $0xc] sm:$0xf]
  %v4703 = vld [vmem:[%s4 + $0x2] sm:$0x1]
  %v4704 = vlaneseq
  %v4705 = vshrl.u32 %v4704, 7
  %v4706 = vsub.s32 0, %v4705
  %v4707 = vrot.slane %v4703, %v4706
  %4724 = vrot.lane.b32.xlu0 %v4682, 64
  %v4725 = vpop.permute.xlu0 %4724
  %4726 = vrot.lane.b32.xlu0 %v4683, 64
  %v4727 = vpop.permute.xlu0 %4726
  %4728 = vrot.lane.b32.xlu0 %v4684, 64
  %v4729 = vpop.permute.xlu0 %4728
  %4730 = vrot.lane.b32.xlu0 %v4685, 64
  %v4731 = vpop.permute.xlu0 %4730
  %4732 = vrot.lane.b32.xlu0 %v4686, 64
  %v4733 = vpop.permute.xlu0 %4732
  %4734 = vrot.lane.b32.xlu0 %v4687, 64
  %v4735 = vpop.permute.xlu0 %4734
  %4736 = vrot.lane.b32.xlu0 %v4688, 64
  %v4737 = vpop.permute.xlu0 %4736
  %4738 = vrot.lane.b32.xlu0 %v4689, 64
  %v4739 = vpop.permute.xlu0 %4738
  %4740 = vrot.lane.b32.xlu0 %v4690, 64
  %v4741 = vpop.permute.xlu0 %4740
  %4742 = vrot.lane.b32.xlu0 %v4691, 64
  %v4743 = vpop.permute.xlu0 %4742
  %4744 = vrot.lane.b32.xlu0 %v4692, 64
  %v4745 = vpop.permute.xlu0 %4744
  %4746 = vrot.lane.b32.xlu0 %v4693, 64
  %v4747 = vpop.permute.xlu0 %4746
  %4748 = vrot.lane.b32.xlu0 %v4694, 64
  %v4749 = vpop.permute.xlu0 %4748
  %4750 = vrot.lane.b32.xlu0 %v4695, 64
  %v4751 = vpop.permute.xlu0 %4750
  %4752 = vrot.lane.b32.xlu0 %v4696, 64
  %v4753 = vpop.permute.xlu0 %4752
  %4754 = vrot.lane.b32.xlu0 %v4697, 64
  %v4755 = vpop.permute.xlu0 %4754
  %v4760 = vunpack.c.l.b16 %v4699
  %v4761 = vunpack.c.l.b16 %v4700
  %v4762 = vunpack.c.l.b16 %v4701
  %v4763 = vunpack.c.l.b16 %v4702
  %v4764 = vpack.c.b16 %v4761, %v4760
  %v4765 = vpack.c.b16 %v4763, %v4762
  %v4769 = vsel %vm3857, %v4725, 0
  %v4772 = vsel %vm3857, %v4727, 0
  %v4775 = vsel %vm3857, %v4729, 0
  %v4778 = vsel %vm3857, %v4731, 0
  %v4781 = vsel %vm3857, %v4733, 0
  %v4784 = vsel %vm3857, %v4735, 0
  %v4787 = vsel %vm3857, %v4737, 0
  %v4790 = vsel %vm3857, %v4739, 0
  %v4793 = vsel %vm3857, %v4741, 0
  %v4796 = vsel %vm3857, %v4743, 0
  %v4799 = vsel %vm3857, %v4745, 0
  %v4802 = vsel %vm3857, %v4747, 0
  %v4805 = vsel %vm3857, %v4749, 0
  %v4808 = vsel %vm3857, %v4751, 0
  %v4811 = vsel %vm3857, %v4753, 0
  %v4814 = vsel %vm3857, %v4755, 0
  %4816 = vmatprep.subr.bf16.mxu0 0
  %4817 = vmatpush1.bf16.msra.mxu0 %v4764
  %4818 = vmatprep.subr.bf16.mxu0 0
  %4819 = vmatpush1.bf16.msra.mxu0 %v4765
  %4820 = vmatprep.subr.bf16.mxu0 0
  %4821 = vmatpush1.bf16.msra.mxu0 0
  %4822 = vmatprep.subr.bf16.mxu0 0
  %4823 = vmatpush1.bf16.msra.mxu0 0
  %4824 = vmatprep.subr.bf16.mxu0 0
  %4825 = vmatpush1.bf16.msra.mxu0 0
  %4826 = vmatprep.subr.bf16.mxu0 0
  %4827 = vmatpush1.bf16.msra.mxu0 0
  %4828 = vmatprep.subr.bf16.mxu0 0
  %4829 = vmatpush1.bf16.msra.mxu0 0
  %4830 = vmatprep.subr.bf16.mxu0 0
  %4831 = vmatpush1.bf16.msra.mxu0 0
  %4832 = vmatprep.subr.bf16.mxu0 0
  %4833 = vmatpush1.bf16.msra.mxu0 0
  %4834 = vmatprep.subr.bf16.mxu0 0
  %4835 = vmatpush1.bf16.msra.mxu0 0
  %4836 = vmatprep.subr.bf16.mxu0 0
  %4837 = vmatpush1.bf16.msra.mxu0 0
  %4838 = vmatprep.subr.bf16.mxu0 0
  %4839 = vmatpush1.bf16.msra.mxu0 0
  %4840 = vmatprep.subr.bf16.mxu0 0
  %4841 = vmatpush1.bf16.msra.mxu0 0
  %4842 = vmatprep.subr.bf16.mxu0 0
  %4843 = vmatpush1.bf16.msra.mxu0 0
  %4844 = vmatprep.subr.bf16.mxu0 0
  %4845 = vmatpush1.bf16.msra.mxu0 0
  %4846 = vmatprep.subr.bf16.mxu0 0
  %4847 = vmatpush1.bf16.msra.mxu0 0
  %4848 = vmatprep.mubr.bf16.mxu0 0
  %4849 = vmatmul.mubr.bf16.gmra.mrb[0].mxu0 %v4769
  %v4850 = vpop.f32.mrb[0].mxu0
  %v4851 = vadd.f32 %v4707, %v4850
  %v4852 = vpop.f32.mrb[0].mxu0
  %v4853 = vpop.f32.mrb[0].mxu0
  %v4854 = vadd.f32 %v4707, %v4853
  %v4855 = vpop.f32.mrb[0].mxu0
  %4856 = vmatprep.mubr.bf16.mxu0 0
  %4857 = vmatmul.mubr.bf16.gmra.mrb[0].mxu0 %v4772
  %v4858 = vpop.f32.mrb[0].mxu0
  %v4859 = vadd.f32 %v4707, %v4858
  %v4860 = vpop.f32.mrb[0].mxu0
  %v4861 = vpop.f32.mrb[0].mxu0
  %v4862 = vadd.f32 %v4707, %v4861
  %v4863 = vpop.f32.mrb[0].mxu0
  %4864 = vmatprep.mubr.bf16.mxu0 0
  %4865 = vmatmul.mubr.bf16.gmra.mrb[0].mxu0 %v4775
  %v4866 = vpop.f32.mrb[0].mxu0
  %v4867 = vadd.f32 %v4707, %v4866
  %v4868 = vpop.f32.mrb[0].mxu0
  %v4869 = vpop.f32.mrb[0].mxu0
  %v4870 = vadd.f32 %v4707, %v4869
  %v4871 = vpop.f32.mrb[0].mxu0
  %4872 = vmatprep.mubr.bf16.mxu0 0
  %4873 = vmatmul.mubr.bf16.gmra.mrb[0].mxu0 %v4778
  %v4874 = vpop.f32.mrb[0].mxu0
  %v4875 = vadd.f32 %v4707, %v4874
  %v4876 = vpop.f32.mrb[0].mxu0
  %v4877 = vpop.f32.mrb[0].mxu0
  %v4878 = vadd.f32 %v4707, %v4877
  %v4879 = vpop.f32.mrb[0].mxu0
  %4880 = vmatprep.mubr.bf16.mxu0 0
  %4881 = vmatmul.mubr.bf16.gmra.mrb[0].mxu0 %v4781
  %v4882 = vpop.f32.mrb[0].mxu0
  %v4883 = vadd.f32 %v4707, %v4882
  %v4884 = vpop.f32.mrb[0].mxu0
  %v4885 = vpop.f32.mrb[0].mxu0
  %v4886 = vadd.f32 %v4707, %v4885
  %v4887 = vpop.f32.mrb[0].mxu0
  %4888 = vmatprep.mubr.bf16.mxu0 0
  %4889 = vmatmul.mubr.bf16.gmra.mrb[0].mxu0 %v4784
  %v4890 = vpop.f32.mrb[0].mxu0
  %v4891 = vadd.f32 %v4707, %v4890
  %v4892 = vpop.f32.mrb[0].mxu0
  %v4893 = vpop.f32.mrb[0].mxu0
  %v4894 = vadd.f32 %v4707, %v4893
  %v4895 = vpop.f32.mrb[0].mxu0
  %4896 = vmatprep.mubr.bf16.mxu0 0
  %4897 = vmatmul.mubr.bf16.gmra.mrb[0].mxu0 %v4787
  %v4898 = vpop.f32.mrb[0].mxu0
  %v4899 = vadd.f32 %v4707, %v4898
  %v4900 = vpop.f32.mrb[0].mxu0
  %v4901 = vpop.f32.mrb[0].mxu0
  %v4902 = vadd.f32 %v4707, %v4901
  %v4903 = vpop.f32.mrb[0].mxu0
  %4904 = vmatprep.mubr.bf16.mxu0 0
  %4905 = vmatmul.mubr.bf16.gmra.mrb[0].mxu0 %v4790
  %v4906 = vpop.f32.mrb[0].mxu0
  %v4907 = vadd.f32 %v4707, %v4906
  %v4908 = vpop.f32.mrb[0].mxu0
  %v4909 = vpop.f32.mrb[0].mxu0
  %v4910 = vadd.f32 %v4707, %v4909
  %v4911 = vpop.f32.mrb[0].mxu0
  %4912 = vmatprep.mubr.bf16.mxu0 0
  %4913 = vmatmul.mubr.bf16.gmra.mrb[0].mxu0 %v4793
  %v4914 = vpop.f32.mrb[0].mxu0
  %v4915 = vadd.f32 %v4707, %v4914
  %v4916 = vpop.f32.mrb[0].mxu0
  %v4917 = vpop.f32.mrb[0].mxu0
  %v4918 = vadd.f32 %v4707, %v4917
  %v4919 = vpop.f32.mrb[0].mxu0
  %4920 = vmatprep.mubr.bf16.mxu0 0
  %4921 = vmatmul.mubr.bf16.gmra.mrb[0].mxu0 %v4796
  %v4922 = vpop.f32.mrb[0].mxu0
  %v4923 = vadd.f32 %v4707, %v4922
  %v4924 = vpop.f32.mrb[0].mxu0
  %v4925 = vpop.f32.mrb[0].mxu0
  %v4926 = vadd.f32 %v4707, %v4925
  %v4927 = vpop.f32.mrb[0].mxu0
  %4928 = vmatprep.mubr.bf16.mxu0 0
  %4929 = vmatmul.mubr.bf16.gmra.mrb[0].mxu0 %v4799
  %v4930 = vpop.f32.mrb[0].mxu0
  %v4931 = vadd.f32 %v4707, %v4930
  %v4932 = vpop.f32.mrb[0].mxu0
  %v4933 = vpop.f32.mrb[0].mxu0
  %v4934 = vadd.f32 %v4707, %v4933
  %v4935 = vpop.f32.mrb[0].mxu0
  %4936 = vmatprep.mubr.bf16.mxu0 0
  %4937 = vmatmul.mubr.bf16.gmra.mrb[0].mxu0 %v4802
  %v4938 = vpop.f32.mrb[0].mxu0
  %v4939 = vadd.f32 %v4707, %v4938
  %v4940 = vpop.f32.mrb[0].mxu0
  %v4941 = vpop.f32.mrb[0].mxu0
  %v4942 = vadd.f32 %v4707, %v4941
  %v4943 = vpop.f32.mrb[0].mxu0
  %4944 = vmatprep.mubr.bf16.mxu0 0
  %4945 = vmatmul.mubr.bf16.gmra.mrb[0].mxu0 %v4805
  %v4946 = vpop.f32.mrb[0].mxu0
  %v4947 = vadd.f32 %v4707, %v4946
  %v4948 = vpop.f32.mrb[0].mxu0
  %v4949 = vpop.f32.mrb[0].mxu0
  %v4950 = vadd.f32 %v4707, %v4949
  %v4951 = vpop.f32.mrb[0].mxu0
  %4952 = vmatprep.mubr.bf16.mxu0 0
  %4953 = vmatmul.mubr.bf16.gmra.mrb[0].mxu0 %v4808
  %v4954 = vpop.f32.mrb[0].mxu0
  %v4955 = vadd.f32 %v4707, %v4954
  %v4956 = vpop.f32.mrb[0].mxu0
  %v4957 = vpop.f32.mrb[0].mxu0
  %v4958 = vadd.f32 %v4707, %v4957
  %v4959 = vpop.f32.mrb[0].mxu0
  %4960 = vmatprep.mubr.bf16.mxu0 0
  %4961 = vmatmul.mubr.bf16.gmra.mrb[0].mxu0 %v4811
  %v4962 = vpop.f32.mrb[0].mxu0
  %v4963 = vadd.f32 %v4707, %v4962
  %v4964 = vpop.f32.mrb[0].mxu0
  %v4965 = vpop.f32.mrb[0].mxu0
  %v4966 = vadd.f32 %v4707, %v4965
  %v4967 = vpop.f32.mrb[0].mxu0
  %4968 = vmatprep.mubr.bf16.mxu0 0
  %4969 = vmatmul.mubr.bf16.gmra.mrb[0].mxu0 %v4814
  %v4970 = vpop.f32.mrb[0].mxu0
  %v4971 = vadd.f32 %v4707, %v4970
  %v4972 = vpop.f32.mrb[0].mxu0
  %v4973 = vpop.f32.mrb[0].mxu0
  %v4974 = vadd.f32 %v4707, %v4973
  %v4975 = vpop.f32.mrb[0].mxu0
  %4976 = vdwg.mxu0
  %5009 = vrot.lane.b32.xlu0 %v4851, 96
  %v5010 = vpop.permute.xlu0 %5009
  %5011 = vrot.lane.b32.xlu0 %v4854, 96
  %v5012 = vpop.permute.xlu0 %5011
  %5013 = vrot.lane.b32.xlu0 %v4859, 96
  %v5014 = vpop.permute.xlu0 %5013
  %5015 = vrot.lane.b32.xlu0 %v4862, 96
  %v5016 = vpop.permute.xlu0 %5015
  %5017 = vrot.lane.b32.xlu0 %v4867, 96
  %v5018 = vpop.permute.xlu0 %5017
  %5019 = vrot.lane.b32.xlu0 %v4870, 96
  %v5020 = vpop.permute.xlu0 %5019
  %5021 = vrot.lane.b32.xlu0 %v4875, 96
  %v5022 = vpop.permute.xlu0 %5021
  %5023 = vrot.lane.b32.xlu0 %v4878, 96
  %v5024 = vpop.permute.xlu0 %5023
  %5025 = vrot.lane.b32.xlu0 %v4883, 96
  %v5026 = vpop.permute.xlu0 %5025
  %5027 = vrot.lane.b32.xlu0 %v4886, 96
  %v5028 = vpop.permute.xlu0 %5027
  %5029 = vrot.lane.b32.xlu0 %v4891, 96
  %v5030 = vpop.permute.xlu0 %5029
  %5031 = vrot.lane.b32.xlu0 %v4894, 96
  %v5032 = vpop.permute.xlu0 %5031
  %5033 = vrot.lane.b32.xlu0 %v4899, 96
  %v5034 = vpop.permute.xlu0 %5033
  %5035 = vrot.lane.b32.xlu0 %v4902, 96
  %v5036 = vpop.permute.xlu0 %5035
  %5037 = vrot.lane.b32.xlu0 %v4907, 96
  %v5038 = vpop.permute.xlu0 %5037
  %5039 = vrot.lane.b32.xlu0 %v4910, 96
  %v5040 = vpop.permute.xlu0 %5039
  %5041 = vrot.lane.b32.xlu0 %v4915, 96
  %v5042 = vpop.permute.xlu0 %5041
  %5043 = vrot.lane.b32.xlu0 %v4918, 96
  %v5044 = vpop.permute.xlu0 %5043
  %5045 = vrot.lane.b32.xlu0 %v4923, 96
  %v5046 = vpop.permute.xlu0 %5045
  %5047 = vrot.lane.b32.xlu0 %v4926, 96
  %v5048 = vpop.permute.xlu0 %5047
  %5049 = vrot.lane.b32.xlu0 %v4931, 96
  %v5050 = vpop.permute.xlu0 %5049
  %5051 = vrot.lane.b32.xlu0 %v4934, 96
  %v5052 = vpop.permute.xlu0 %5051
  %5053 = vrot.lane.b32.xlu0 %v4939, 96
  %v5054 = vpop.permute.xlu0 %5053
  %5055 = vrot.lane.b32.xlu0 %v4942, 96
  %v5056 = vpop.permute.xlu0 %5055
  %5057 = vrot.lane.b32.xlu0 %v4947, 96
  %v5058 = vpop.permute.xlu0 %5057
  %5059 = vrot.lane.b32.xlu0 %v4950, 96
  %v5060 = vpop.permute.xlu0 %5059
  %5061 = vrot.lane.b32.xlu0 %v4955, 96
  %v5062 = vpop.permute.xlu0 %5061
  %5063 = vrot.lane.b32.xlu0 %v4958, 96
  %v5064 = vpop.permute.xlu0 %5063
  %5065 = vrot.lane.b32.xlu0 %v4963, 96
  %v5066 = vpop.permute.xlu0 %5065
  %5067 = vrot.lane.b32.xlu0 %v4966, 96
  %v5068 = vpop.permute.xlu0 %5067
  %5069 = vrot.lane.b32.xlu0 %v4971, 96
  %v5070 = vpop.permute.xlu0 %5069
  %5071 = vrot.lane.b32.xlu0 %v4974, 96
  %v5072 = vpop.permute.xlu0 %5071
  %v5105 = vmul.f32 %v595, %v5010
  %v5106 = vmul.f32 %v699, %v5012
  %v5107 = vmul.f32 %v803, %v5014
  %v5108 = vmul.f32 %v907, %v5016
  %v5109 = vmul.f32 %v1011, %v5018
  %v5110 = vmul.f32 %v1115, %v5020
  %v5111 = vmul.f32 %v1219, %v5022
  %v5112 = vmul.f32 %v1323, %v5024
  %v5113 = vmul.f32 %v1427, %v5026
  %v5114 = vmul.f32 %v1531, %v5028
  %v5115 = vmul.f32 %v1635, %v5030
  %v5116 = vmul.f32 %v1739, %v5032
  %v5117 = vmul.f32 %v1843, %v5034
  %v5118 = vmul.f32 %v1947, %v5036
  %v5119 = vmul.f32 %v2051, %v5038
  %v5120 = vmul.f32 %v2155, %v5040
  %v5121 = vmul.f32 %v2259, %v5042
  %v5122 = vmul.f32 %v2363, %v5044
  %v5123 = vmul.f32 %v2467, %v5046
  %v5124 = vmul.f32 %v2571, %v5048
  %v5125 = vmul.f32 %v2675, %v5050
  %v5126 = vmul.f32 %v2779, %v5052
  %v5127 = vmul.f32 %v2883, %v5054
  %v5128 = vmul.f32 %v2987, %v5056
  %v5129 = vmul.f32 %v3091, %v5058
  %v5130 = vmul.f32 %v3195, %v5060
  %v5131 = vmul.f32 %v3299, %v5062
  %v5132 = vmul.f32 %v3403, %v5064
  %v5133 = vmul.f32 %v3507, %v5066
  %v5134 = vmul.f32 %v3611, %v5068
  %v5135 = vmul.f32 %v3715, %v5070
  %v5136 = vmul.f32 %v3819, %v5072
  %v5137 = vpack.c.bf16 %v5106, %v5105
  %v5138 = vpack.c.bf16 %v5108, %v5107
  %v5139 = vpack.c.bf16 %v5110, %v5109
  %v5140 = vpack.c.bf16 %v5112, %v5111
  %v5141 = vpack.c.bf16 %v5114, %v5113
  %v5142 = vpack.c.bf16 %v5116, %v5115
  %v5143 = vpack.c.bf16 %v5118, %v5117
  %v5144 = vpack.c.bf16 %v5120, %v5119
  %v5145 = vpack.c.bf16 %v5122, %v5121
  %v5146 = vpack.c.bf16 %v5124, %v5123
  %v5147 = vpack.c.bf16 %v5126, %v5125
  %v5148 = vpack.c.bf16 %v5128, %v5127
  %v5149 = vpack.c.bf16 %v5130, %v5129
  %v5150 = vpack.c.bf16 %v5132, %v5131
  %v5151 = vpack.c.bf16 %v5134, %v5133
  %v5152 = vpack.c.bf16 %v5136, %v5135
  %v5153 = vld [vmem:[%s5] sm:$0xf]
  %v5154 = vld [vmem:[%s5 + $0x4] sm:$0xf]
  %v5155 = vld [vmem:[%s5 + $0x8] sm:$0xf]
  %v5156 = vld [vmem:[%s5 + $0xc] sm:$0xf]
  %v5157 = vld [vmem:[%s6] sm:$0x1]
  %v5159 = vlaneseq
  %v5160 = vshrl.u32 %v5159, 7
  %v5161 = vsub.s32 0, %v5160
  %v5162 = vrot.slane %v5157, %v5161
  %5180 = vrot.lane.b32.xlu0 %v5137, 32
  %v5181 = vpop.permute.xlu0 %5180
  %5182 = vrot.lane.b32.xlu0 %v5138, 32
  %v5183 = vpop.permute.xlu0 %5182
  %5184 = vrot.lane.b32.xlu0 %v5139, 32
  %v5185 = vpop.permute.xlu0 %5184
  %5186 = vrot.lane.b32.xlu0 %v5140, 32
  %v5187 = vpop.permute.xlu0 %5186
  %5188 = vrot.lane.b32.xlu0 %v5141, 32
  %v5189 = vpop.permute.xlu0 %5188
  %5190 = vrot.lane.b32.xlu0 %v5142, 32
  %v5191 = vpop.permute.xlu0 %5190
  %5192 = vrot.lane.b32.xlu0 %v5143, 32
  %v5193 = vpop.permute.xlu0 %5192
  %5194 = vrot.lane.b32.xlu0 %v5144, 32
  %v5195 = vpop.permute.xlu0 %5194
  %5196 = vrot.lane.b32.xlu0 %v5145, 32
  %v5197 = vpop.permute.xlu0 %5196
  %5198 = vrot.lane.b32.xlu0 %v5146, 32
  %v5199 = vpop.permute.xlu0 %5198
  %5200 = vrot.lane.b32.xlu0 %v5147, 32
  %v5201 = vpop.permute.xlu0 %5200
  %5202 = vrot.lane.b32.xlu0 %v5148, 32
  %v5203 = vpop.permute.xlu0 %5202
  %5204 = vrot.lane.b32.xlu0 %v5149, 32
  %v5205 = vpop.permute.xlu0 %5204
  %5206 = vrot.lane.b32.xlu0 %v5150, 32
  %v5207 = vpop.permute.xlu0 %5206
  %5208 = vrot.lane.b32.xlu0 %v5151, 32
  %v5209 = vpop.permute.xlu0 %5208
  %5210 = vrot.lane.b32.xlu0 %v5152, 32
  %v5211 = vpop.permute.xlu0 %5210
  %v5216 = vunpack.c.l.b16 %v5153
  %v5217 = vunpack.c.l.b16 %v5154
  %v5218 = vunpack.c.l.b16 %v5155
  %v5219 = vunpack.c.l.b16 %v5156
  %v5220 = vpack.c.b16 %v5217, %v5216
  %v5221 = vpack.c.b16 %v5219, %v5218
  %v5225 = vsel %vm3857, %v5181, 0
  %v5228 = vsel %vm3857, %v5183, 0
  %v5231 = vsel %vm3857, %v5185, 0
  %v5234 = vsel %vm3857, %v5187, 0
  %v5237 = vsel %vm3857, %v5189, 0
  %v5240 = vsel %vm3857, %v5191, 0
  %v5243 = vsel %vm3857, %v5193, 0
  %v5246 = vsel %vm3857, %v5195, 0
  %v5249 = vsel %vm3857, %v5197, 0
  %v5252 = vsel %vm3857, %v5199, 0
  %v5255 = vsel %vm3857, %v5201, 0
  %v5258 = vsel %vm3857, %v5203, 0
  %v5261 = vsel %vm3857, %v5205, 0
  %v5264 = vsel %vm3857, %v5207, 0
  %v5267 = vsel %vm3857, %v5209, 0
  %v5270 = vsel %vm3857, %v5211, 0
  %5272 = vmatprep.subr.bf16.mxu0 0
  %5273 = vmatpush1.bf16.msra.mxu0 %v5220
  %5274 = vmatprep.subr.bf16.mxu0 0
  %5275 = vmatpush1.bf16.msra.mxu0 %v5221
  %5276 = vmatprep.subr.bf16.mxu0 0
  %5277 = vmatpush1.bf16.msra.mxu0 0
  %5278 = vmatprep.subr.bf16.mxu0 0
  %5279 = vmatpush1.bf16.msra.mxu0 0
  %5280 = vmatprep.subr.bf16.mxu0 0
  %5281 = vmatpush1.bf16.msra.mxu0 0
  %5282 = vmatprep.subr.bf16.mxu0 0
  %5283 = vmatpush1.bf16.msra.mxu0 0
  %5284 = vmatprep.subr.bf16.mxu0 0
  %5285 = vmatpush1.bf16.msra.mxu0 0
  %5286 = vmatprep.subr.bf16.mxu0 0
  %5287 = vmatpush1.bf16.msra.mxu0 0
  %5288 = vmatprep.subr.bf16.mxu0 0
  %5289 = vmatpush1.bf16.msra.mxu0 0
  %5290 = vmatprep.subr.bf16.mxu0 0
  %5291 = vmatpush1.bf16.msra.mxu0 0
  %5292 = vmatprep.subr.bf16.mxu0 0
  %5293 = vmatpush1.bf16.msra.mxu0 0
  %5294 = vmatprep.subr.bf16.mxu0 0
  %5295 = vmatpush1.bf16.msra.mxu0 0
  %5296 = vmatprep.subr.bf16.mxu0 0
  %5297 = vmatpush1.bf16.msra.mxu0 0
  %5298 = vmatprep.subr.bf16.mxu0 0
  %5299 = vmatpush1.bf16.msra.mxu0 0
  %5300 = vmatprep.subr.bf16.mxu0 0
  %5301 = vmatpush1.bf16.msra.mxu0 0
  %5302 = vmatprep.subr.bf16.mxu0 0
  %5303 = vmatpush1.bf16.msra.mxu0 0
  %5304 = vmatprep.mubr.bf16.mxu0 0
  %5305 = vmatmul.mubr.bf16.gmra.mrb[0].mxu0 %v5225
  %v5306 = vpop.f32.mrb[0].mxu0
  %v5307 = vadd.f32 %v5162, %v5306
  %v5308 = vpop.f32.mrb[0].mxu0
  %v5309 = vpop.f32.mrb[0].mxu0
  %v5310 = vadd.f32 %v5162, %v5309
  %v5311 = vpop.f32.mrb[0].mxu0
  %5312 = vmatprep.mubr.bf16.mxu0 0
  %5313 = vmatmul.mubr.bf16.gmra.mrb[0].mxu0 %v5228
  %v5314 = vpop.f32.mrb[0].mxu0
  %v5315 = vadd.f32 %v5162, %v5314
  %v5316 = vpop.f32.mrb[0].mxu0
  %v5317 = vpop.f32.mrb[0].mxu0
  %v5318 = vadd.f32 %v5162, %v5317
  %v5319 = vpop.f32.mrb[0].mxu0
  %5320 = vmatprep.mubr.bf16.mxu0 0
  %5321 = vmatmul.mubr.bf16.gmra.mrb[0].mxu0 %v5231
  %v5322 = vpop.f32.mrb[0].mxu0
  %v5323 = vadd.f32 %v5162, %v5322
  %v5324 = vpop.f32.mrb[0].mxu0
  %v5325 = vpop.f32.mrb[0].mxu0
  %v5326 = vadd.f32 %v5162, %v5325
  %v5327 = vpop.f32.mrb[0].mxu0
  %5328 = vmatprep.mubr.bf16.mxu0 0
  %5329 = vmatmul.mubr.bf16.gmra.mrb[0].mxu0 %v5234
  %v5330 = vpop.f32.mrb[0].mxu0
  %v5331 = vadd.f32 %v5162, %v5330
  %v5332 = vpop.f32.mrb[0].mxu0
  %v5333 = vpop.f32.mrb[0].mxu0
  %v5334 = vadd.f32 %v5162, %v5333
  %v5335 = vpop.f32.mrb[0].mxu0
  %5336 = vmatprep.mubr.bf16.mxu0 0
  %5337 = vmatmul.mubr.bf16.gmra.mrb[0].mxu0 %v5237
  %v5338 = vpop.f32.mrb[0].mxu0
  %v5339 = vadd.f32 %v5162, %v5338
  %v5340 = vpop.f32.mrb[0].mxu0
  %v5341 = vpop.f32.mrb[0].mxu0
  %v5342 = vadd.f32 %v5162, %v5341
  %v5343 = vpop.f32.mrb[0].mxu0
  %5344 = vmatprep.mubr.bf16.mxu0 0
  %5345 = vmatmul.mubr.bf16.gmra.mrb[0].mxu0 %v5240
  %v5346 = vpop.f32.mrb[0].mxu0
  %v5347 = vadd.f32 %v5162, %v5346
  %v5348 = vpop.f32.mrb[0].mxu0
  %v5349 = vpop.f32.mrb[0].mxu0
  %v5350 = vadd.f32 %v5162, %v5349
  %v5351 = vpop.f32.mrb[0].mxu0
  %5352 = vmatprep.mubr.bf16.mxu0 0
  %5353 = vmatmul.mubr.bf16.gmra.mrb[0].mxu0 %v5243
  %v5354 = vpop.f32.mrb[0].mxu0
  %v5355 = vadd.f32 %v5162, %v5354
  %v5356 = vpop.f32.mrb[0].mxu0
  %v5357 = vpop.f32.mrb[0].mxu0
  %v5358 = vadd.f32 %v5162, %v5357
  %v5359 = vpop.f32.mrb[0].mxu0
  %5360 = vmatprep.mubr.bf16.mxu0 0
  %5361 = vmatmul.mubr.bf16.gmra.mrb[0].mxu0 %v5246
  %v5362 = vpop.f32.mrb[0].mxu0
  %v5363 = vadd.f32 %v5162, %v5362
  %v5364 = vpop.f32.mrb[0].mxu0
  %v5365 = vpop.f32.mrb[0].mxu0
  %v5366 = vadd.f32 %v5162, %v5365
  %v5367 = vpop.f32.mrb[0].mxu0
  %5368 = vmatprep.mubr.bf16.mxu0 0
  %5369 = vmatmul.mubr.bf16.gmra.mrb[0].mxu0 %v5249
  %v5370 = vpop.f32.mrb[0].mxu0
  %v5371 = vadd.f32 %v5162, %v5370
  %v5372 = vpop.f32.mrb[0].mxu0
  %v5373 = vpop.f32.mrb[0].mxu0
  %v5374 = vadd.f32 %v5162, %v5373
  %v5375 = vpop.f32.mrb[0].mxu0
  %5376 = vmatprep.mubr.bf16.mxu0 0
  %5377 = vmatmul.mubr.bf16.gmra.mrb[0].mxu0 %v5252
  %v5378 = vpop.f32.mrb[0].mxu0
  %v5379 = vadd.f32 %v5162, %v5378
  %v5380 = vpop.f32.mrb[0].mxu0
  %v5381 = vpop.f32.mrb[0].mxu0
  %v5382 = vadd.f32 %v5162, %v5381
  %v5383 = vpop.f32.mrb[0].mxu0
  %5384 = vmatprep.mubr.bf16.mxu0 0
  %5385 = vmatmul.mubr.bf16.gmra.mrb[0].mxu0 %v5255
  %v5386 = vpop.f32.mrb[0].mxu0
  %v5387 = vadd.f32 %v5162, %v5386
  %v5388 = vpop.f32.mrb[0].mxu0
  %v5389 = vpop.f32.mrb[0].mxu0
  %v5390 = vadd.f32 %v5162, %v5389
  %v5391 = vpop.f32.mrb[0].mxu0
  %5392 = vmatprep.mubr.bf16.mxu0 0
  %5393 = vmatmul.mubr.bf16.gmra.mrb[0].mxu0 %v5258
  %v5394 = vpop.f32.mrb[0].mxu0
  %v5395 = vadd.f32 %v5162, %v5394
  %v5396 = vpop.f32.mrb[0].mxu0
  %v5397 = vpop.f32.mrb[0].mxu0
  %v5398 = vadd.f32 %v5162, %v5397
  %v5399 = vpop.f32.mrb[0].mxu0
  %5400 = vmatprep.mubr.bf16.mxu0 0
  %5401 = vmatmul.mubr.bf16.gmra.mrb[0].mxu0 %v5261
  %v5402 = vpop.f32.mrb[0].mxu0
  %v5403 = vadd.f32 %v5162, %v5402
  %v5404 = vpop.f32.mrb[0].mxu0
  %v5405 = vpop.f32.mrb[0].mxu0
  %v5406 = vadd.f32 %v5162, %v5405
  %v5407 = vpop.f32.mrb[0].mxu0
  %5408 = vmatprep.mubr.bf16.mxu0 0
  %5409 = vmatmul.mubr.bf16.gmra.mrb[0].mxu0 %v5264
  %v5410 = vpop.f32.mrb[0].mxu0
  %v5411 = vadd.f32 %v5162, %v5410
  %v5412 = vpop.f32.mrb[0].mxu0
  %v5413 = vpop.f32.mrb[0].mxu0
  %v5414 = vadd.f32 %v5162, %v5413
  %v5415 = vpop.f32.mrb[0].mxu0
  %5416 = vmatprep.mubr.bf16.mxu0 0
  %5417 = vmatmul.mubr.bf16.gmra.mrb[0].mxu0 %v5267
  %v5418 = vpop.f32.mrb[0].mxu0
  %v5419 = vadd.f32 %v5162, %v5418
  %v5420 = vpop.f32.mrb[0].mxu0
  %v5421 = vpop.f32.mrb[0].mxu0
  %v5422 = vadd.f32 %v5162, %v5421
  %v5423 = vpop.f32.mrb[0].mxu0
  %5424 = vmatprep.mubr.bf16.mxu0 0
  %5425 = vmatmul.mubr.bf16.gmra.mrb[0].mxu0 %v5270
  %v5426 = vpop.f32.mrb[0].mxu0
  %v5427 = vadd.f32 %v5162, %v5426
  %v5428 = vpop.f32.mrb[0].mxu0
  %v5429 = vpop.f32.mrb[0].mxu0
  %v5430 = vadd.f32 %v5162, %v5429
  %v5431 = vpop.f32.mrb[0].mxu0
  %5432 = vdwg.mxu0
  %vm5433 = vcmask 23552
  %5434 = vst.msk [vmem:[%s7] sm:$0xff] %vm5433, %v5307
  %5435 = vst.msk [vmem:[%s7 + $0x8] sm:$0xff] %vm5433, %v5310
  %5436 = vst.msk [vmem:[%s7 + $0x10] sm:$0xff] %vm5433, %v5315
  %5437 = vst.msk [vmem:[%s7 + $0x18] sm:$0xff] %vm5433, %v5318
  %5438 = vst.msk [vmem:[%s7 + $0x20] sm:$0xff] %vm5433, %v5323
  %5439 = vst.msk [vmem:[%s7 + $0x28] sm:$0xff] %vm5433, %v5326
  %5440 = vst.msk [vmem:[%s7 + $0x30] sm:$0xff] %vm5433, %v5331
  %5441 = vst.msk [vmem:[%s7 + $0x38] sm:$0xff] %vm5433, %v5334
  %5442 = vst.msk [vmem:[%s7 + $0x40] sm:$0xff] %vm5433, %v5339
  %5443 = vst.msk [vmem:[%s7 + $0x48] sm:$0xff] %vm5433, %v5342
  %5444 = vst.msk [vmem:[%s7 + $0x50] sm:$0xff] %vm5433, %v5347
  %5445 = vst.msk [vmem:[%s7 + $0x58] sm:$0xff] %vm5433, %v5350
  %5446 = vst.msk [vmem:[%s7 + $0x60] sm:$0xff] %vm5433, %v5355
  %5447 = vst.msk [vmem:[%s7 + $0x68] sm:$0xff] %vm5433, %v5358
  %5448 = vst.msk [vmem:[%s7 + $0x70] sm:$0xff] %vm5433, %v5363
  %5449 = vst.msk [vmem:[%s7 + $0x78] sm:$0xff] %vm5433, %v5366
  %5450 = vst.msk [vmem:[%s7 + $0x80] sm:$0xff] %vm5433, %v5371
  %5451 = vst.msk [vmem:[%s7 + $0x88] sm:$0xff] %vm5433, %v5374
  %5452 = vst.msk [vmem:[%s7 + $0x90] sm:$0xff] %vm5433, %v5379
  %5453 = vst.msk [vmem:[%s7 + $0x98] sm:$0xff] %vm5433, %v5382
  %5454 = vst.msk [vmem:[%s7 + $0xa0] sm:$0xff] %vm5433, %v5387
  %5455 = vst.msk [vmem:[%s7 + $0xa8] sm:$0xff] %vm5433, %v5390
  %5456 = vst.msk [vmem:[%s7 + $0xb0] sm:$0xff] %vm5433, %v5395
  %5457 = vst.msk [vmem:[%s7 + $0xb8] sm:$0xff] %vm5433, %v5398
  %5458 = vst.msk [vmem:[%s7 + $0xc0] sm:$0xff] %vm5433, %v5403
  %5459 = vst.msk [vmem:[%s7 + $0xc8] sm:$0xff] %vm5433, %v5406
  %5460 = vst.msk [vmem:[%s7 + $0xd0] sm:$0xff] %vm5433, %v5411
  %5461 = vst.msk [vmem:[%s7 + $0xd8] sm:$0xff] %vm5433, %v5414
  %5462 = vst.msk [vmem:[%s7 + $0xe0] sm:$0xff] %vm5433, %v5419
  %5463 = vst.msk [vmem:[%s7 + $0xe8] sm:$0xff] %vm5433, %v5422
  %5464 = vst.msk [vmem:[%s7 + $0xf0] sm:$0xff] %vm5433, %v5427
  %5465 = vst.msk [vmem:[%s7 + $0xf8] sm:$0xff] %vm5433, %v5430
  // Predicated region
  $region30: #{tpu_custom_call.1} parent=0 // pred_check
    _
  $region31: #{tpu_custom_call.1} parent=0 // pred_check_branch
    %5467 = sbr.rel (0) target = $region33
  $region32: #{tpu_custom_call.1} parent=0 // pred_region
    _
  $region33: #{tpu_custom_call.1} parent=0 // pred_fallthru
    _
  // Predicated region
  $region34: #{tpu_custom_call.1} parent=0 // pred_check
    _
  $region35: #{tpu_custom_call.1} parent=0 // pred_check_branch
    %5469 = sbr.rel (0) target = $region37
  $region36: #{tpu_custom_call.1} parent=0 // pred_region
    _
  $region37: #{tpu_custom_call.1} parent=0 // pred_fallthru
    _

</llo_original>
